<compile_context>
chip_gen: v7x
topology: tpu7x:2x2x1
jax: 0.10.0
libtpu: 0.0.40
codegen_flags: <defaults>
</compile_context>

<pallas_src>
import functools

import jax
import jax.numpy as jnp
from jax.experimental import pallas as pl
from jax.experimental.pallas import tpu as pltpu


HEAD_DIM = 64   # PyTorch module: n_heads = emb_dim // 64
LN_EPS = 1e-5   # nn.LayerNorm default eps
NEG_BIG = -1e30


def _layer_norm(z, gamma, beta):
    """LayerNorm over the last (lane) axis, f32 math."""
    mu = jnp.mean(z, axis=-1, keepdims=True)
    c = z - mu
    var = jnp.mean(c * c, axis=-1, keepdims=True)
    return c * jax.lax.rsqrt(var + LN_EPS) * gamma + beta


def _vbp_kernel(x_ref, y_ref,
                g1_ref, be1_ref, g2_ref, be2_ref, g3_ref, be3_ref,
                wq_ref, wkv_ref, bq_ref, bkv_ref,
                w1_ref, b1_ref, w2_ref, b2_ref,
                o_ref,
                attn_scr,
                *, t_valid, gelu_dtype, mlp_chunk):
    TB, m, E = x_ref.shape
    _, t, _ = y_ref.shape
    H = E // HEAD_DIM
    D = HEAD_DIM
    E4 = 4 * E

    # Matmul operands follow the weight dtype (bf16 weights -> bf16 MXU
    # operands); accumulation stays f32 via preferred_element_type.
    wdt = wq_ref.dtype

    x = x_ref[...].astype(jnp.float32)          # (TB, m, E)
    y = y_ref[...].astype(jnp.float32)          # (TB, t, E)
    xf = x.reshape(TB * m, E)                   # lane-dense slabs for the MXU
    yf = y.reshape(TB * t, E)

    qn = _layer_norm(xf, g1_ref[...], be1_ref[...])   # (TB*m, E)
    kn = _layer_norm(yf, g2_ref[...], be2_ref[...])   # (TB*t, E), used for K and V

    # ---- projections: Q, and fused K|V (one wider-N matmul on shared LHS) ----
    Q = jnp.dot(qn.astype(wdt), wq_ref[...],
                preferred_element_type=jnp.float32) + bq_ref[...].astype(jnp.float32)
    KV = jnp.dot(kn.astype(wdt), wkv_ref[...],
                 preferred_element_type=jnp.float32) + bkv_ref[...].astype(jnp.float32)

    Qb = Q.reshape(TB, m, E)
    Kb = KV[:, :E].reshape(TB, t, E)            # 128-aligned lane slices
    Vb = KV[:, E:].reshape(TB, t, E)

    # ---- attention: static lane-slice per head, batched over TB.
    # Each head's output is stored straight to VMEM scratch (no concat relayout,
    # no H live head outputs).
    for h in range(H):
        sl = pl.ds(h * D, D)
        qh = Qb[:, :, h * D:(h + 1) * D]        # (TB, m, D)
        kh = Kb[:, :, h * D:(h + 1) * D]        # (TB, t, D)
        vh = Vb[:, :, h * D:(h + 1) * D]        # (TB, t, D)
        # K^T folded into the contraction -- no transposed copy.
        # NOT scaled by 1/sqrt(D): matches the PyTorch module (scale unused).
        dots = jnp.einsum('bmd,btd->bmt', qh, kh,
                          preferred_element_type=jnp.float32)   # (TB, m, t)
        if t_valid < t:  # static mask for sublane-padded key rows
            col = jax.lax.broadcasted_iota(jnp.int32, dots.shape, 2)
            dots = jnp.where(col < t_valid, dots, NEG_BIG)
        dots = dots - jnp.max(dots, axis=-1, keepdims=True)
        e = jnp.exp(dots)
        attn = e * pl.reciprocal(jnp.sum(e, axis=-1, keepdims=True), approx=True)
        attn_scr[:, :, sl] = jnp.einsum('bmt,btd->bmd', attn, vh,
                                        preferred_element_type=jnp.float32)

    # ---- residual 1 ----
    prompts = x + attn_scr[...]                 # (TB, m, E)
    pf = prompts.reshape(TB * m, E)

    # ---- MLP: LN3 -> Linear(E,4E) -> QuickGELU -> Linear(4E,E),
    # hidden dim processed in `mlp_chunk`-lane chunks with an f32 accumulator.
    n3 = _layer_norm(pf, g3_ref[...], be3_ref[...])
    n3w = n3.astype(wdt)

    mlp = jnp.zeros((TB * m, E), jnp.float32) + b2_ref[...].astype(jnp.float32)
    n_chunks = E4 // mlp_chunk
    for c in range(n_chunks):
        lo = c * mlp_chunk
        hid = jnp.dot(n3w, w1_ref[:, pl.ds(lo, mlp_chunk)],
                      preferred_element_type=jnp.float32)
        hid = hid + b1_ref[:, pl.ds(lo, mlp_chunk)].astype(jnp.float32)
        hid = hid.astype(gelu_dtype)
        hid = hid * jax.nn.sigmoid(jnp.asarray(1.702, gelu_dtype) * hid)  # QuickGELU
        # TODO(synk): nn.Dropout is identity at inference; training-mode dropout
        # (per-element RNG mask) is not implemented here.
        mlp = mlp + jnp.dot(hid.astype(wdt), w2_ref[pl.ds(lo, mlp_chunk), :],
                            preferred_element_type=jnp.float32)

    # ---- residual 2 + single lane-dense (TB, m, E) store ----
    out = pf + mlp
    o_ref[...] = out.reshape(TB, m, E).astype(o_ref.dtype)


# ------------------------- generation-aware config -------------------------

def _round_up(v, k):
    return (v + k - 1) // k * k


def _gen_config():
    """VMEM budget / megacore preference / v5e flag from the local TPU kind."""
    try:
        kind = jax.devices()[0].device_kind.lower()
    except Exception:
        kind = ""
    if "v7" in kind:                      # 64 MiB VMEM, 2 TCs
        return dict(vmem_limit=56 * 2**20, prefer_multistep=True, is_v5e=False)
    if "v6" in kind:                      # 128 MiB VMEM, 1 TC
        return dict(vmem_limit=100 * 2**20, prefer_multistep=False, is_v5e=False)
    if "v5" in kind:
        is_v5e = ("lite" in kind) or ("v5e" in kind)
        # v5e: 128 MiB, 1 TC; v5p: 128 MiB, 2 TCs
        return dict(vmem_limit=96 * 2**20, prefer_multistep=not is_v5e, is_v5e=is_v5e)
    if "v4" in kind:                      # 128 MiB, 2 TCs
        return dict(vmem_limit=96 * 2**20, prefer_multistep=True, is_v5e=False)
    # Unknown / older chip: leave the compiler default scoped limit alone.
    return dict(vmem_limit=None, prefer_multistep=True, is_v5e=False)


def _estimate_vmem_bytes(TB, m, t, E, in_itemsize, w_itemsize, single_buf_weights):
    """Rough per-step VMEM footprint used only to size TB."""
    E4 = 4 * E
    rows = TB * m
    io = 2 * (2 * TB * m * E + TB * t * E) * in_itemsize        # double-buffered x/out/y
    wvals = E * E + 2 * E * E + E * E4 + E4 * E                 # wq + wkv + w1 + w2
    bvals = 6 * E + E + 2 * E + E4 + E
    weights = (1 if single_buf_weights else 2) * (wvals * w_itemsize + bvals * 4)
    scratch = rows * E * 4                                      # attention head scratch
    ch = 512 if (E4 % 512 == 0 and E4 >= 512) else E4
    live = 4 * (rows * E * 7 + TB * t * E * 4 + rows * ch * 2)  # f32 body intermediates
    return io + weights + scratch + live


def _choose_block_batch(a, m, t, E, in_itemsize, w_itemsize, cfg, single_buf_weights):
    budget_base = cfg['vmem_limit'] if cfg['vmem_limit'] is not None else 32 * 2**20
    budget = int(0.85 * budget_base)
    divisors = [d for d in range(1, a + 1) if a % d == 0]
    fitting = [d for d in divisors
               if _estimate_vmem_bytes(d, m, t, E, in_itemsize, w_itemsize,
                                       single_buf_weights) <= budget]
    if not fitting:
        fitting = [1]
    if cfg['prefer_multistep'] and a >= 2:
        multi = [d for d in fitting if a // d >= 2]
        if multi:
            return max(multi)               # biggest tile that still gives >= 2 steps
    return max(fitting)                     # single-TC: just maximize the tile


# --------------------------------- wrapper ---------------------------------

def visual_based_prompt_pallas(x, y, params, *, block_batch=None,
                               single_buffer_weights=True):
    """x: (a, m, E); y: (a, t, E). Weights stored (in, out) so y = x @ W + b."""
    a, m, E = x.shape
    ay, t, Ey = y.shape
    assert ay == a and Ey == E and E % HEAD_DIM == 0
    E4 = 4 * E
    p = params
    cfg = _gen_config()

    # Pad m/t to sublane multiples so in-kernel reshapes stay view-only.
    m_pad = _round_up(m, 8)
    t_pad = _round_up(t, 8)
    if m_pad != m:
        x = jnp.pad(x, ((0, 0), (0, m_pad - m), (0, 0)))
    if t_pad != t:
        y = jnp.pad(y, ((0, 0), (0, t_pad - t), (0, 0)))

    # Fused K|V projection weights (one wider-N matmul in the kernel).
    wkv = jnp.concatenate([p['wk'], p['wv']], axis=1)   # (E, 2E)
    bkv = jnp.concatenate([p['bk'], p['bv']], axis=1)   # (1, 2E)

    in_itemsize = jnp.dtype(x.dtype).itemsize
    w_itemsize = jnp.dtype(p['wq'].dtype).itemsize

    if block_batch is not None:
        TB = block_batch
    else:
        TB = _choose_block_batch(a, m_pad, t_pad, E, in_itemsize, w_itemsize,
                                 cfg, single_buffer_weights)
    assert a % TB == 0
    grid = (a // TB,)

    mlp_chunk = 512 if (E4 % 512 == 0 and E4 >= 512) else E4
    gelu_dtype = (jnp.bfloat16
                  if (p['w1'].dtype == jnp.bfloat16 and not cfg['is_v5e'])
                  else jnp.float32)

    kernel = functools.partial(_vbp_kernel, t_valid=t, gelu_dtype=gelu_dtype,
                               mlp_chunk=mlp_chunk)

    def bspec(seq):
        return pl.BlockSpec((TB, seq, E), lambda i: (i, 0, 0))

    def wspec(shape):
        # Constant-index weight blocks: single-buffer them (double-buffering a
        # constant block only doubles its VMEM footprint — at realistic E the
        # 11*E^2 weight values dominate the budget, especially on v7x).
        if single_buffer_weights:
            return pl.BlockSpec(shape, lambda i: (0,) * len(shape),
                                pipeline_mode=pl.Buffered(1))
        return pl.BlockSpec(shape, lambda i: (0,) * len(shape))

    in_specs = [
        bspec(m_pad), bspec(t_pad),
        wspec((1, E)), wspec((1, E)),                   # LN1 gamma/beta
        wspec((1, E)), wspec((1, E)),                   # LN2 gamma/beta
        wspec((1, E)), wspec((1, E)),                   # LN3 gamma/beta
        wspec((E, E)), wspec((E, 2 * E)),               # wq, wk|wv
        wspec((1, E)), wspec((1, 2 * E)),               # bq, bk|bv
        wspec((E, E4)), wspec((1, E4)),                 # w1, b1
        wspec((E4, E)), wspec((1, E)),                  # w2, b2
    ]

    cp_kwargs = dict(dimension_semantics=("parallel",))
    if cfg['vmem_limit'] is not None:
        cp_kwargs['vmem_limit_bytes'] = int(cfg['vmem_limit'])

    out = pl.pallas_call(
        kernel,
        out_shape=jax.ShapeDtypeStruct((a, m_pad, E), x.dtype),
        grid_spec=pltpu.PrefetchScalarGridSpec(
            num_scalar_prefetch=0,
            grid=grid,
            in_specs=in_specs,
            out_specs=pl.BlockSpec((TB, m_pad, E), lambda i: (i, 0, 0)),
            scratch_shapes=[pltpu.VMEM((TB, m_pad, E), jnp.float32)],
        ),
        compiler_params=pltpu.CompilerParams(**cp_kwargs),
    )(x, y,
      p['g1'], p['be1'], p['g2'], p['be2'], p['g3'], p['be3'],
      p['wq'], wkv, p['bq'], bkv,
      p['w1'], p['b1'], p['w2'], p['b2'])

    if m_pad != m:
        out = out[:, :m, :]
    return out


def visual_based_prompt_reference(x, y, p):
    """Pure-JAX mirror of the PyTorch VisualBasedPrompt.forward (eval mode)."""
    a, m, E = x.shape
    _, t, _ = y.shape
    H, D = E // HEAD_DIM, HEAD_DIM

    def ln(z, g, b):
        mu = jnp.mean(z, -1, keepdims=True)
        var = jnp.mean((z - mu) ** 2, -1, keepdims=True)
        return (z - mu) / jnp.sqrt(var + LN_EPS) * g + b

    q = ln(x, p['g1'], p['be1'])
    k = ln(y, p['g2'], p['be2'])
    v = k
    Q = (q @ p['wq'] + p['bq']).reshape(a, m, H, D).transpose(0, 2, 1, 3)
    K = (k @ p['wk'] + p['bk']).reshape(a, t, H, D).transpose(0, 2, 1, 3)
    V = (v @ p['wv'] + p['bv']).reshape(a, t, H, D).transpose(0, 2, 1, 3)
    dots = jnp.einsum('ahmc,ahtc->ahmt', Q, K)      # unscaled, as in PyTorch
    attn = jax.nn.softmax(dots, axis=-1)
    out = jnp.einsum('ahmt,ahtc->ahmc', attn, V)
    out = out.transpose(0, 2, 1, 3).reshape(a, m, E)
    prompts = x + out
    h1 = ln(prompts, p['g3'], p['be3']) @ p['w1'] + p['b1']
    h1 = h1 * jax.nn.sigmoid(1.702 * h1)            # QuickGELU; dropout = identity
    return prompts + h1 @ p['w2'] + p['b2']


if __name__ == "__main__":
    key = jax.random.PRNGKey(0)
    ks = jax.random.split(key, 18)

    a, m, t, E = 2, 8, 16, 128          # emb_dim=128 -> n_heads=2
    E4 = 4 * E

    x = jax.random.normal(ks[0], (a, m, E), jnp.float32)
    y = jax.random.normal(ks[1], (a, t, E), jnp.float32)

    lim = 1.0 / (E ** 0.5)
    lim4 = 1.0 / (E4 ** 0.5)
    u = lambda k, shape, l: jax.random.uniform(k, shape, jnp.float32, -l, l)

    params = dict(
        # LayerNorm affine params (perturbed from gamma=1 / beta=0 init)
        g1=1.0 + 0.1 * jax.random.normal(ks[2], (1, E), jnp.float32),
        be1=0.1 * jax.random.normal(ks[3], (1, E), jnp.float32),
        g2=1.0 + 0.1 * jax.random.normal(ks[4], (1, E), jnp.float32),
        be2=0.1 * jax.random.normal(ks[5], (1, E), jnp.float32),
        g3=1.0 + 0.1 * jax.random.normal(ks[6], (1, E), jnp.float32),
        be3=0.1 * jax.random.normal(ks[7], (1, E), jnp.float32),
        # Attention projections, stored (in, out) so the kernel does x @ W + b.
        wq=u(ks[8], (E, E), lim), wk=u(ks[9], (E, E), lim), wv=u(ks[10], (E, E), lim),
        bq=u(ks[11], (1, E), lim), bk=u(ks[12], (1, E), lim), bv=u(ks[13], (1, E), lim),
        # MLP
        w1=u(ks[14], (E, E4), lim), b1=u(ks[15], (1, E4), lim),
        w2=u(ks[16], (E4, E), lim4), b2=u(ks[17], (1, E), lim4),
    )

    try:
        out = jax.block_until_ready(visual_based_prompt_pallas(x, y, params))
    except Exception:
        # Defensive fallback: if this Pallas build rejects pl.Buffered(1)
        # single-buffered weight specs, retry with default pipelining.
        out = jax.block_until_ready(
            visual_based_prompt_pallas(x, y, params, single_buffer_weights=False))

    ref = visual_based_prompt_reference(x, y, params)
    err = float(jnp.max(jnp.abs(out - ref)))
    assert out.shape == (a, m, E)
    assert jnp.allclose(out, ref, atol=3e-3, rtol=3e-3), f"mismatch vs reference, max|err|={err}"

    print("KERNEL_OK")
</pallas_src>

<mosaic_0001>
module attributes {stable_mosaic.version = 11 : i64} {
  func.func @_vbp_kernel(%arg0: i32, %arg1: memref<1x8x128xf32, #tpu.memory_space<vmem>>, %arg2: memref<1x16x128xf32, #tpu.memory_space<vmem>>, %arg3: memref<1x128xf32, #tpu.memory_space<vmem>>, %arg4: memref<1x128xf32, #tpu.memory_space<vmem>>, %arg5: memref<1x128xf32, #tpu.memory_space<vmem>>, %arg6: memref<1x128xf32, #tpu.memory_space<vmem>>, %arg7: memref<1x128xf32, #tpu.memory_space<vmem>>, %arg8: memref<1x128xf32, #tpu.memory_space<vmem>>, %arg9: memref<128x128xf32, #tpu.memory_space<vmem>>, %arg10: memref<128x256xf32, #tpu.memory_space<vmem>>, %arg11: memref<1x128xf32, #tpu.memory_space<vmem>>, %arg12: memref<1x256xf32, #tpu.memory_space<vmem>>, %arg13: memref<128x512xf32, #tpu.memory_space<vmem>>, %arg14: memref<1x512xf32, #tpu.memory_space<vmem>>, %arg15: memref<512x128xf32, #tpu.memory_space<vmem>>, %arg16: memref<1x128xf32, #tpu.memory_space<vmem>>, %arg17: memref<1x8x128xf32, #tpu.memory_space<vmem>>, %arg18: memref<1x8x128xf32, #tpu.memory_space<vmem>>) attributes {dimension_semantics = [#tpu.dimension_semantics<parallel>], iteration_bounds = array<i64: 2>, scalar_prefetch = 0 : i64, scratch_operands = 1 : i64, tpu.core_type = #tpu.core_type<tc>, window_params = [{transform_indices = @transform_0, window_bounds = array<i64: 1, 8, 128>}, {transform_indices = @transform_1, window_bounds = array<i64: 1, 16, 128>}, {pipeline_mode = #tpu.pipeline_mode<synchronous>, transform_indices = @transform_2, window_bounds = array<i64: 1, 128>}, {pipeline_mode = #tpu.pipeline_mode<synchronous>, transform_indices = @transform_3, window_bounds = array<i64: 1, 128>}, {pipeline_mode = #tpu.pipeline_mode<synchronous>, transform_indices = @transform_4, window_bounds = array<i64: 1, 128>}, {pipeline_mode = #tpu.pipeline_mode<synchronous>, transform_indices = @transform_5, window_bounds = array<i64: 1, 128>}, {pipeline_mode = #tpu.pipeline_mode<synchronous>, transform_indices = @transform_6, window_bounds = array<i64: 1, 128>}, {pipeline_mode = #tpu.pipeline_mode<synchronous>, transform_indices = @transform_7, window_bounds = array<i64: 1, 128>}, {pipeline_mode = #tpu.pipeline_mode<synchronous>, transform_indices = @transform_8, window_bounds = array<i64: 128, 128>}, {pipeline_mode = #tpu.pipeline_mode<synchronous>, transform_indices = @transform_9, window_bounds = array<i64: 128, 256>}, {pipeline_mode = #tpu.pipeline_mode<synchronous>, transform_indices = @transform_10, window_bounds = array<i64: 1, 128>}, {pipeline_mode = #tpu.pipeline_mode<synchronous>, transform_indices = @transform_11, window_bounds = array<i64: 1, 256>}, {pipeline_mode = #tpu.pipeline_mode<synchronous>, transform_indices = @transform_12, window_bounds = array<i64: 128, 512>}, {pipeline_mode = #tpu.pipeline_mode<synchronous>, transform_indices = @transform_13, window_bounds = array<i64: 1, 512>}, {pipeline_mode = #tpu.pipeline_mode<synchronous>, transform_indices = @transform_14, window_bounds = array<i64: 512, 128>}, {pipeline_mode = #tpu.pipeline_mode<synchronous>, transform_indices = @transform_15, window_bounds = array<i64: 1, 128>}, {transform_indices = @transform_16, window_bounds = array<i64: 1, 8, 128>}]} {
    %c0 = arith.constant 0 : index
    %c0_0 = arith.constant 0 : index
    %c0_1 = arith.constant 0 : index
    %0 = vector.load %arg1[%c0, %c0_0, %c0_1] : memref<1x8x128xf32, #tpu.memory_space<vmem>>, vector<1x8x128xf32>
    %c0_2 = arith.constant 0 : index
    %c0_3 = arith.constant 0 : index
    %c0_4 = arith.constant 0 : index
    %1 = vector.load %arg2[%c0_2, %c0_3, %c0_4] : memref<1x16x128xf32, #tpu.memory_space<vmem>>, vector<1x16x128xf32>
    %2 = vector.shape_cast %0 : vector<1x8x128xf32> to vector<8x128xf32>
    %3 = vector.shape_cast %1 : vector<1x16x128xf32> to vector<16x128xf32>
    %c0_5 = arith.constant 0 : index
    %c0_6 = arith.constant 0 : index
    %4 = vector.load %arg3[%c0_5, %c0_6] : memref<1x128xf32, #tpu.memory_space<vmem>>, vector<1x128xf32>
    %c0_7 = arith.constant 0 : index
    %c0_8 = arith.constant 0 : index
    %5 = vector.load %arg4[%c0_7, %c0_8] : memref<1x128xf32, #tpu.memory_space<vmem>>, vector<1x128xf32>
    %cst = arith.constant dense<0.000000e+00> : vector<8xf32>
    %6 = vector.multi_reduction <add>, %2, %cst [1] : vector<8x128xf32> to vector<8xf32>
    %7 = vector.shape_cast %6 : vector<8xf32> to vector<8x1xf32>
    %cst_9 = arith.constant 1.280000e+02 : f32
    %8 = vector.broadcast %cst_9 : f32 to vector<8x1xf32>
    %9 = arith.divf %7, %8 : vector<8x1xf32>
    %10 = vector.broadcast %9 : vector<8x1xf32> to vector<8x128xf32>
    %11 = arith.subf %2, %10 : vector<8x128xf32>
    %12 = arith.mulf %11, %11 : vector<8x128xf32>
    %cst_10 = arith.constant dense<0.000000e+00> : vector<8xf32>
    %13 = vector.multi_reduction <add>, %12, %cst_10 [1] : vector<8x128xf32> to vector<8xf32>
    %14 = vector.shape_cast %13 : vector<8xf32> to vector<8x1xf32>
    %cst_11 = arith.constant 1.280000e+02 : f32
    %15 = vector.broadcast %cst_11 : f32 to vector<8x1xf32>
    %16 = arith.divf %14, %15 : vector<8x1xf32>
    %cst_12 = arith.constant 9.99999974E-6 : f32
    %17 = vector.broadcast %cst_12 : f32 to vector<8x1xf32>
    %18 = arith.addf %16, %17 : vector<8x1xf32>
    %19 = math.rsqrt %18 : vector<8x1xf32>
    %20 = vector.broadcast %19 : vector<8x1xf32> to vector<8x128xf32>
    %21 = arith.mulf %11, %20 : vector<8x128xf32>
    %22 = vector.broadcast %4 : vector<1x128xf32> to vector<8x128xf32>
    %23 = arith.mulf %21, %22 : vector<8x128xf32>
    %24 = vector.broadcast %5 : vector<1x128xf32> to vector<8x128xf32>
    %25 = arith.addf %23, %24 : vector<8x128xf32>
    %c0_13 = arith.constant 0 : index
    %c0_14 = arith.constant 0 : index
    %26 = vector.load %arg5[%c0_13, %c0_14] : memref<1x128xf32, #tpu.memory_space<vmem>>, vector<1x128xf32>
    %c0_15 = arith.constant 0 : index
    %c0_16 = arith.constant 0 : index
    %27 = vector.load %arg6[%c0_15, %c0_16] : memref<1x128xf32, #tpu.memory_space<vmem>>, vector<1x128xf32>
    %cst_17 = arith.constant dense<0.000000e+00> : vector<16xf32>
    %28 = vector.multi_reduction <add>, %3, %cst_17 [1] : vector<16x128xf32> to vector<16xf32>
    %29 = vector.shape_cast %28 : vector<16xf32> to vector<16x1xf32>
    %cst_18 = arith.constant 1.280000e+02 : f32
    %30 = vector.broadcast %cst_18 : f32 to vector<16x1xf32>
    %31 = arith.divf %29, %30 : vector<16x1xf32>
    %32 = vector.broadcast %31 : vector<16x1xf32> to vector<16x128xf32>
    %33 = arith.subf %3, %32 : vector<16x128xf32>
    %34 = arith.mulf %33, %33 : vector<16x128xf32>
    %cst_19 = arith.constant dense<0.000000e+00> : vector<16xf32>
    %35 = vector.multi_reduction <add>, %34, %cst_19 [1] : vector<16x128xf32> to vector<16xf32>
    %36 = vector.shape_cast %35 : vector<16xf32> to vector<16x1xf32>
    %cst_20 = arith.constant 1.280000e+02 : f32
    %37 = vector.broadcast %cst_20 : f32 to vector<16x1xf32>
    %38 = arith.divf %36, %37 : vector<16x1xf32>
    %cst_21 = arith.constant 9.99999974E-6 : f32
    %39 = vector.broadcast %cst_21 : f32 to vector<16x1xf32>
    %40 = arith.addf %38, %39 : vector<16x1xf32>
    %41 = math.rsqrt %40 : vector<16x1xf32>
    %42 = vector.broadcast %41 : vector<16x1xf32> to vector<16x128xf32>
    %43 = arith.mulf %33, %42 : vector<16x128xf32>
    %44 = vector.broadcast %26 : vector<1x128xf32> to vector<16x128xf32>
    %45 = arith.mulf %43, %44 : vector<16x128xf32>
    %46 = vector.broadcast %27 : vector<1x128xf32> to vector<16x128xf32>
    %47 = arith.addf %45, %46 : vector<16x128xf32>
    %c0_22 = arith.constant 0 : index
    %c0_23 = arith.constant 0 : index
    %48 = vector.load %arg9[%c0_22, %c0_23] : memref<128x128xf32, #tpu.memory_space<vmem>>, vector<128x128xf32>
    %cst_24 = arith.constant dense<0.000000e+00> : vector<8x128xf32>
    %49 = tpu.matmul %25, %48, %cst_24 {dimension_numbers = #tpu.dot_dimension_numbers<[1], [0], [0], [1], [0, 0, 1, 1], [], []>} : vector<8x128xf32>, vector<128x128xf32>, vector<8x128xf32> -> vector<8x128xf32>
    %c0_25 = arith.constant 0 : index
    %c0_26 = arith.constant 0 : index
    %50 = vector.load %arg11[%c0_25, %c0_26] : memref<1x128xf32, #tpu.memory_space<vmem>>, vector<1x128xf32>
    %51 = vector.broadcast %50 : vector<1x128xf32> to vector<8x128xf32>
    %52 = arith.addf %49, %51 : vector<8x128xf32>
    %c0_27 = arith.constant 0 : index
    %c0_28 = arith.constant 0 : index
    %53 = vector.load %arg10[%c0_27, %c0_28] : memref<128x256xf32, #tpu.memory_space<vmem>>, vector<128x256xf32>
    %cst_29 = arith.constant dense<0.000000e+00> : vector<16x256xf32>
    %54 = tpu.matmul %47, %53, %cst_29 {dimension_numbers = #tpu.dot_dimension_numbers<[1], [0], [0], [1], [0, 0, 1, 1], [], []>} : vector<16x128xf32>, vector<128x256xf32>, vector<16x256xf32> -> vector<16x256xf32>
    %c0_30 = arith.constant 0 : index
    %c0_31 = arith.constant 0 : index
    %55 = vector.load %arg12[%c0_30, %c0_31] : memref<1x256xf32, #tpu.memory_space<vmem>>, vector<1x256xf32>
    %56 = vector.broadcast %55 : vector<1x256xf32> to vector<16x256xf32>
    %57 = arith.addf %54, %56 : vector<16x256xf32>
    %58 = vector.shape_cast %52 : vector<8x128xf32> to vector<1x8x128xf32>
    %59 = vector.extract_strided_slice %57 {offsets = [0, 0], sizes = [16, 128], strides = [1, 1]} : vector<16x256xf32> to vector<16x128xf32>
    %60 = vector.shape_cast %59 : vector<16x128xf32> to vector<1x16x128xf32>
    %61 = vector.extract_strided_slice %57 {offsets = [0, 128], sizes = [16, 128], strides = [1, 1]} : vector<16x256xf32> to vector<16x128xf32>
    %62 = vector.shape_cast %61 : vector<16x128xf32> to vector<1x16x128xf32>
    %63 = vector.extract_strided_slice %58 {offsets = [0, 0, 0], sizes = [1, 8, 64], strides = [1, 1, 1]} : vector<1x8x128xf32> to vector<1x8x64xf32>
    %64 = vector.extract_strided_slice %60 {offsets = [0, 0, 0], sizes = [1, 16, 64], strides = [1, 1, 1]} : vector<1x16x128xf32> to vector<1x16x64xf32>
    %65 = vector.extract_strided_slice %62 {offsets = [0, 0, 0], sizes = [1, 16, 64], strides = [1, 1, 1]} : vector<1x16x128xf32> to vector<1x16x64xf32>
    "tpu.trace_start"() <{level = 10 : i32, message = "bmd,btd->bmt"}> : () -> ()
    %cst_32 = arith.constant dense<0.000000e+00> : vector<1x8x16xf32>
    %66 = tpu.matmul %63, %64, %cst_32 {dimension_numbers = #tpu.dot_dimension_numbers<[2], [2], [1], [1], [0, 0, 0, 1, 1, 1], [0], [0]>} : vector<1x8x64xf32>, vector<1x16x64xf32>, vector<1x8x16xf32> -> vector<1x8x16xf32>
    "tpu.trace_stop"() : () -> ()
    %cst_33 = arith.constant dense<0xFF800000> : vector<1x8xf32>
    %67 = vector.multi_reduction <maximumf>, %66, %cst_33 [2] : vector<1x8x16xf32> to vector<1x8xf32>
    %68 = vector.shape_cast %67 : vector<1x8xf32> to vector<1x8x1xf32>
    %69 = vector.broadcast %68 : vector<1x8x1xf32> to vector<1x8x16xf32>
    %70 = arith.subf %66, %69 : vector<1x8x16xf32>
    %71 = math.exp %70 : vector<1x8x16xf32>
    %cst_34 = arith.constant dense<0.000000e+00> : vector<1x8xf32>
    %72 = vector.multi_reduction <add>, %71, %cst_34 [2] : vector<1x8x16xf32> to vector<1x8xf32>
    %73 = vector.shape_cast %72 : vector<1x8xf32> to vector<1x8x1xf32>
    %74 = tpu.reciprocal %73 {approx = true} : vector<1x8x1xf32> -> vector<1x8x1xf32>
    %75 = vector.broadcast %74 : vector<1x8x1xf32> to vector<1x8x16xf32>
    %76 = arith.mulf %71, %75 : vector<1x8x16xf32>
    "tpu.trace_start"() <{level = 10 : i32, message = "bmt,btd->bmd"}> : () -> ()
    %cst_35 = arith.constant dense<0.000000e+00> : vector<1x8x64xf32>
    %77 = tpu.matmul %76, %65, %cst_35 {dimension_numbers = #tpu.dot_dimension_numbers<[2], [1], [1], [2], [0, 0, 0, 1, 1, 2], [0], [0]>} : vector<1x8x16xf32>, vector<1x16x64xf32>, vector<1x8x64xf32> -> vector<1x8x64xf32>
    "tpu.trace_stop"() : () -> ()
    %c0_36 = arith.constant 0 : index
    %c0_37 = arith.constant 0 : index
    %c0_38 = arith.constant 0 : index
    %78 = vector.load %arg18[%c0_36, %c0_37, %c0_38] : memref<1x8x128xf32, #tpu.memory_space<vmem>>, vector<1x8x64xf32>
    tpu.vector_store %arg18[%c0_36, %c0_37, %c0_38], %77 {strides = array<i32>} : memref<1x8x128xf32, #tpu.memory_space<vmem>>, vector<1x8x64xf32>,
    %79 = vector.extract_strided_slice %58 {offsets = [0, 0, 64], sizes = [1, 8, 64], strides = [1, 1, 1]} : vector<1x8x128xf32> to vector<1x8x64xf32>
    %80 = vector.extract_strided_slice %60 {offsets = [0, 0, 64], sizes = [1, 16, 64], strides = [1, 1, 1]} : vector<1x16x128xf32> to vector<1x16x64xf32>
    %81 = vector.extract_strided_slice %62 {offsets = [0, 0, 64], sizes = [1, 16, 64], strides = [1, 1, 1]} : vector<1x16x128xf32> to vector<1x16x64xf32>
    "tpu.trace_start"() <{level = 10 : i32, message = "bmd,btd->bmt"}> : () -> ()
    %cst_39 = arith.constant dense<0.000000e+00> : vector<1x8x16xf32>
    %82 = tpu.matmul %79, %80, %cst_39 {dimension_numbers = #tpu.dot_dimension_numbers<[2], [2], [1], [1], [0, 0, 0, 1, 1, 1], [0], [0]>} : vector<1x8x64xf32>, vector<1x16x64xf32>, vector<1x8x16xf32> -> vector<1x8x16xf32>
    "tpu.trace_stop"() : () -> ()
    %cst_40 = arith.constant dense<0xFF800000> : vector<1x8xf32>
    %83 = vector.multi_reduction <maximumf>, %82, %cst_40 [2] : vector<1x8x16xf32> to vector<1x8xf32>
    %84 = vector.shape_cast %83 : vector<1x8xf32> to vector<1x8x1xf32>
    %85 = vector.broadcast %84 : vector<1x8x1xf32> to vector<1x8x16xf32>
    %86 = arith.subf %82, %85 : vector<1x8x16xf32>
    %87 = math.exp %86 : vector<1x8x16xf32>
    %cst_41 = arith.constant dense<0.000000e+00> : vector<1x8xf32>
    %88 = vector.multi_reduction <add>, %87, %cst_41 [2] : vector<1x8x16xf32> to vector<1x8xf32>
    %89 = vector.shape_cast %88 : vector<1x8xf32> to vector<1x8x1xf32>
    %90 = tpu.reciprocal %89 {approx = true} : vector<1x8x1xf32> -> vector<1x8x1xf32>
    %91 = vector.broadcast %90 : vector<1x8x1xf32> to vector<1x8x16xf32>
    %92 = arith.mulf %87, %91 : vector<1x8x16xf32>
    "tpu.trace_start"() <{level = 10 : i32, message = "bmt,btd->bmd"}> : () -> ()
    %cst_42 = arith.constant dense<0.000000e+00> : vector<1x8x64xf32>
    %93 = tpu.matmul %92, %81, %cst_42 {dimension_numbers = #tpu.dot_dimension_numbers<[2], [1], [1], [2], [0, 0, 0, 1, 1, 2], [0], [0]>} : vector<1x8x16xf32>, vector<1x16x64xf32>, vector<1x8x64xf32> -> vector<1x8x64xf32>
    "tpu.trace_stop"() : () -> ()
    %c0_43 = arith.constant 0 : index
    %c0_44 = arith.constant 0 : index
    %c64 = arith.constant 64 : index
    %94 = vector.load %arg18[%c0_43, %c0_44, %c64] : memref<1x8x128xf32, #tpu.memory_space<vmem>>, vector<1x8x64xf32>
    tpu.vector_store %arg18[%c0_43, %c0_44, %c64], %93 {strides = array<i32>} : memref<1x8x128xf32, #tpu.memory_space<vmem>>, vector<1x8x64xf32>,
    %c0_45 = arith.constant 0 : index
    %c0_46 = arith.constant 0 : index
    %c0_47 = arith.constant 0 : index
    %95 = vector.load %arg18[%c0_45, %c0_46, %c0_47] : memref<1x8x128xf32, #tpu.memory_space<vmem>>, vector<1x8x128xf32>
    %96 = arith.addf %0, %95 : vector<1x8x128xf32>
    %97 = vector.shape_cast %96 : vector<1x8x128xf32> to vector<8x128xf32>
    %c0_48 = arith.constant 0 : index
    %c0_49 = arith.constant 0 : index
    %98 = vector.load %arg7[%c0_48, %c0_49] : memref<1x128xf32, #tpu.memory_space<vmem>>, vector<1x128xf32>
    %c0_50 = arith.constant 0 : index
    %c0_51 = arith.constant 0 : index
    %99 = vector.load %arg8[%c0_50, %c0_51] : memref<1x128xf32, #tpu.memory_space<vmem>>, vector<1x128xf32>
    %cst_52 = arith.constant dense<0.000000e+00> : vector<8xf32>
    %100 = vector.multi_reduction <add>, %97, %cst_52 [1] : vector<8x128xf32> to vector<8xf32>
    %101 = vector.shape_cast %100 : vector<8xf32> to vector<8x1xf32>
    %cst_53 = arith.constant 1.280000e+02 : f32
    %102 = vector.broadcast %cst_53 : f32 to vector<8x1xf32>
    %103 = arith.divf %101, %102 : vector<8x1xf32>
    %104 = vector.broadcast %103 : vector<8x1xf32> to vector<8x128xf32>
    %105 = arith.subf %97, %104 : vector<8x128xf32>
    %106 = arith.mulf %105, %105 : vector<8x128xf32>
    %cst_54 = arith.constant dense<0.000000e+00> : vector<8xf32>
    %107 = vector.multi_reduction <add>, %106, %cst_54 [1] : vector<8x128xf32> to vector<8xf32>
    %108 = vector.shape_cast %107 : vector<8xf32> to vector<8x1xf32>
    %cst_55 = arith.constant 1.280000e+02 : f32
    %109 = vector.broadcast %cst_55 : f32 to vector<8x1xf32>
    %110 = arith.divf %108, %109 : vector<8x1xf32>
    %cst_56 = arith.constant 9.99999974E-6 : f32
    %111 = vector.broadcast %cst_56 : f32 to vector<8x1xf32>
    %112 = arith.addf %110, %111 : vector<8x1xf32>
    %113 = math.rsqrt %112 : vector<8x1xf32>
    %114 = vector.broadcast %113 : vector<8x1xf32> to vector<8x128xf32>
    %115 = arith.mulf %105, %114 : vector<8x128xf32>
    %116 = vector.broadcast %98 : vector<1x128xf32> to vector<8x128xf32>
    %117 = arith.mulf %115, %116 : vector<8x128xf32>
    %118 = vector.broadcast %99 : vector<1x128xf32> to vector<8x128xf32>
    %119 = arith.addf %117, %118 : vector<8x128xf32>
    %cst_57 = arith.constant 0.000000e+00 : f32
    %120 = vector.broadcast %cst_57 : f32 to vector<8x128xf32>
    %c0_58 = arith.constant 0 : index
    %c0_59 = arith.constant 0 : index
    %121 = vector.load %arg16[%c0_58, %c0_59] : memref<1x128xf32, #tpu.memory_space<vmem>>, vector<1x128xf32>
    %122 = vector.broadcast %121 : vector<1x128xf32> to vector<8x128xf32>
    %123 = arith.addf %120, %122 : vector<8x128xf32>
    %c0_60 = arith.constant 0 : index
    %c0_61 = arith.constant 0 : index
    %124 = vector.load %arg13[%c0_60, %c0_61] : memref<128x512xf32, #tpu.memory_space<vmem>>, vector<128x512xf32>
    %cst_62 = arith.constant dense<0.000000e+00> : vector<8x512xf32>
    %125 = tpu.matmul %119, %124, %cst_62 {dimension_numbers = #tpu.dot_dimension_numbers<[1], [0], [0], [1], [0, 0, 1, 1], [], []>} : vector<8x128xf32>, vector<128x512xf32>, vector<8x512xf32> -> vector<8x512xf32>
    %c0_63 = arith.constant 0 : index
    %c0_64 = arith.constant 0 : index
    %126 = vector.load %arg14[%c0_63, %c0_64] : memref<1x512xf32, #tpu.memory_space<vmem>>, vector<1x512xf32>
    %127 = vector.broadcast %126 : vector<1x512xf32> to vector<8x512xf32>
    %128 = arith.addf %125, %127 : vector<8x512xf32>
    %cst_65 = arith.constant 1.702000e+00 : f32
    %129 = vector.broadcast %cst_65 : f32 to vector<8x512xf32>
    %130 = arith.mulf %129, %128 : vector<8x512xf32>
    %131 = arith.negf %130 : vector<8x512xf32>
    %132 = math.exp %131 : vector<8x512xf32>
    %cst_66 = arith.constant 1.000000e+00 : f32
    %133 = vector.broadcast %cst_66 : f32 to vector<8x512xf32>
    %134 = arith.addf %133, %132 : vector<8x512xf32>
    %135 = arith.divf %133, %134 : vector<8x512xf32>
    %136 = arith.mulf %128, %135 : vector<8x512xf32>
    %c0_67 = arith.constant 0 : index
    %c0_68 = arith.constant 0 : index
    %137 = vector.load %arg15[%c0_67, %c0_68] : memref<512x128xf32, #tpu.memory_space<vmem>>, vector<512x128xf32>
    %cst_69 = arith.constant dense<0.000000e+00> : vector<8x128xf32>
    %138 = tpu.matmul %136, %137, %cst_69 {dimension_numbers = #tpu.dot_dimension_numbers<[1], [0], [0], [1], [0, 0, 1, 1], [], []>} : vector<8x512xf32>, vector<512x128xf32>, vector<8x128xf32> -> vector<8x128xf32>
    %139 = arith.addf %123, %138 : vector<8x128xf32>
    %140 = arith.addf %97, %139 : vector<8x128xf32>
    %141 = vector.shape_cast %140 : vector<8x128xf32> to vector<1x8x128xf32>
    %c0_70 = arith.constant 0 : index
    %c0_71 = arith.constant 0 : index
    %c0_72 = arith.constant 0 : index
    %142 = vector.load %arg17[%c0_70, %c0_71, %c0_72] : memref<1x8x128xf32, #tpu.memory_space<vmem>>, vector<1x8x128xf32>
    tpu.vector_store %arg17[%c0_70, %c0_71, %c0_72], %141 {strides = array<i32>} : memref<1x8x128xf32, #tpu.memory_space<vmem>>, vector<1x8x128xf32>,
    return
  }
  func.func @transform_0(%arg0: i32) -> (i32, i32, i32) {
    %c0_i32 = arith.constant 0 : i32
    %c0_i32_0 = arith.constant 0 : i32
    %c0_i32_1 = arith.constant 0 : i32
    return %arg0, %c0_i32, %c0_i32_0 : i32, i32, i32
  }
  func.func @transform_1(%arg0: i32) -> (i32, i32, i32) {
    %c0_i32 = arith.constant 0 : i32
    %c0_i32_0 = arith.constant 0 : i32
    %c0_i32_1 = arith.constant 0 : i32
    return %arg0, %c0_i32, %c0_i32_0 : i32, i32, i32
  }
  func.func @transform_2(%arg0: i32) -> (i32, i32) {
    %c0_i32 = arith.constant 0 : i32
    %c0_i32_0 = arith.constant 0 : i32
    %c0_i32_1 = arith.constant 0 : i32
    return %c0_i32, %c0_i32_0 : i32, i32
  }
  func.func @transform_3(%arg0: i32) -> (i32, i32) {
    %c0_i32 = arith.constant 0 : i32
    %c0_i32_0 = arith.constant 0 : i32
    %c0_i32_1 = arith.constant 0 : i32
    return %c0_i32, %c0_i32_0 : i32, i32
  }
  func.func @transform_4(%arg0: i32) -> (i32, i32) {
    %c0_i32 = arith.constant 0 : i32
    %c0_i32_0 = arith.constant 0 : i32
    %c0_i32_1 = arith.constant 0 : i32
    return %c0_i32, %c0_i32_0 : i32, i32
  }
  func.func @transform_5(%arg0: i32) -> (i32, i32) {
    %c0_i32 = arith.constant 0 : i32
    %c0_i32_0 = arith.constant 0 : i32
    %c0_i32_1 = arith.constant 0 : i32
    return %c0_i32, %c0_i32_0 : i32, i32
  }
  func.func @transform_6(%arg0: i32) -> (i32, i32) {
    %c0_i32 = arith.constant 0 : i32
    %c0_i32_0 = arith.constant 0 : i32
    %c0_i32_1 = arith.constant 0 : i32
    return %c0_i32, %c0_i32_0 : i32, i32
  }
  func.func @transform_7(%arg0: i32) -> (i32, i32) {
    %c0_i32 = arith.constant 0 : i32
    %c0_i32_0 = arith.constant 0 : i32
    %c0_i32_1 = arith.constant 0 : i32
    return %c0_i32, %c0_i32_0 : i32, i32
  }
  func.func @transform_8(%arg0: i32) -> (i32, i32) {
    %c0_i32 = arith.constant 0 : i32
    %c0_i32_0 = arith.constant 0 : i32
    %c0_i32_1 = arith.constant 0 : i32
    return %c0_i32, %c0_i32_0 : i32, i32
  }
  func.func @transform_9(%arg0: i32) -> (i32, i32) {
    %c0_i32 = arith.constant 0 : i32
    %c0_i32_0 = arith.constant 0 : i32
    %c0_i32_1 = arith.constant 0 : i32
    return %c0_i32, %c0_i32_0 : i32, i32
  }
  func.func @transform_10(%arg0: i32) -> (i32, i32) {
    %c0_i32 = arith.constant 0 : i32
    %c0_i32_0 = arith.constant 0 : i32
    %c0_i32_1 = arith.constant 0 : i32
    return %c0_i32, %c0_i32_0 : i32, i32
  }
  func.func @transform_11(%arg0: i32) -> (i32, i32) {
    %c0_i32 = arith.constant 0 : i32
    %c0_i32_0 = arith.constant 0 : i32
    %c0_i32_1 = arith.constant 0 : i32
    return %c0_i32, %c0_i32_0 : i32, i32
  }
  func.func @transform_12(%arg0: i32) -> (i32, i32) {
    %c0_i32 = arith.constant 0 : i32
    %c0_i32_0 = arith.constant 0 : i32
    %c0_i32_1 = arith.constant 0 : i32
    return %c0_i32, %c0_i32_0 : i32, i32
  }
  func.func @transform_13(%arg0: i32) -> (i32, i32) {
    %c0_i32 = arith.constant 0 : i32
    %c0_i32_0 = arith.constant 0 : i32
    %c0_i32_1 = arith.constant 0 : i32
    return %c0_i32, %c0_i32_0 : i32, i32
  }
  func.func @transform_14(%arg0: i32) -> (i32, i32) {
    %c0_i32 = arith.constant 0 : i32
    %c0_i32_0 = arith.constant 0 : i32
    %c0_i32_1 = arith.constant 0 : i32
    return %c0_i32, %c0_i32_0 : i32, i32
  }
  func.func @transform_15(%arg0: i32) -> (i32, i32) {
    %c0_i32 = arith.constant 0 : i32
    %c0_i32_0 = arith.constant 0 : i32
    %c0_i32_1 = arith.constant 0 : i32
    return %c0_i32, %c0_i32_0 : i32, i32
  }
  func.func @transform_16(%arg0: i32) -> (i32, i32, i32) {
    %c0_i32 = arith.constant 0 : i32
    %c0_i32_0 = arith.constant 0 : i32
    %c0_i32_1 = arith.constant 0 : i32
    return %arg0, %c0_i32, %c0_i32_0 : i32, i32, i32
  }
}

module attributes {stable_mosaic.version = 11 : i64} {
  func.func @_vbp_kernel(%arg0: i32, %arg1: memref<1x8x128xf32, #tpu.memory_space<vmem>>, %arg2: memref<1x16x128xf32, #tpu.memory_space<vmem>>, %arg3: memref<1x128xf32, #tpu.memory_space<vmem>>, %arg4: memref<1x128xf32, #tpu.memory_space<vmem>>, %arg5: memref<1x128xf32, #tpu.memory_space<vmem>>, %arg6: memref<1x128xf32, #tpu.memory_space<vmem>>, %arg7: memref<1x128xf32, #tpu.memory_space<vmem>>, %arg8: memref<1x128xf32, #tpu.memory_space<vmem>>, %arg9: memref<128x128xf32, #tpu.memory_space<vmem>>, %arg10: memref<128x256xf32, #tpu.memory_space<vmem>>, %arg11: memref<1x128xf32, #tpu.memory_space<vmem>>, %arg12: memref<1x256xf32, #tpu.memory_space<vmem>>, %arg13: memref<128x512xf32, #tpu.memory_space<vmem>>, %arg14: memref<1x512xf32, #tpu.memory_space<vmem>>, %arg15: memref<512x128xf32, #tpu.memory_space<vmem>>, %arg16: memref<1x128xf32, #tpu.memory_space<vmem>>, %arg17: memref<1x8x128xf32, #tpu.memory_space<vmem>>, %arg18: memref<1x8x128xf32, #tpu.memory_space<vmem>>) attributes {dimension_semantics = [#tpu.dimension_semantics<parallel>], iteration_bounds = array<i64: 2>, scalar_prefetch = 0 : i64, scratch_operands = 1 : i64, tpu.core_type = #tpu.core_type<tc>, window_params = [{transform_indices = @transform_0, window_bounds = array<i64: 1, 8, 128>}, {transform_indices = @transform_1, window_bounds = array<i64: 1, 16, 128>}, {pipeline_mode = #tpu.pipeline_mode<synchronous>, transform_indices = @transform_2, window_bounds = array<i64: 1, 128>}, {pipeline_mode = #tpu.pipeline_mode<synchronous>, transform_indices = @transform_3, window_bounds = array<i64: 1, 128>}, {pipeline_mode = #tpu.pipeline_mode<synchronous>, transform_indices = @transform_4, window_bounds = array<i64: 1, 128>}, {pipeline_mode = #tpu.pipeline_mode<synchronous>, transform_indices = @transform_5, window_bounds = array<i64: 1, 128>}, {pipeline_mode = #tpu.pipeline_mode<synchronous>, transform_indices = @transform_6, window_bounds = array<i64: 1, 128>}, {pipeline_mode = #tpu.pipeline_mode<synchronous>, transform_indices = @transform_7, window_bounds = array<i64: 1, 128>}, {pipeline_mode = #tpu.pipeline_mode<synchronous>, transform_indices = @transform_8, window_bounds = array<i64: 128, 128>}, {pipeline_mode = #tpu.pipeline_mode<synchronous>, transform_indices = @transform_9, window_bounds = array<i64: 128, 256>}, {pipeline_mode = #tpu.pipeline_mode<synchronous>, transform_indices = @transform_10, window_bounds = array<i64: 1, 128>}, {pipeline_mode = #tpu.pipeline_mode<synchronous>, transform_indices = @transform_11, window_bounds = array<i64: 1, 256>}, {pipeline_mode = #tpu.pipeline_mode<synchronous>, transform_indices = @transform_12, window_bounds = array<i64: 128, 512>}, {pipeline_mode = #tpu.pipeline_mode<synchronous>, transform_indices = @transform_13, window_bounds = array<i64: 1, 512>}, {pipeline_mode = #tpu.pipeline_mode<synchronous>, transform_indices = @transform_14, window_bounds = array<i64: 512, 128>}, {pipeline_mode = #tpu.pipeline_mode<synchronous>, transform_indices = @transform_15, window_bounds = array<i64: 1, 128>}, {transform_indices = @transform_16, window_bounds = array<i64: 1, 8, 128>}]} {
    %c0 = arith.constant 0 : index
    %c0_0 = arith.constant 0 : index
    %c0_1 = arith.constant 0 : index
    %0 = vector.load %arg1[%c0, %c0_0, %c0_1] : memref<1x8x128xf32, #tpu.memory_space<vmem>>, vector<1x8x128xf32>
    %c0_2 = arith.constant 0 : index
    %c0_3 = arith.constant 0 : index
    %c0_4 = arith.constant 0 : index
    %1 = vector.load %arg2[%c0_2, %c0_3, %c0_4] : memref<1x16x128xf32, #tpu.memory_space<vmem>>, vector<1x16x128xf32>
    %2 = vector.shape_cast %0 : vector<1x8x128xf32> to vector<8x128xf32>
    %3 = vector.shape_cast %1 : vector<1x16x128xf32> to vector<16x128xf32>
    %c0_5 = arith.constant 0 : index
    %c0_6 = arith.constant 0 : index
    %4 = vector.load %arg3[%c0_5, %c0_6] : memref<1x128xf32, #tpu.memory_space<vmem>>, vector<1x128xf32>
    %c0_7 = arith.constant 0 : index
    %c0_8 = arith.constant 0 : index
    %5 = vector.load %arg4[%c0_7, %c0_8] : memref<1x128xf32, #tpu.memory_space<vmem>>, vector<1x128xf32>
    %cst = arith.constant dense<0.000000e+00> : vector<8xf32>
    %6 = vector.multi_reduction <add>, %2, %cst [1] : vector<8x128xf32> to vector<8xf32>
    %7 = vector.shape_cast %6 : vector<8xf32> to vector<8x1xf32>
    %cst_9 = arith.constant 1.280000e+02 : f32
    %8 = vector.broadcast %cst_9 : f32 to vector<8x1xf32>
    %9 = arith.divf %7, %8 : vector<8x1xf32>
    %10 = vector.broadcast %9 : vector<8x1xf32> to vector<8x128xf32>
    %11 = arith.subf %2, %10 : vector<8x128xf32>
    %12 = arith.mulf %11, %11 : vector<8x128xf32>
    %cst_10 = arith.constant dense<0.000000e+00> : vector<8xf32>
    %13 = vector.multi_reduction <add>, %12, %cst_10 [1] : vector<8x128xf32> to vector<8xf32>
    %14 = vector.shape_cast %13 : vector<8xf32> to vector<8x1xf32>
    %cst_11 = arith.constant 1.280000e+02 : f32
    %15 = vector.broadcast %cst_11 : f32 to vector<8x1xf32>
    %16 = arith.divf %14, %15 : vector<8x1xf32>
    %cst_12 = arith.constant 9.99999974E-6 : f32
    %17 = vector.broadcast %cst_12 : f32 to vector<8x1xf32>
    %18 = arith.addf %16, %17 : vector<8x1xf32>
    %19 = math.rsqrt %18 : vector<8x1xf32>
    %20 = vector.broadcast %19 : vector<8x1xf32> to vector<8x128xf32>
    %21 = arith.mulf %11, %20 : vector<8x128xf32>
    %22 = vector.broadcast %4 : vector<1x128xf32> to vector<8x128xf32>
    %23 = arith.mulf %21, %22 : vector<8x128xf32>
    %24 = vector.broadcast %5 : vector<1x128xf32> to vector<8x128xf32>
    %25 = arith.addf %23, %24 : vector<8x128xf32>
    %c0_13 = arith.constant 0 : index
    %c0_14 = arith.constant 0 : index
    %26 = vector.load %arg5[%c0_13, %c0_14] : memref<1x128xf32, #tpu.memory_space<vmem>>, vector<1x128xf32>
    %c0_15 = arith.constant 0 : index
    %c0_16 = arith.constant 0 : index
    %27 = vector.load %arg6[%c0_15, %c0_16] : memref<1x128xf32, #tpu.memory_space<vmem>>, vector<1x128xf32>
    %cst_17 = arith.constant dense<0.000000e+00> : vector<16xf32>
    %28 = vector.multi_reduction <add>, %3, %cst_17 [1] : vector<16x128xf32> to vector<16xf32>
    %29 = vector.shape_cast %28 : vector<16xf32> to vector<16x1xf32>
    %cst_18 = arith.constant 1.280000e+02 : f32
    %30 = vector.broadcast %cst_18 : f32 to vector<16x1xf32>
    %31 = arith.divf %29, %30 : vector<16x1xf32>
    %32 = vector.broadcast %31 : vector<16x1xf32> to vector<16x128xf32>
    %33 = arith.subf %3, %32 : vector<16x128xf32>
    %34 = arith.mulf %33, %33 : vector<16x128xf32>
    %cst_19 = arith.constant dense<0.000000e+00> : vector<16xf32>
    %35 = vector.multi_reduction <add>, %34, %cst_19 [1] : vector<16x128xf32> to vector<16xf32>
    %36 = vector.shape_cast %35 : vector<16xf32> to vector<16x1xf32>
    %cst_20 = arith.constant 1.280000e+02 : f32
    %37 = vector.broadcast %cst_20 : f32 to vector<16x1xf32>
    %38 = arith.divf %36, %37 : vector<16x1xf32>
    %cst_21 = arith.constant 9.99999974E-6 : f32
    %39 = vector.broadcast %cst_21 : f32 to vector<16x1xf32>
    %40 = arith.addf %38, %39 : vector<16x1xf32>
    %41 = math.rsqrt %40 : vector<16x1xf32>
    %42 = vector.broadcast %41 : vector<16x1xf32> to vector<16x128xf32>
    %43 = arith.mulf %33, %42 : vector<16x128xf32>
    %44 = vector.broadcast %26 : vector<1x128xf32> to vector<16x128xf32>
    %45 = arith.mulf %43, %44 : vector<16x128xf32>
    %46 = vector.broadcast %27 : vector<1x128xf32> to vector<16x128xf32>
    %47 = arith.addf %45, %46 : vector<16x128xf32>
    %c0_22 = arith.constant 0 : index
    %c0_23 = arith.constant 0 : index
    %48 = vector.load %arg9[%c0_22, %c0_23] : memref<128x128xf32, #tpu.memory_space<vmem>>, vector<128x128xf32>
    %cst_24 = arith.constant dense<0.000000e+00> : vector<8x128xf32>
    %49 = tpu.matmul %25, %48, %cst_24 {dimension_numbers = #tpu.dot_dimension_numbers<[1], [0], [0], [1], [0, 0, 1, 1], [], []>} : vector<8x128xf32>, vector<128x128xf32>, vector<8x128xf32> -> vector<8x128xf32>
    %c0_25 = arith.constant 0 : index
    %c0_26 = arith.constant 0 : index
    %50 = vector.load %arg11[%c0_25, %c0_26] : memref<1x128xf32, #tpu.memory_space<vmem>>, vector<1x128xf32>
    %51 = vector.broadcast %50 : vector<1x128xf32> to vector<8x128xf32>
    %52 = arith.addf %49, %51 : vector<8x128xf32>
    %c0_27 = arith.constant 0 : index
    %c0_28 = arith.constant 0 : index
    %53 = vector.load %arg10[%c0_27, %c0_28] : memref<128x256xf32, #tpu.memory_space<vmem>>, vector<128x256xf32>
    %cst_29 = arith.constant dense<0.000000e+00> : vector<16x256xf32>
    %54 = tpu.matmul %47, %53, %cst_29 {dimension_numbers = #tpu.dot_dimension_numbers<[1], [0], [0], [1], [0, 0, 1, 1], [], []>} : vector<16x128xf32>, vector<128x256xf32>, vector<16x256xf32> -> vector<16x256xf32>
    %c0_30 = arith.constant 0 : index
    %c0_31 = arith.constant 0 : index
    %55 = vector.load %arg12[%c0_30, %c0_31] : memref<1x256xf32, #tpu.memory_space<vmem>>, vector<1x256xf32>
    %56 = vector.broadcast %55 : vector<1x256xf32> to vector<16x256xf32>
    %57 = arith.addf %54, %56 : vector<16x256xf32>
    %58 = vector.shape_cast %52 : vector<8x128xf32> to vector<1x8x128xf32>
    %59 = vector.extract_strided_slice %57 {offsets = [0, 0], sizes = [16, 128], strides = [1, 1]} : vector<16x256xf32> to vector<16x128xf32>
    %60 = vector.shape_cast %59 : vector<16x128xf32> to vector<1x16x128xf32>
    %61 = vector.extract_strided_slice %57 {offsets = [0, 128], sizes = [16, 128], strides = [1, 1]} : vector<16x256xf32> to vector<16x128xf32>
    %62 = vector.shape_cast %61 : vector<16x128xf32> to vector<1x16x128xf32>
    %63 = vector.extract_strided_slice %58 {offsets = [0, 0, 0], sizes = [1, 8, 64], strides = [1, 1, 1]} : vector<1x8x128xf32> to vector<1x8x64xf32>
    %64 = vector.extract_strided_slice %60 {offsets = [0, 0, 0], sizes = [1, 16, 64], strides = [1, 1, 1]} : vector<1x16x128xf32> to vector<1x16x64xf32>
    %65 = vector.extract_strided_slice %62 {offsets = [0, 0, 0], sizes = [1, 16, 64], strides = [1, 1, 1]} : vector<1x16x128xf32> to vector<1x16x64xf32>
    "tpu.trace_start"() <{level = 10 : i32, message = "bmd,btd->bmt"}> : () -> ()
    %cst_32 = arith.constant dense<0.000000e+00> : vector<1x8x16xf32>
    %66 = tpu.matmul %63, %64, %cst_32 {dimension_numbers = #tpu.dot_dimension_numbers<[2], [2], [1], [1], [0, 0, 0, 1, 1, 1], [0], [0]>} : vector<1x8x64xf32>, vector<1x16x64xf32>, vector<1x8x16xf32> -> vector<1x8x16xf32>
    "tpu.trace_stop"() : () -> ()
    %cst_33 = arith.constant dense<0xFF800000> : vector<1x8xf32>
    %67 = vector.multi_reduction <maximumf>, %66, %cst_33 [2] : vector<1x8x16xf32> to vector<1x8xf32>
    %68 = vector.shape_cast %67 : vector<1x8xf32> to vector<1x8x1xf32>
    %69 = vector.broadcast %68 : vector<1x8x1xf32> to vector<1x8x16xf32>
    %70 = arith.subf %66, %69 : vector<1x8x16xf32>
    %71 = math.exp %70 : vector<1x8x16xf32>
    %cst_34 = arith.constant dense<0.000000e+00> : vector<1x8xf32>
    %72 = vector.multi_reduction <add>, %71, %cst_34 [2] : vector<1x8x16xf32> to vector<1x8xf32>
    %73 = vector.shape_cast %72 : vector<1x8xf32> to vector<1x8x1xf32>
    %74 = tpu.reciprocal %73 {approx = true} : vector<1x8x1xf32> -> vector<1x8x1xf32>
    %75 = vector.broadcast %74 : vector<1x8x1xf32> to vector<1x8x16xf32>
    %76 = arith.mulf %71, %75 : vector<1x8x16xf32>
    "tpu.trace_start"() <{level = 10 : i32, message = "bmt,btd->bmd"}> : () -> ()
    %cst_35 = arith.constant dense<0.000000e+00> : vector<1x8x64xf32>
    %77 = tpu.matmul %76, %65, %cst_35 {dimension_numbers = #tpu.dot_dimension_numbers<[2], [1], [1], [2], [0, 0, 0, 1, 1, 2], [0], [0]>} : vector<1x8x16xf32>, vector<1x16x64xf32>, vector<1x8x64xf32> -> vector<1x8x64xf32>
    "tpu.trace_stop"() : () -> ()
    %c0_36 = arith.constant 0 : index
    %c0_37 = arith.constant 0 : index
    %c0_38 = arith.constant 0 : index
    %78 = vector.load %arg18[%c0_36, %c0_37, %c0_38] : memref<1x8x128xf32, #tpu.memory_space<vmem>>, vector<1x8x64xf32>
    tpu.vector_store %arg18[%c0_36, %c0_37, %c0_38], %77 {strides = array<i32>} : memref<1x8x128xf32, #tpu.memory_space<vmem>>, vector<1x8x64xf32>,
    %79 = vector.extract_strided_slice %58 {offsets = [0, 0, 64], sizes = [1, 8, 64], strides = [1, 1, 1]} : vector<1x8x128xf32> to vector<1x8x64xf32>
    %80 = vector.extract_strided_slice %60 {offsets = [0, 0, 64], sizes = [1, 16, 64], strides = [1, 1, 1]} : vector<1x16x128xf32> to vector<1x16x64xf32>
    %81 = vector.extract_strided_slice %62 {offsets = [0, 0, 64], sizes = [1, 16, 64], strides = [1, 1, 1]} : vector<1x16x128xf32> to vector<1x16x64xf32>
    "tpu.trace_start"() <{level = 10 : i32, message = "bmd,btd->bmt"}> : () -> ()
    %cst_39 = arith.constant dense<0.000000e+00> : vector<1x8x16xf32>
    %82 = tpu.matmul %79, %80, %cst_39 {dimension_numbers = #tpu.dot_dimension_numbers<[2], [2], [1], [1], [0, 0, 0, 1, 1, 1], [0], [0]>} : vector<1x8x64xf32>, vector<1x16x64xf32>, vector<1x8x16xf32> -> vector<1x8x16xf32>
    "tpu.trace_stop"() : () -> ()
    %cst_40 = arith.constant dense<0xFF800000> : vector<1x8xf32>
    %83 = vector.multi_reduction <maximumf>, %82, %cst_40 [2] : vector<1x8x16xf32> to vector<1x8xf32>
    %84 = vector.shape_cast %83 : vector<1x8xf32> to vector<1x8x1xf32>
    %85 = vector.broadcast %84 : vector<1x8x1xf32> to vector<1x8x16xf32>
    %86 = arith.subf %82, %85 : vector<1x8x16xf32>
    %87 = math.exp %86 : vector<1x8x16xf32>
    %cst_41 = arith.constant dense<0.000000e+00> : vector<1x8xf32>
    %88 = vector.multi_reduction <add>, %87, %cst_41 [2] : vector<1x8x16xf32> to vector<1x8xf32>
    %89 = vector.shape_cast %88 : vector<1x8xf32> to vector<1x8x1xf32>
    %90 = tpu.reciprocal %89 {approx = true} : vector<1x8x1xf32> -> vector<1x8x1xf32>
    %91 = vector.broadcast %90 : vector<1x8x1xf32> to vector<1x8x16xf32>
    %92 = arith.mulf %87, %91 : vector<1x8x16xf32>
    "tpu.trace_start"() <{level = 10 : i32, message = "bmt,btd->bmd"}> : () -> ()
    %cst_42 = arith.constant dense<0.000000e+00> : vector<1x8x64xf32>
    %93 = tpu.matmul %92, %81, %cst_42 {dimension_numbers = #tpu.dot_dimension_numbers<[2], [1], [1], [2], [0, 0, 0, 1, 1, 2], [0], [0]>} : vector<1x8x16xf32>, vector<1x16x64xf32>, vector<1x8x64xf32> -> vector<1x8x64xf32>
    "tpu.trace_stop"() : () -> ()
    %c0_43 = arith.constant 0 : index
    %c0_44 = arith.constant 0 : index
    %c64 = arith.constant 64 : index
    %94 = vector.load %arg18[%c0_43, %c0_44, %c64] : memref<1x8x128xf32, #tpu.memory_space<vmem>>, vector<1x8x64xf32>
    tpu.vector_store %arg18[%c0_43, %c0_44, %c64], %93 {strides = array<i32>} : memref<1x8x128xf32, #tpu.memory_space<vmem>>, vector<1x8x64xf32>,
    %c0_45 = arith.constant 0 : index
    %c0_46 = arith.constant 0 : index
    %c0_47 = arith.constant 0 : index
    %95 = vector.load %arg18[%c0_45, %c0_46, %c0_47] : memref<1x8x128xf32, #tpu.memory_space<vmem>>, vector<1x8x128xf32>
    %96 = arith.addf %0, %95 : vector<1x8x128xf32>
    %97 = vector.shape_cast %96 : vector<1x8x128xf32> to vector<8x128xf32>
    %c0_48 = arith.constant 0 : index
    %c0_49 = arith.constant 0 : index
    %98 = vector.load %arg7[%c0_48, %c0_49] : memref<1x128xf32, #tpu.memory_space<vmem>>, vector<1x128xf32>
    %c0_50 = arith.constant 0 : index
    %c0_51 = arith.constant 0 : index
    %99 = vector.load %arg8[%c0_50, %c0_51] : memref<1x128xf32, #tpu.memory_space<vmem>>, vector<1x128xf32>
    %cst_52 = arith.constant dense<0.000000e+00> : vector<8xf32>
    %100 = vector.multi_reduction <add>, %97, %cst_52 [1] : vector<8x128xf32> to vector<8xf32>
    %101 = vector.shape_cast %100 : vector<8xf32> to vector<8x1xf32>
    %cst_53 = arith.constant 1.280000e+02 : f32
    %102 = vector.broadcast %cst_53 : f32 to vector<8x1xf32>
    %103 = arith.divf %101, %102 : vector<8x1xf32>
    %104 = vector.broadcast %103 : vector<8x1xf32> to vector<8x128xf32>
    %105 = arith.subf %97, %104 : vector<8x128xf32>
    %106 = arith.mulf %105, %105 : vector<8x128xf32>
    %cst_54 = arith.constant dense<0.000000e+00> : vector<8xf32>
    %107 = vector.multi_reduction <add>, %106, %cst_54 [1] : vector<8x128xf32> to vector<8xf32>
    %108 = vector.shape_cast %107 : vector<8xf32> to vector<8x1xf32>
    %cst_55 = arith.constant 1.280000e+02 : f32
    %109 = vector.broadcast %cst_55 : f32 to vector<8x1xf32>
    %110 = arith.divf %108, %109 : vector<8x1xf32>
    %cst_56 = arith.constant 9.99999974E-6 : f32
    %111 = vector.broadcast %cst_56 : f32 to vector<8x1xf32>
    %112 = arith.addf %110, %111 : vector<8x1xf32>
    %113 = math.rsqrt %112 : vector<8x1xf32>
    %114 = vector.broadcast %113 : vector<8x1xf32> to vector<8x128xf32>
    %115 = arith.mulf %105, %114 : vector<8x128xf32>
    %116 = vector.broadcast %98 : vector<1x128xf32> to vector<8x128xf32>
    %117 = arith.mulf %115, %116 : vector<8x128xf32>
    %118 = vector.broadcast %99 : vector<1x128xf32> to vector<8x128xf32>
    %119 = arith.addf %117, %118 : vector<8x128xf32>
    %cst_57 = arith.constant 0.000000e+00 : f32
    %120 = vector.broadcast %cst_57 : f32 to vector<8x128xf32>
    %c0_58 = arith.constant 0 : index
    %c0_59 = arith.constant 0 : index
    %121 = vector.load %arg16[%c0_58, %c0_59] : memref<1x128xf32, #tpu.memory_space<vmem>>, vector<1x128xf32>
    %122 = vector.broadcast %121 : vector<1x128xf32> to vector<8x128xf32>
    %123 = arith.addf %120, %122 : vector<8x128xf32>
    %c0_60 = arith.constant 0 : index
    %c0_61 = arith.constant 0 : index
    %124 = vector.load %arg13[%c0_60, %c0_61] : memref<128x512xf32, #tpu.memory_space<vmem>>, vector<128x512xf32>
    %cst_62 = arith.constant dense<0.000000e+00> : vector<8x512xf32>
    %125 = tpu.matmul %119, %124, %cst_62 {dimension_numbers = #tpu.dot_dimension_numbers<[1], [0], [0], [1], [0, 0, 1, 1], [], []>} : vector<8x128xf32>, vector<128x512xf32>, vector<8x512xf32> -> vector<8x512xf32>
    %c0_63 = arith.constant 0 : index
    %c0_64 = arith.constant 0 : index
    %126 = vector.load %arg14[%c0_63, %c0_64] : memref<1x512xf32, #tpu.memory_space<vmem>>, vector<1x512xf32>
    %127 = vector.broadcast %126 : vector<1x512xf32> to vector<8x512xf32>
    %128 = arith.addf %125, %127 : vector<8x512xf32>
    %cst_65 = arith.constant 1.702000e+00 : f32
    %129 = vector.broadcast %cst_65 : f32 to vector<8x512xf32>
    %130 = arith.mulf %129, %128 : vector<8x512xf32>
    %131 = arith.negf %130 : vector<8x512xf32>
    %132 = math.exp %131 : vector<8x512xf32>
    %cst_66 = arith.constant 1.000000e+00 : f32
    %133 = vector.broadcast %cst_66 : f32 to vector<8x512xf32>
    %134 = arith.addf %133, %132 : vector<8x512xf32>
    %135 = arith.divf %133, %134 : vector<8x512xf32>
    %136 = arith.mulf %128, %135 : vector<8x512xf32>
    %c0_67 = arith.constant 0 : index
    %c0_68 = arith.constant 0 : index
    %137 = vector.load %arg15[%c0_67, %c0_68] : memref<512x128xf32, #tpu.memory_space<vmem>>, vector<512x128xf32>
    %cst_69 = arith.constant dense<0.000000e+00> : vector<8x128xf32>
    %138 = tpu.matmul %136, %137, %cst_69 {dimension_numbers = #tpu.dot_dimension_numbers<[1], [0], [0], [1], [0, 0, 1, 1], [], []>} : vector<8x512xf32>, vector<512x128xf32>, vector<8x128xf32> -> vector<8x128xf32>
    %139 = arith.addf %123, %138 : vector<8x128xf32>
    %140 = arith.addf %97, %139 : vector<8x128xf32>
    %141 = vector.shape_cast %140 : vector<8x128xf32> to vector<1x8x128xf32>
    %c0_70 = arith.constant 0 : index
    %c0_71 = arith.constant 0 : index
    %c0_72 = arith.constant 0 : index
    %142 = vector.load %arg17[%c0_70, %c0_71, %c0_72] : memref<1x8x128xf32, #tpu.memory_space<vmem>>, vector<1x8x128xf32>
    tpu.vector_store %arg17[%c0_70, %c0_71, %c0_72], %141 {strides = array<i32>} : memref<1x8x128xf32, #tpu.memory_space<vmem>>, vector<1x8x128xf32>,
    return
  }
  func.func @transform_0(%arg0: i32) -> (i32, i32, i32) {
    %c0_i32 = arith.constant 0 : i32
    %c0_i32_0 = arith.constant 0 : i32
    %c0_i32_1 = arith.constant 0 : i32
    return %arg0, %c0_i32, %c0_i32_0 : i32, i32, i32
  }
  func.func @transform_1(%arg0: i32) -> (i32, i32, i32) {
    %c0_i32 = arith.constant 0 : i32
    %c0_i32_0 = arith.constant 0 : i32
    %c0_i32_1 = arith.constant 0 : i32
    return %arg0, %c0_i32, %c0_i32_0 : i32, i32, i32
  }
  func.func @transform_2(%arg0: i32) -> (i32, i32) {
    %c0_i32 = arith.constant 0 : i32
    %c0_i32_0 = arith.constant 0 : i32
    %c0_i32_1 = arith.constant 0 : i32
    return %c0_i32, %c0_i32_0 : i32, i32
  }
  func.func @transform_3(%arg0: i32) -> (i32, i32) {
    %c0_i32 = arith.constant 0 : i32
    %c0_i32_0 = arith.constant 0 : i32
    %c0_i32_1 = arith.constant 0 : i32
    return %c0_i32, %c0_i32_0 : i32, i32
  }
  func.func @transform_4(%arg0: i32) -> (i32, i32) {
    %c0_i32 = arith.constant 0 : i32
    %c0_i32_0 = arith.constant 0 : i32
    %c0_i32_1 = arith.constant 0 : i32
    return %c0_i32, %c0_i32_0 : i32, i32
  }
  func.func @transform_5(%arg0: i32) -> (i32, i32) {
    %c0_i32 = arith.constant 0 : i32
    %c0_i32_0 = arith.constant 0 : i32
    %c0_i32_1 = arith.constant 0 : i32
    return %c0_i32, %c0_i32_0 : i32, i32
  }
  func.func @transform_6(%arg0: i32) -> (i32, i32) {
    %c0_i32 = arith.constant 0 : i32
    %c0_i32_0 = arith.constant 0 : i32
    %c0_i32_1 = arith.constant 0 : i32
    return %c0_i32, %c0_i32_0 : i32, i32
  }
  func.func @transform_7(%arg0: i32) -> (i32, i32) {
    %c0_i32 = arith.constant 0 : i32
    %c0_i32_0 = arith.constant 0 : i32
    %c0_i32_1 = arith.constant 0 : i32
    return %c0_i32, %c0_i32_0 : i32, i32
  }
  func.func @transform_8(%arg0: i32) -> (i32, i32) {
    %c0_i32 = arith.constant 0 : i32
    %c0_i32_0 = arith.constant 0 : i32
    %c0_i32_1 = arith.constant 0 : i32
    return %c0_i32, %c0_i32_0 : i32, i32
  }
  func.func @transform_9(%arg0: i32) -> (i32, i32) {
    %c0_i32 = arith.constant 0 : i32
    %c0_i32_0 = arith.constant 0 : i32
    %c0_i32_1 = arith.constant 0 : i32
    return %c0_i32, %c0_i32_0 : i32, i32
  }
  func.func @transform_10(%arg0: i32) -> (i32, i32) {
    %c0_i32 = arith.constant 0 : i32
    %c0_i32_0 = arith.constant 0 : i32
    %c0_i32_1 = arith.constant 0 : i32
    return %c0_i32, %c0_i32_0 : i32, i32
  }
  func.func @transform_11(%arg0: i32) -> (i32, i32) {
    %c0_i32 = arith.constant 0 : i32
    %c0_i32_0 = arith.constant 0 : i32
    %c0_i32_1 = arith.constant 0 : i32
    return %c0_i32, %c0_i32_0 : i32, i32
  }
  func.func @transform_12(%arg0: i32) -> (i32, i32) {
    %c0_i32 = arith.constant 0 : i32
    %c0_i32_0 = arith.constant 0 : i32
    %c0_i32_1 = arith.constant 0 : i32
    return %c0_i32, %c0_i32_0 : i32, i32
  }
  func.func @transform_13(%arg0: i32) -> (i32, i32) {
    %c0_i32 = arith.constant 0 : i32
    %c0_i32_0 = arith.constant 0 : i32
    %c0_i32_1 = arith.constant 0 : i32
    return %c0_i32, %c0_i32_0 : i32, i32
  }
  func.func @transform_14(%arg0: i32) -> (i32, i32) {
    %c0_i32 = arith.constant 0 : i32
    %c0_i32_0 = arith.constant 0 : i32
    %c0_i32_1 = arith.constant 0 : i32
    return %c0_i32, %c0_i32_0 : i32, i32
  }
  func.func @transform_15(%arg0: i32) -> (i32, i32) {
    %c0_i32 = arith.constant 0 : i32
    %c0_i32_0 = arith.constant 0 : i32
    %c0_i32_1 = arith.constant 0 : i32
    return %c0_i32, %c0_i32_0 : i32, i32
  }
  func.func @transform_16(%arg0: i32) -> (i32, i32, i32) {
    %c0_i32 = arith.constant 0 : i32
    %c0_i32_0 = arith.constant 0 : i32
    %c0_i32_1 = arith.constant 0 : i32
    return %arg0, %c0_i32, %c0_i32_0 : i32, i32, i32
  }
}

</mosaic_0001>

<llo_original>
// kernel: tpu_custom_call.1
$region0: #{tpu_custom_call.1}
  #allocation0 [shape = 'u32[]', space=smem, size = 0x4, offset = 0x4, fixed_abs, tag = 'smem constant byte address 0x4 - core index']
  #allocation1 [shape = 'u32[144,128]{1,0:T(1,128)}', space=vmem, size = 0x12000, scoped, tag = 'internal scratch']
  #allocation2 [shape = 'f32[1,8,128]{2,1,0:T(8,128)}', space=vmem, size = 0x1000, scoped, tag = 'scratch operand']
  %s0 = inlined_call_operand.hbm [shape: f32[2,8,128], index: 0, kind: input, shape index: {}]
  %s1 = inlined_call_operand.hbm [shape: f32[2,16,128], index: 1, kind: input, shape index: {}]
  %s2 = inlined_call_operand.vmem [shape: f32[1,128], index: 2, kind: input, shape index: {}]
  %s3 = inlined_call_operand.vmem [shape: f32[1,128], index: 3, kind: input, shape index: {}]
  %s4 = inlined_call_operand.vmem [shape: f32[1,128], index: 4, kind: input, shape index: {}]
  %s5 = inlined_call_operand.vmem [shape: f32[1,128], index: 5, kind: input, shape index: {}]
  %s6 = inlined_call_operand.vmem [shape: f32[1,128], index: 6, kind: input, shape index: {}]
  %s7 = inlined_call_operand.vmem [shape: f32[1,128], index: 7, kind: input, shape index: {}]
  %s8 = inlined_call_operand.hbm [shape: f32[128,128], index: 8, kind: input, shape index: {}]
  %s9 = inlined_call_operand.hbm [shape: f32[128,256], index: 9, kind: input, shape index: {}]
  %s10 = inlined_call_operand.vmem [shape: f32[1,128], index: 10, kind: input, shape index: {}]
  %s11 = inlined_call_operand.vmem [shape: f32[1,256], index: 11, kind: input, shape index: {}]
  %s12 = inlined_call_operand.hbm [shape: f32[128,512], index: 12, kind: input, shape index: {}]
  %s13 = inlined_call_operand.vmem [shape: f32[1,512], index: 13, kind: input, shape index: {}]
  %s14 = inlined_call_operand.hbm [shape: f32[512,128], index: 14, kind: input, shape index: {}]
  %s15 = inlined_call_operand.vmem [shape: f32[1,128], index: 15, kind: input, shape index: {}]
  %s16 = inlined_call_operand.hbm [shape: f32[2,8,128], index: 16, kind: output, shape index: {}]
  %s17 = sld [smem:[#allocation0]]
  $region121: #{tpu_custom_call.1} parent=0
    _
  %s19 = ssub.s32 1, %s17
  %s20 = scalar_select 0, %s19, %s17
  $region1: #{tpu_custom_call.1} parent=0
    #allocation3 [shape = 'u8[8192]{0}', space=vmem, size = 0x2000, scoped, tag = 'input window, operand 0']
    #allocation4 [shape = 's32[2]{0}', space=sflag, size = 0x8, scoped, tag = 'scoped memory for tpu_custom_call.1']
    #allocation5 [shape = 's32[2]{0}', space=sflag, size = 0x8, scoped, tag = 'scoped memory for tpu_custom_call.1']
    #allocation6 [shape = 'u8[16384]{0}', space=vmem, size = 0x4000, scoped, tag = 'input window, operand 1']
    #allocation7 [shape = 's32[2]{0}', space=sflag, size = 0x8, scoped, tag = 'scoped memory for tpu_custom_call.1']
    #allocation8 [shape = 'u8[65536]{0}', space=vmem, size = 0x10000, scoped, tag = 'input window, operand 8, single buffered']
    #allocation9 [shape = 'u8[131072]{0}', space=vmem, size = 0x20000, scoped, tag = 'input window, operand 9, single buffered']
    #allocation10 [shape = 's32[1]{0}', space=sflag, size = 0x4, scoped, tag = 'scoped memory for tpu_custom_call.1']
    #allocation11 [shape = 'u8[262144]{0}', space=vmem, size = 0x40000, scoped, tag = 'input window, operand 12, single buffered']
    #allocation12 [shape = 'u8[262144]{0}', space=vmem, size = 0x40000, scoped, tag = 'input window, operand 14, single buffered']
    #allocation13 [shape = 's32[1]{0}', space=sflag, size = 0x4, scoped, tag = 'scoped memory for tpu_custom_call.1']
    #allocation14 [shape = 'u8[8192]{0}', space=vmem, size = 0x2000, scoped, tag = 'output window, operand 0']
    %21 = vsyncpa [#allocation4], 0
    %s22 = scalar_lea.sflag [#allocation4], 1
    %23 = vsyncpa %s22, 0
    %24 = vsyncpa [#allocation7], 0
    %s25 = scalar_lea.sflag [#allocation7], 1
    %26 = vsyncpa %s25, 0
    %27 = vsyncpa [#allocation10], 0
    %28 = vsyncpa [#allocation13], 0
    %29 = vsyncpa [#allocation5], 0
    %s30 = scalar_lea.sflag [#allocation5], 1
    %31 = vsyncpa %s30, 0
    loop: start=0, step=1, limit=4
    $region2: #{tpu_custom_call.1} parent=1 // loop_pre_header
      _
    $region3: #{tpu_custom_call.1} parent=1 // loop_header
      %s33 = sphi 0, %s37
      %p34 = scmp.ge.s32.totalorder %s33, 4
      %s43 = sphi 0, %s45
      %s46 = sphi 0, %s43
      %s47 = sphi 0, %s46
      %s63 = sphi 0, %s47
      %s69 = sphi 0, %s71
      %s72 = sphi 0, %s69
      %s73 = sphi 0, %s72
      %s89 = sphi 0, %s73
      %s93 = sphi 0, %s93
      %s95 = sphi 0, %s93
      %s96 = sphi 0, %s95
      %s110 = sphi 0, %s96
      %s114 = sphi 0, %s114
      %s116 = sphi 0, %s114
      %s117 = sphi 0, %s116
      %s131 = sphi 0, %s117
      %s135 = sphi 0, %s135
      %s137 = sphi 0, %s135
      %s138 = sphi 0, %s137
      %s152 = sphi 0, %s138
      %s156 = sphi 0, %s156
      %s158 = sphi 0, %s156
      %s159 = sphi 0, %s158
      %s173 = sphi 0, %s159
      %s177 = sphi 0, %s177
      %s179 = sphi 0, %s177
      %s180 = sphi 0, %s179
      %s194 = sphi 0, %s180
      %s198 = sphi 0, %s198
      %s200 = sphi 0, %s198
      %s201 = sphi 0, %s200
      %s215 = sphi 0, %s201
      %s219 = sphi 0, %s219
      %s221 = sphi 0, %s219
      %s222 = sphi 0, %s221
      %s236 = sphi 0, %s222
      %s240 = sphi 0, %s240
      %s242 = sphi 0, %s240
      %s243 = sphi 0, %s242
      %s257 = sphi 0, %s243
      %s261 = sphi 0, %s261
      %s263 = sphi 0, %s261
      %s264 = sphi 0, %s263
      %s278 = sphi 0, %s264
      %s282 = sphi 0, %s282
      %s284 = sphi 0, %s282
      %s285 = sphi 0, %s284
      %s299 = sphi 0, %s285
      %s303 = sphi 0, %s303
      %s305 = sphi 0, %s303
      %s306 = sphi 0, %s305
      %s320 = sphi 0, %s306
      %s324 = sphi 0, %s324
      %s326 = sphi 0, %s324
      %s327 = sphi 0, %s326
      %s341 = sphi 0, %s327
      %s345 = sphi 0, %s345
      %s347 = sphi 0, %s345
      %s348 = sphi 0, %s347
      %s362 = sphi 0, %s348
      %s366 = sphi 0, %s366
      %s368 = sphi 0, %s366
      %s369 = sphi 0, %s368
      %s383 = sphi 0, %s369
      %s389 = sphi 0, %s391
      %s392 = sphi 0, %s389
      %s393 = sphi 0, %s392
      %s409 = sphi 0, %s393
    $region4: #{tpu_custom_call.1} parent=1 // loop_header_branch
      %36 = sbr.rel (%p34) target = $region8
    $region5: #{tpu_custom_call.1} parent=1 // loop_body
      %s38 = ssub.s32 %s33, 1
      %s39 = ssub.s32 %s33, 2
      %s40 = sadd.s32 %s33, 1
      %s41 = ssub.s32 %s33, %s40
      %p42 = scmp.eq.s32.totalorder %s41, 0
      %s44 = sadd.s32 %s43, 1
      %s45 = scalar_select %p42, %s43, %s44
      %p48 = pneg %p42
      %p49 = scmp.eq.s32.totalorder %s33, 1
      %p50 = por %p48, %p49
      %p51 = scmp.ne.s32.totalorder %s43, %s46
      %p52 = scmp.eq.s32.totalorder %s33, 0
      %p53 = por %p51, %p52
      %p54 = scmp.ne.s32.totalorder %s43, %s46
      %p55 = scmp.eq.s32.totalorder %s38, 1
      %p56 = por %p54, %p55
      %p57 = scmp.ne.s32.totalorder %s46, %s47
      %p58 = scmp.eq.s32.totalorder %s38, 0
      %p59 = por %p57, %p58
      %p60 = scmp.ne.s32.totalorder %s46, %s47
      %p61 = scmp.eq.s32.totalorder %s39, 1
      %p62 = por %p60, %p61
      %p64 = scmp.ne.s32.totalorder %s47, %s63
      %p65 = scmp.eq.s32.totalorder %s39, 0
      %p66 = por %p64, %p65
      %s67 = ssub.s32 %s33, %s40
      %p68 = scmp.eq.s32.totalorder %s67, 0
      %s70 = sadd.s32 %s69, 1
      %s71 = scalar_select %p68, %s69, %s70
      %p74 = pneg %p68
      %p75 = scmp.eq.s32.totalorder %s33, 1
      %p76 = por %p74, %p75
      %p77 = scmp.ne.s32.totalorder %s69, %s72
      %p78 = scmp.eq.s32.totalorder %s33, 0
      %p79 = por %p77, %p78
      %p80 = scmp.ne.s32.totalorder %s69, %s72
      %p81 = scmp.eq.s32.totalorder %s38, 1
      %p82 = por %p80, %p81
      %p83 = scmp.ne.s32.totalorder %s72, %s73
      %p84 = scmp.eq.s32.totalorder %s38, 0
      %p85 = por %p83, %p84
      %p86 = scmp.ne.s32.totalorder %s72, %s73
      %p87 = scmp.eq.s32.totalorder %s39, 1
      %p88 = por %p86, %p87
      %p90 = scmp.ne.s32.totalorder %s73, %s89
      %p91 = scmp.eq.s32.totalorder %s39, 0
      %p92 = por %p90, %p91
      %s94 = sadd.s32 %s93, 1
      %p97 = scmp.eq.s32.totalorder %s33, 1
      %p98 = scmp.ne.s32.totalorder %s93, %s95
      %p99 = scmp.eq.s32.totalorder %s33, 0
      %p100 = por %p98, %p99
      %p101 = scmp.ne.s32.totalorder %s93, %s95
      %p102 = scmp.eq.s32.totalorder %s38, 1
      %p103 = por %p101, %p102
      %p104 = scmp.ne.s32.totalorder %s95, %s96
      %p105 = scmp.eq.s32.totalorder %s38, 0
      %p106 = por %p104, %p105
      %p107 = scmp.ne.s32.totalorder %s95, %s96
      %p108 = scmp.eq.s32.totalorder %s39, 1
      %p109 = por %p107, %p108
      %p111 = scmp.ne.s32.totalorder %s96, %s110
      %p112 = scmp.eq.s32.totalorder %s39, 0
      %p113 = por %p111, %p112
      %s115 = sadd.s32 %s114, 1
      %p118 = scmp.eq.s32.totalorder %s33, 1
      %p119 = scmp.ne.s32.totalorder %s114, %s116
      %p120 = scmp.eq.s32.totalorder %s33, 0
      %p121 = por %p119, %p120
      %p122 = scmp.ne.s32.totalorder %s114, %s116
      %p123 = scmp.eq.s32.totalorder %s38, 1
      %p124 = por %p122, %p123
      %p125 = scmp.ne.s32.totalorder %s116, %s117
      %p126 = scmp.eq.s32.totalorder %s38, 0
      %p127 = por %p125, %p126
      %p128 = scmp.ne.s32.totalorder %s116, %s117
      %p129 = scmp.eq.s32.totalorder %s39, 1
      %p130 = por %p128, %p129
      %p132 = scmp.ne.s32.totalorder %s117, %s131
      %p133 = scmp.eq.s32.totalorder %s39, 0
      %p134 = por %p132, %p133
      %s136 = sadd.s32 %s135, 1
      %p139 = scmp.eq.s32.totalorder %s33, 1
      %p140 = scmp.ne.s32.totalorder %s135, %s137
      %p141 = scmp.eq.s32.totalorder %s33, 0
      %p142 = por %p140, %p141
      %p143 = scmp.ne.s32.totalorder %s135, %s137
      %p144 = scmp.eq.s32.totalorder %s38, 1
      %p145 = por %p143, %p144
      %p146 = scmp.ne.s32.totalorder %s137, %s138
      %p147 = scmp.eq.s32.totalorder %s38, 0
      %p148 = por %p146, %p147
      %p149 = scmp.ne.s32.totalorder %s137, %s138
      %p150 = scmp.eq.s32.totalorder %s39, 1
      %p151 = por %p149, %p150
      %p153 = scmp.ne.s32.totalorder %s138, %s152
      %p154 = scmp.eq.s32.totalorder %s39, 0
      %p155 = por %p153, %p154
      %s157 = sadd.s32 %s156, 1
      %p160 = scmp.eq.s32.totalorder %s33, 1
      %p161 = scmp.ne.s32.totalorder %s156, %s158
      %p162 = scmp.eq.s32.totalorder %s33, 0
      %p163 = por %p161, %p162
      %p164 = scmp.ne.s32.totalorder %s156, %s158
      %p165 = scmp.eq.s32.totalorder %s38, 1
      %p166 = por %p164, %p165
      %p167 = scmp.ne.s32.totalorder %s158, %s159
      %p168 = scmp.eq.s32.totalorder %s38, 0
      %p169 = por %p167, %p168
      %p170 = scmp.ne.s32.totalorder %s158, %s159
      %p171 = scmp.eq.s32.totalorder %s39, 1
      %p172 = por %p170, %p171
      %p174 = scmp.ne.s32.totalorder %s159, %s173
      %p175 = scmp.eq.s32.totalorder %s39, 0
      %p176 = por %p174, %p175
      %s178 = sadd.s32 %s177, 1
      %p181 = scmp.eq.s32.totalorder %s33, 1
      %p182 = scmp.ne.s32.totalorder %s177, %s179
      %p183 = scmp.eq.s32.totalorder %s33, 0
      %p184 = por %p182, %p183
      %p185 = scmp.ne.s32.totalorder %s177, %s179
      %p186 = scmp.eq.s32.totalorder %s38, 1
      %p187 = por %p185, %p186
      %p188 = scmp.ne.s32.totalorder %s179, %s180
      %p189 = scmp.eq.s32.totalorder %s38, 0
      %p190 = por %p188, %p189
      %p191 = scmp.ne.s32.totalorder %s179, %s180
      %p192 = scmp.eq.s32.totalorder %s39, 1
      %p193 = por %p191, %p192
      %p195 = scmp.ne.s32.totalorder %s180, %s194
      %p196 = scmp.eq.s32.totalorder %s39, 0
      %p197 = por %p195, %p196
      %s199 = sadd.s32 %s198, 1
      %p202 = scmp.eq.s32.totalorder %s33, 1
      %p203 = scmp.ne.s32.totalorder %s198, %s200
      %p204 = scmp.eq.s32.totalorder %s33, 0
      %p205 = por %p203, %p204
      %p206 = scmp.ne.s32.totalorder %s198, %s200
      %p207 = scmp.eq.s32.totalorder %s38, 1
      %p208 = por %p206, %p207
      %p209 = scmp.ne.s32.totalorder %s200, %s201
      %p210 = scmp.eq.s32.totalorder %s38, 0
      %p211 = por %p209, %p210
      %p212 = scmp.ne.s32.totalorder %s200, %s201
      %p213 = scmp.eq.s32.totalorder %s39, 1
      %p214 = por %p212, %p213
      %p216 = scmp.ne.s32.totalorder %s201, %s215
      %p217 = scmp.eq.s32.totalorder %s39, 0
      %p218 = por %p216, %p217
      %s220 = sadd.s32 %s219, 1
      %p223 = scmp.eq.s32.totalorder %s33, 1
      %p224 = scmp.ne.s32.totalorder %s219, %s221
      %p225 = scmp.eq.s32.totalorder %s33, 0
      %p226 = por %p224, %p225
      %p227 = scmp.ne.s32.totalorder %s219, %s221
      %p228 = scmp.eq.s32.totalorder %s38, 1
      %p229 = por %p227, %p228
      %p230 = scmp.ne.s32.totalorder %s221, %s222
      %p231 = scmp.eq.s32.totalorder %s38, 0
      %p232 = por %p230, %p231
      %p233 = scmp.ne.s32.totalorder %s221, %s222
      %p234 = scmp.eq.s32.totalorder %s39, 1
      %p235 = por %p233, %p234
      %p237 = scmp.ne.s32.totalorder %s222, %s236
      %p238 = scmp.eq.s32.totalorder %s39, 0
      %p239 = por %p237, %p238
      %s241 = sadd.s32 %s240, 1
      %p244 = scmp.eq.s32.totalorder %s33, 1
      %p245 = scmp.ne.s32.totalorder %s240, %s242
      %p246 = scmp.eq.s32.totalorder %s33, 0
      %p247 = por %p245, %p246
      %p248 = scmp.ne.s32.totalorder %s240, %s242
      %p249 = scmp.eq.s32.totalorder %s38, 1
      %p250 = por %p248, %p249
      %p251 = scmp.ne.s32.totalorder %s242, %s243
      %p252 = scmp.eq.s32.totalorder %s38, 0
      %p253 = por %p251, %p252
      %p254 = scmp.ne.s32.totalorder %s242, %s243
      %p255 = scmp.eq.s32.totalorder %s39, 1
      %p256 = por %p254, %p255
      %p258 = scmp.ne.s32.totalorder %s243, %s257
      %p259 = scmp.eq.s32.totalorder %s39, 0
      %p260 = por %p258, %p259
      %s262 = sadd.s32 %s261, 1
      %p265 = scmp.eq.s32.totalorder %s33, 1
      %p266 = scmp.ne.s32.totalorder %s261, %s263
      %p267 = scmp.eq.s32.totalorder %s33, 0
      %p268 = por %p266, %p267
      %p269 = scmp.ne.s32.totalorder %s261, %s263
      %p270 = scmp.eq.s32.totalorder %s38, 1
      %p271 = por %p269, %p270
      %p272 = scmp.ne.s32.totalorder %s263, %s264
      %p273 = scmp.eq.s32.totalorder %s38, 0
      %p274 = por %p272, %p273
      %p275 = scmp.ne.s32.totalorder %s263, %s264
      %p276 = scmp.eq.s32.totalorder %s39, 1
      %p277 = por %p275, %p276
      %p279 = scmp.ne.s32.totalorder %s264, %s278
      %p280 = scmp.eq.s32.totalorder %s39, 0
      %p281 = por %p279, %p280
      %s283 = sadd.s32 %s282, 1
      %p286 = scmp.eq.s32.totalorder %s33, 1
      %p287 = scmp.ne.s32.totalorder %s282, %s284
      %p288 = scmp.eq.s32.totalorder %s33, 0
      %p289 = por %p287, %p288
      %p290 = scmp.ne.s32.totalorder %s282, %s284
      %p291 = scmp.eq.s32.totalorder %s38, 1
      %p292 = por %p290, %p291
      %p293 = scmp.ne.s32.totalorder %s284, %s285
      %p294 = scmp.eq.s32.totalorder %s38, 0
      %p295 = por %p293, %p294
      %p296 = scmp.ne.s32.totalorder %s284, %s285
      %p297 = scmp.eq.s32.totalorder %s39, 1
      %p298 = por %p296, %p297
      %p300 = scmp.ne.s32.totalorder %s285, %s299
      %p301 = scmp.eq.s32.totalorder %s39, 0
      %p302 = por %p300, %p301
      %s304 = sadd.s32 %s303, 1
      %p307 = scmp.eq.s32.totalorder %s33, 1
      %p308 = scmp.ne.s32.totalorder %s303, %s305
      %p309 = scmp.eq.s32.totalorder %s33, 0
      %p310 = por %p308, %p309
      %p311 = scmp.ne.s32.totalorder %s303, %s305
      %p312 = scmp.eq.s32.totalorder %s38, 1
      %p313 = por %p311, %p312
      %p314 = scmp.ne.s32.totalorder %s305, %s306
      %p315 = scmp.eq.s32.totalorder %s38, 0
      %p316 = por %p314, %p315
      %p317 = scmp.ne.s32.totalorder %s305, %s306
      %p318 = scmp.eq.s32.totalorder %s39, 1
      %p319 = por %p317, %p318
      %p321 = scmp.ne.s32.totalorder %s306, %s320
      %p322 = scmp.eq.s32.totalorder %s39, 0
      %p323 = por %p321, %p322
      %s325 = sadd.s32 %s324, 1
      %p328 = scmp.eq.s32.totalorder %s33, 1
      %p329 = scmp.ne.s32.totalorder %s324, %s326
      %p330 = scmp.eq.s32.totalorder %s33, 0
      %p331 = por %p329, %p330
      %p332 = scmp.ne.s32.totalorder %s324, %s326
      %p333 = scmp.eq.s32.totalorder %s38, 1
      %p334 = por %p332, %p333
      %p335 = scmp.ne.s32.totalorder %s326, %s327
      %p336 = scmp.eq.s32.totalorder %s38, 0
      %p337 = por %p335, %p336
      %p338 = scmp.ne.s32.totalorder %s326, %s327
      %p339 = scmp.eq.s32.totalorder %s39, 1
      %p340 = por %p338, %p339
      %p342 = scmp.ne.s32.totalorder %s327, %s341
      %p343 = scmp.eq.s32.totalorder %s39, 0
      %p344 = por %p342, %p343
      %s346 = sadd.s32 %s345, 1
      %p349 = scmp.eq.s32.totalorder %s33, 1
      %p350 = scmp.ne.s32.totalorder %s345, %s347
      %p351 = scmp.eq.s32.totalorder %s33, 0
      %p352 = por %p350, %p351
      %p353 = scmp.ne.s32.totalorder %s345, %s347
      %p354 = scmp.eq.s32.totalorder %s38, 1
      %p355 = por %p353, %p354
      %p356 = scmp.ne.s32.totalorder %s347, %s348
      %p357 = scmp.eq.s32.totalorder %s38, 0
      %p358 = por %p356, %p357
      %p359 = scmp.ne.s32.totalorder %s347, %s348
      %p360 = scmp.eq.s32.totalorder %s39, 1
      %p361 = por %p359, %p360
      %p363 = scmp.ne.s32.totalorder %s348, %s362
      %p364 = scmp.eq.s32.totalorder %s39, 0
      %p365 = por %p363, %p364
      %s367 = sadd.s32 %s366, 1
      %p370 = scmp.eq.s32.totalorder %s33, 1
      %p371 = scmp.ne.s32.totalorder %s366, %s368
      %p372 = scmp.eq.s32.totalorder %s33, 0
      %p373 = por %p371, %p372
      %p374 = scmp.ne.s32.totalorder %s366, %s368
      %p375 = scmp.eq.s32.totalorder %s38, 1
      %p376 = por %p374, %p375
      %p377 = scmp.ne.s32.totalorder %s368, %s369
      %p378 = scmp.eq.s32.totalorder %s38, 0
      %p379 = por %p377, %p378
      %p380 = scmp.ne.s32.totalorder %s368, %s369
      %p381 = scmp.eq.s32.totalorder %s39, 1
      %p382 = por %p380, %p381
      %p384 = scmp.ne.s32.totalorder %s369, %s383
      %p385 = scmp.eq.s32.totalorder %s39, 0
      %p386 = por %p384, %p385
      %s387 = ssub.s32 %s33, %s40
      %p388 = scmp.eq.s32.totalorder %s387, 0
      %s390 = sadd.s32 %s389, 1
      %s391 = scalar_select %p388, %s389, %s390
      %p394 = pneg %p388
      %p395 = scmp.eq.s32.totalorder %s33, 1
      %p396 = por %p394, %p395
      %p397 = scmp.ne.s32.totalorder %s389, %s392
      %p398 = scmp.eq.s32.totalorder %s33, 0
      %p399 = por %p397, %p398
      %p400 = scmp.ne.s32.totalorder %s389, %s392
      %p401 = scmp.eq.s32.totalorder %s38, 1
      %p402 = por %p400, %p401
      %p403 = scmp.ne.s32.totalorder %s392, %s393
      %p404 = scmp.eq.s32.totalorder %s38, 0
      %p405 = por %p403, %p404
      %p406 = scmp.ne.s32.totalorder %s392, %s393
      %p407 = scmp.eq.s32.totalorder %s39, 1
      %p408 = por %p406, %p407
      %p410 = scmp.ne.s32.totalorder %s393, %s409
      %p411 = scmp.eq.s32.totalorder %s39, 0
      %p412 = por %p410, %p411
      %p413 = scmp.le.s32.totalorder 1, %s33
      %p414 = scmp.lt.s32.totalorder %s33, 3
      %p415 = pnand %p413, %p414
      %p416 = pneg %p415
      // Predicated region
      $region9: #{tpu_custom_call.1} parent=5 // pred_check
        _
      $region10: #{tpu_custom_call.1} parent=5 // pred_check_branch
        %418 = sbr.rel (%p415) target = $region12
      $region11: #{tpu_custom_call.1} parent=5 // pred_region
        %s419 = ssub.s32 %s33, 1
        // Predicated region
        $region13: #{tpu_custom_call.1} parent=11 // pred_check
          %p420 = pneg %p106
        $region14: #{tpu_custom_call.1} parent=11 // pred_check_branch
          %422 = sbr.rel (%p420) target = $region16
        $region15: #{tpu_custom_call.1} parent=11 // pred_region
          _
        $region16: #{tpu_custom_call.1} parent=11 // pred_fallthru
          _
        // Predicated region
        $region17: #{tpu_custom_call.1} parent=11 // pred_check
          %p423 = pneg %p127
        $region18: #{tpu_custom_call.1} parent=11 // pred_check_branch
          %425 = sbr.rel (%p423) target = $region20
        $region19: #{tpu_custom_call.1} parent=11 // pred_region
          _
        $region20: #{tpu_custom_call.1} parent=11 // pred_fallthru
          _
        // Predicated region
        $region21: #{tpu_custom_call.1} parent=11 // pred_check
          %p426 = pneg %p148
        $region22: #{tpu_custom_call.1} parent=11 // pred_check_branch
          %428 = sbr.rel (%p426) target = $region24
        $region23: #{tpu_custom_call.1} parent=11 // pred_region
          _
        $region24: #{tpu_custom_call.1} parent=11 // pred_fallthru
          _
        // Predicated region
        $region25: #{tpu_custom_call.1} parent=11 // pred_check
          %p429 = pneg %p169
        $region26: #{tpu_custom_call.1} parent=11 // pred_check_branch
          %431 = sbr.rel (%p429) target = $region28
        $region27: #{tpu_custom_call.1} parent=11 // pred_region
          _
        $region28: #{tpu_custom_call.1} parent=11 // pred_fallthru
          _
        // Predicated region
        $region29: #{tpu_custom_call.1} parent=11 // pred_check
          %p432 = pneg %p190
        $region30: #{tpu_custom_call.1} parent=11 // pred_check_branch
          %434 = sbr.rel (%p432) target = $region32
        $region31: #{tpu_custom_call.1} parent=11 // pred_region
          _
        $region32: #{tpu_custom_call.1} parent=11 // pred_fallthru
          _
        // Predicated region
        $region33: #{tpu_custom_call.1} parent=11 // pred_check
          %p435 = pneg %p211
        $region34: #{tpu_custom_call.1} parent=11 // pred_check_branch
          %437 = sbr.rel (%p435) target = $region36
        $region35: #{tpu_custom_call.1} parent=11 // pred_region
          _
        $region36: #{tpu_custom_call.1} parent=11 // pred_fallthru
          _
        // Predicated region
        $region37: #{tpu_custom_call.1} parent=11 // pred_check
          %p438 = pneg %p232
        $region38: #{tpu_custom_call.1} parent=11 // pred_check_branch
          %440 = sbr.rel (%p438) target = $region40
        $region39: #{tpu_custom_call.1} parent=11 // pred_region
          %s442 = ssub.s32 2048, 2048
          %443 = vsyncadd [#allocation7], %s442
          %s444 = sshll.u32 [#allocation8], 4
          %s445 = int_to_ptr.vmem [resolvable:$true] %s444
          %450 = dma.hbm_to_vmem [thread:$0]  %s8, 2048, %s445, [#allocation7], 128, 128, 8
        $region40: #{tpu_custom_call.1} parent=11 // pred_fallthru
          _
        // Predicated region
        $region41: #{tpu_custom_call.1} parent=11 // pred_check
          %p451 = pneg %p253
        $region42: #{tpu_custom_call.1} parent=11 // pred_check_branch
          %453 = sbr.rel (%p451) target = $region44
        $region43: #{tpu_custom_call.1} parent=11 // pred_region
          %s455 = ssub.s32 4096, 4096
          %456 = vsyncadd [#allocation10], %s455
          %s457 = sshll.u32 [#allocation9], 4
          %s458 = int_to_ptr.vmem [resolvable:$true] %s457
          %463 = dma.hbm_to_vmem [thread:$0]  %s9, 4096, %s458, [#allocation10], 256, 256, 16
        $region44: #{tpu_custom_call.1} parent=11 // pred_fallthru
          _
        // Predicated region
        $region45: #{tpu_custom_call.1} parent=11 // pred_check
          %p464 = pneg %p274
        $region46: #{tpu_custom_call.1} parent=11 // pred_check_branch
          %466 = sbr.rel (%p464) target = $region48
        $region47: #{tpu_custom_call.1} parent=11 // pred_region
          _
        $region48: #{tpu_custom_call.1} parent=11 // pred_fallthru
          _
        // Predicated region
        $region49: #{tpu_custom_call.1} parent=11 // pred_check
          %p467 = pneg %p295
        $region50: #{tpu_custom_call.1} parent=11 // pred_check_branch
          %469 = sbr.rel (%p467) target = $region52
        $region51: #{tpu_custom_call.1} parent=11 // pred_region
          _
        $region52: #{tpu_custom_call.1} parent=11 // pred_fallthru
          _
        // Predicated region
        $region53: #{tpu_custom_call.1} parent=11 // pred_check
          %p470 = pneg %p316
        $region54: #{tpu_custom_call.1} parent=11 // pred_check_branch
          %472 = sbr.rel (%p470) target = $region56
        $region55: #{tpu_custom_call.1} parent=11 // pred_region
          %s474 = ssub.s32 8192, 8192
          %475 = vsyncadd [#allocation10], %s474
          %s476 = sshll.u32 [#allocation11], 4
          %s477 = int_to_ptr.vmem [resolvable:$true] %s476
          %482 = dma.hbm_to_vmem [thread:$0]  %s12, 8192, %s477, [#allocation10], 512, 512, 32
        $region56: #{tpu_custom_call.1} parent=11 // pred_fallthru
          _
        // Predicated region
        $region57: #{tpu_custom_call.1} parent=11 // pred_check
          %p483 = pneg %p337
        $region58: #{tpu_custom_call.1} parent=11 // pred_check_branch
          %485 = sbr.rel (%p483) target = $region60
        $region59: #{tpu_custom_call.1} parent=11 // pred_region
          _
        $region60: #{tpu_custom_call.1} parent=11 // pred_fallthru
          _
        // Predicated region
        $region61: #{tpu_custom_call.1} parent=11 // pred_check
          %p486 = pneg %p358
        $region62: #{tpu_custom_call.1} parent=11 // pred_check_branch
          %488 = sbr.rel (%p486) target = $region64
        $region63: #{tpu_custom_call.1} parent=11 // pred_region
          %s490 = ssub.s32 8192, 8192
          %491 = vsyncadd [#allocation13], %s490
          %s492 = sshll.u32 [#allocation12], 4
          %s493 = int_to_ptr.vmem [resolvable:$true] %s492
          %498 = dma.hbm_to_vmem [thread:$0]  %s14, 8192, %s493, [#allocation13], 128, 128, 8
        $region64: #{tpu_custom_call.1} parent=11 // pred_fallthru
          _
        // Predicated region
        $region65: #{tpu_custom_call.1} parent=11 // pred_check
          %p499 = pneg %p379
        $region66: #{tpu_custom_call.1} parent=11 // pred_check_branch
          %501 = sbr.rel (%p499) target = $region68
        $region67: #{tpu_custom_call.1} parent=11 // pred_region
          _
        $region68: #{tpu_custom_call.1} parent=11 // pred_fallthru
          _
      $region12: #{tpu_custom_call.1} parent=5 // pred_fallthru
        _
      %p502 = scmp.lt.s32.totalorder %s33, 2
      // Predicated region
      $region69: #{tpu_custom_call.1} parent=5 // pred_check
        %p503 = pneg %p502
      $region70: #{tpu_custom_call.1} parent=5 // pred_check_branch
        %505 = sbr.rel (%p503) target = $region72
      $region71: #{tpu_custom_call.1} parent=5 // pred_region
        // Predicated region
        $region73: #{tpu_custom_call.1} parent=71 // pred_check
          %p506 = pneg %p53
        $region74: #{tpu_custom_call.1} parent=71 // pred_check_branch
          %508 = sbr.rel (%p506) target = $region76
        $region75: #{tpu_custom_call.1} parent=71 // pred_region
          %s509 = sand.u32 %s43, 1
          %s510 = scalar_lea.sflag [#allocation4], %s509
          %s511 = sand.u32 %s43, 1
          %s512 = smul.addr %s511, 8
          %s513 = scalar_lea.vmem [#allocation3], %s512
          %s515 = ssub.s32 128, 128
          %516 = vsyncadd %s510, %s515
          %s517 = smul.addr %s33, 128
          %s518 = scalar_lea.hbm %s0, %s517
          %s520 = sshll.u32 %s513, 4
          %s521 = int_to_ptr.vmem [resolvable:$true] %s520
          %523 = dma.hbm_to_vmem [thread:$0]  %s518, 128, %s521, %s510
        $region76: #{tpu_custom_call.1} parent=71 // pred_fallthru
          _
        // Predicated region
        $region77: #{tpu_custom_call.1} parent=71 // pred_check
          %p524 = pneg %p79
        $region78: #{tpu_custom_call.1} parent=71 // pred_check_branch
          %526 = sbr.rel (%p524) target = $region80
        $region79: #{tpu_custom_call.1} parent=71 // pred_region
          %s527 = sand.u32 %s33, 1
          %s528 = scalar_lea.sflag [#allocation7], %s527
          %s529 = sand.u32 %s69, 1
          %s530 = smul.addr %s529, 16
          %s531 = scalar_lea.vmem [#allocation6], %s530
          %s533 = ssub.s32 256, 256
          %534 = vsyncadd %s528, %s533
          %s535 = smul.addr %s33, 2
          %s536 = smul.addr %s535, 128
          %s537 = scalar_lea.hbm %s1, %s536
          %s538 = sshll.u32 %s531, 4
          %s539 = int_to_ptr.vmem [resolvable:$true] %s538
          %544 = dma.hbm_to_vmem [thread:$0]  %s537, 256, %s539, %s528, 128, 128, 8
        $region80: #{tpu_custom_call.1} parent=71 // pred_fallthru
          _
      $region72: #{tpu_custom_call.1} parent=5 // pred_fallthru
        _
      %p545 = scmp.le.s32.totalorder 1, %s33
      %p546 = scmp.lt.s32.totalorder %s33, 3
      %p547 = pnand %p545, %p546
      %p548 = pneg %p547
      // Predicated region
      $region81: #{tpu_custom_call.1} parent=5 // pred_check
        _
      $region82: #{tpu_custom_call.1} parent=5 // pred_check_branch
        %550 = sbr.rel (%p547) target = $region84
      $region83: #{tpu_custom_call.1} parent=5 // pred_region
        %s551 = ssub.s32 %s33, 1
        %s552 = sand.u32 %s46, 1
        %s553 = scalar_lea.sflag [#allocation4], %s552
        %s554 = sand.u32 %s46, 1
        %s555 = smul.addr %s554, 8
        %s556 = scalar_lea.vmem [#allocation3], %s555
        // Predicated region
        $region85: #{tpu_custom_call.1} parent=83 // pred_check
          %p557 = pneg %p59
        $region86: #{tpu_custom_call.1} parent=83 // pred_check_branch
          %559 = sbr.rel (%p557) target = $region88
        $region87: #{tpu_custom_call.1} parent=83 // pred_region
          %560 = dma.done %s553, 128
        $region88: #{tpu_custom_call.1} parent=83 // pred_fallthru
          _
        %s561 = sand.u32 %s38, 1
        %s562 = scalar_lea.sflag [#allocation7], %s561
        %s563 = sand.u32 %s72, 1
        %s564 = smul.addr %s563, 16
        %s565 = scalar_lea.vmem [#allocation6], %s564
        // Predicated region
        $region89: #{tpu_custom_call.1} parent=83 // pred_check
          %p566 = pneg %p85
        $region90: #{tpu_custom_call.1} parent=83 // pred_check_branch
          %568 = sbr.rel (%p566) target = $region92
        $region91: #{tpu_custom_call.1} parent=83 // pred_region
          %569 = dma.done %s562, 256
        $region92: #{tpu_custom_call.1} parent=83 // pred_fallthru
          _
        // Predicated region
        $region93: #{tpu_custom_call.1} parent=83 // pred_check
          %p570 = pneg %p232
        $region94: #{tpu_custom_call.1} parent=83 // pred_check_branch
          %572 = sbr.rel (%p570) target = $region96
        $region95: #{tpu_custom_call.1} parent=83 // pred_region
          %573 = dma.done [#allocation7], 2048
        $region96: #{tpu_custom_call.1} parent=83 // pred_fallthru
          _
        // Predicated region
        $region97: #{tpu_custom_call.1} parent=83 // pred_check
          %p574 = pneg %p253
        $region98: #{tpu_custom_call.1} parent=83 // pred_check_branch
          %576 = sbr.rel (%p574) target = $region100
        $region99: #{tpu_custom_call.1} parent=83 // pred_region
          %577 = dma.done [#allocation10], 4096
        $region100: #{tpu_custom_call.1} parent=83 // pred_fallthru
          _
        // Predicated region
        $region101: #{tpu_custom_call.1} parent=83 // pred_check
          %p578 = pneg %p316
        $region102: #{tpu_custom_call.1} parent=83 // pred_check_branch
          %580 = sbr.rel (%p578) target = $region104
        $region103: #{tpu_custom_call.1} parent=83 // pred_region
          %581 = dma.done [#allocation10], 8192
        $region104: #{tpu_custom_call.1} parent=83 // pred_fallthru
          _
        // Predicated region
        $region105: #{tpu_custom_call.1} parent=83 // pred_check
          %p582 = pneg %p358
        $region106: #{tpu_custom_call.1} parent=83 // pred_check_branch
          %584 = sbr.rel (%p582) target = $region108
        $region107: #{tpu_custom_call.1} parent=83 // pred_region
          %585 = dma.done [#allocation13], 8192
        $region108: #{tpu_custom_call.1} parent=83 // pred_fallthru
          _
        %s586 = sand.u32 %s46, 1
        %s587 = scalar_lea.sflag [#allocation4], %s586
        %s588 = sand.u32 %s46, 1
        %s589 = smul.addr %s588, 8
        %s590 = scalar_lea.vmem [#allocation3], %s589
        %p591 = pneg %p59
        %p592 = pneg %p56
        %s593 = sand.u32 %s38, 1
        %s594 = scalar_lea.sflag [#allocation7], %s593
        %s595 = sand.u32 %s72, 1
        %s596 = smul.addr %s595, 16
        %s597 = scalar_lea.vmem [#allocation6], %s596
        %p598 = pneg %p85
        %p599 = pneg %p82
        %p600 = pneg %p106
        %p601 = pneg %p103
        %p602 = pneg %p127
        %p603 = pneg %p124
        %p604 = pneg %p148
        %p605 = pneg %p145
        %p606 = pneg %p169
        %p607 = pneg %p166
        %p608 = pneg %p190
        %p609 = pneg %p187
        %p610 = pneg %p211
        %p611 = pneg %p208
        %p612 = pneg %p232
        %p613 = pneg %p229
        %p614 = pneg %p253
        %p615 = pneg %p250
        %p616 = pneg %p274
        %p617 = pneg %p271
        %p618 = pneg %p295
        %p619 = pneg %p292
        %p620 = pneg %p316
        %p621 = pneg %p313
        %p622 = pneg %p337
        %p623 = pneg %p334
        %p624 = pneg %p358
        %p625 = pneg %p355
        %p626 = pneg %p379
        %p627 = pneg %p376
        %p628 = pneg %p405
        %p629 = pneg %p402
        %s630 = sand.u32 %s392, 1
        %s631 = scalar_lea.sflag [#allocation5], %s630
        %s632 = sand.u32 %s392, 1
        %s633 = smul.addr %s632, 8
        %s634 = scalar_lea.vmem [#allocation14], %s633
        %v635 = vld [vmem:[%s556] sm:$0xff]
        %v636 = vld [vmem:[%s565] sm:$0xff]
        %v637 = vld [vmem:[%s565 + $0x8] sm:$0xff]
        %v638 = vld [vmem:[%s2] sm:$0x1]
        %v639 = vld [vmem:[%s3] sm:$0x1]
        %640 = vadd.xlane.f32.xlu0 %v635
        %v641 = vpop.xlane.xlu0 %640
        %v642 = vrcp.pop 128.0
        %v643 = vmul.f32 %v641, %v642
        %v644 = vsub.f32 %v635, %v643
        %v645 = vmul.f32 %v644, %v644
        %646 = vadd.xlane.f32.xlu0 %v645
        %v647 = vpop.xlane.xlu0 %646
        %v648 = vmul.f32 %v647, %v642
        %v649 = vadd.f32 %v648, 1e-05
        %v650 = vrsqrt.pop %v649
        %v651 = vmul.f32 %v644, %v650
        %v653 = vlaneseq
        %v654 = vshrl.u32 %v653, 7
        %v655 = vsub.s32 0, %v654
        %v656 = vrot.slane %v638, %v655
        %v658 = vmul.f32 %v651, %v656
        %v660 = vlaneseq
        %v661 = vshrl.u32 %v660, 7
        %v662 = vsub.s32 0, %v661
        %v663 = vrot.slane %v639, %v662
        %v665 = vadd.f32 %v658, %v663
        %v666 = vld [vmem:[%s4] sm:$0x1]
        %v667 = vld [vmem:[%s5] sm:$0x1]
        %668 = vadd.xlane.f32.xlu0 %v636
        %v669 = vpop.xlane.xlu0 %668
        %670 = vadd.xlane.f32.xlu0 %v637
        %v671 = vpop.xlane.xlu0 %670
        %v672 = vmul.f32 %v669, %v642
        %v673 = vmul.f32 %v671, %v642
        %v674 = vsub.f32 %v636, %v672
        %v675 = vsub.f32 %v637, %v673
        %v676 = vmul.f32 %v674, %v674
        %v677 = vmul.f32 %v675, %v675
        %678 = vadd.xlane.f32.xlu0 %v676
        %v679 = vpop.xlane.xlu0 %678
        %680 = vadd.xlane.f32.xlu0 %v677
        %v681 = vpop.xlane.xlu0 %680
        %v682 = vmul.f32 %v679, %v642
        %v683 = vmul.f32 %v681, %v642
        %v684 = vadd.f32 %v682, 1e-05
        %v685 = vadd.f32 %v683, 1e-05
        %v686 = vrsqrt.pop %v684
        %v687 = vrsqrt.pop %v685
        %v688 = vmul.f32 %v674, %v686
        %v689 = vmul.f32 %v675, %v687
        %v691 = vlaneseq
        %v692 = vshrl.u32 %v691, 7
        %v693 = vsub.s32 0, %v692
        %v694 = vrot.slane %v666, %v693
        %v696 = vmul.f32 %v688, %v694
        %v697 = vmul.f32 %v689, %v694
        %v699 = vlaneseq
        %v700 = vshrl.u32 %v699, 7
        %v701 = vsub.s32 0, %v700
        %v702 = vrot.slane %v667, %v701
        %v704 = vadd.f32 %v696, %v702
        %v705 = vadd.f32 %v697, %v702
        %v706 = vld [vmem:[#allocation8] sm:$0xff]
        %v707 = vld [vmem:[#allocation8 + $0x8] sm:$0xff]
        %v708 = vld [vmem:[#allocation8 + $0x10] sm:$0xff]
        %v709 = vld [vmem:[#allocation8 + $0x18] sm:$0xff]
        %v710 = vld [vmem:[#allocation8 + $0x20] sm:$0xff]
        %v711 = vld [vmem:[#allocation8 + $0x28] sm:$0xff]
        %v712 = vld [vmem:[#allocation8 + $0x30] sm:$0xff]
        %v713 = vld [vmem:[#allocation8 + $0x38] sm:$0xff]
        %v714 = vld [vmem:[#allocation8 + $0x40] sm:$0xff]
        %v715 = vld [vmem:[#allocation8 + $0x48] sm:$0xff]
        %v716 = vld [vmem:[#allocation8 + $0x50] sm:$0xff]
        %v717 = vld [vmem:[#allocation8 + $0x58] sm:$0xff]
        %v718 = vld [vmem:[#allocation8 + $0x60] sm:$0xff]
        %v719 = vld [vmem:[#allocation8 + $0x68] sm:$0xff]
        %v720 = vld [vmem:[#allocation8 + $0x70] sm:$0xff]
        %v721 = vld [vmem:[#allocation8 + $0x78] sm:$0xff]
        %v722 = vld [vmem:[%s10] sm:$0x1]
        %v724 = vlaneseq
        %v725 = vshrl.u32 %v724, 7
        %v726 = vsub.s32 0, %v725
        %v727 = vrot.slane %v722, %v726
        %729 = vmatprep.subr.mxu0 0.0
        %730 = vmatpush1.msra.mxu0 %v706
        %731 = vmatprep.subr.mxu0 0.0
        %732 = vmatpush1.msra.mxu0 %v707
        %733 = vmatprep.subr.mxu0 0.0
        %734 = vmatpush1.msra.mxu0 %v708
        %735 = vmatprep.subr.mxu0 0.0
        %736 = vmatpush1.msra.mxu0 %v709
        %737 = vmatprep.subr.mxu0 0.0
        %738 = vmatpush1.msra.mxu0 %v710
        %739 = vmatprep.subr.mxu0 0.0
        %740 = vmatpush1.msra.mxu0 %v711
        %741 = vmatprep.subr.mxu0 0.0
        %742 = vmatpush1.msra.mxu0 %v712
        %743 = vmatprep.subr.mxu0 0.0
        %744 = vmatpush1.msra.mxu0 %v713
        %745 = vmatprep.subr.mxu0 0.0
        %746 = vmatpush1.msra.mxu0 %v714
        %747 = vmatprep.subr.mxu0 0.0
        %748 = vmatpush1.msra.mxu0 %v715
        %749 = vmatprep.subr.mxu0 0.0
        %750 = vmatpush1.msra.mxu0 %v716
        %751 = vmatprep.subr.mxu0 0.0
        %752 = vmatpush1.msra.mxu0 %v717
        %753 = vmatprep.subr.mxu0 0.0
        %754 = vmatpush1.msra.mxu0 %v718
        %755 = vmatprep.subr.mxu0 0.0
        %756 = vmatpush1.msra.mxu0 %v719
        %757 = vmatprep.subr.mxu0 0.0
        %758 = vmatpush1.msra.mxu0 %v720
        %759 = vmatprep.subr.mxu0 0.0
        %760 = vmatpush1.msra.mxu0 %v721
        %761 = vmatprep.subr.mxu0 0.0
        %762 = vmatpush1.msra.mxu0 0.0
        %763 = vmatprep.subr.mxu0 0.0
        %764 = vmatpush1.msra.mxu0 0.0
        %765 = vmatprep.subr.mxu0 0.0
        %766 = vmatpush1.msra.mxu0 0.0
        %767 = vmatprep.subr.mxu0 0.0
        %768 = vmatpush1.msra.mxu0 0.0
        %769 = vmatprep.subr.mxu0 0.0
        %770 = vmatpush1.msra.mxu0 0.0
        %771 = vmatprep.subr.mxu0 0.0
        %772 = vmatpush1.msra.mxu0 0.0
        %773 = vmatprep.subr.mxu0 0.0
        %774 = vmatpush1.msra.mxu0 0.0
        %775 = vmatprep.subr.mxu0 0.0
        %776 = vmatpush1.msra.mxu0 0.0
        %777 = vmatprep.subr.mxu0 0.0
        %778 = vmatpush1.msra.mxu0 0.0
        %779 = vmatprep.subr.mxu0 0.0
        %780 = vmatpush1.msra.mxu0 0.0
        %781 = vmatprep.subr.mxu0 0.0
        %782 = vmatpush1.msra.mxu0 0.0
        %783 = vmatprep.subr.mxu0 0.0
        %784 = vmatpush1.msra.mxu0 0.0
        %785 = vmatprep.subr.mxu0 0.0
        %786 = vmatpush1.msra.mxu0 0.0
        %787 = vmatprep.subr.mxu0 0.0
        %788 = vmatpush1.msra.mxu0 0.0
        %789 = vmatprep.subr.mxu0 0.0
        %790 = vmatpush1.msra.mxu0 0.0
        %791 = vmatprep.subr.mxu0 0.0
        %792 = vmatpush1.msra.mxu0 0.0
        %793 = vmatprep.mubr.f32.mxu0 0.0
        %794 = vmatmul.mubr.f32.gmra.mrb[0].mxu0 %v665
        %v795 = vpop.f32.mrb[0].mxu0
        %v796 = vadd.f32 %v727, %v795
        %v797 = vpop.f32.mrb[0].mxu0
        %798 = vdwg.mxu0
        %v799 = vld [vmem:[#allocation9] sm:$0xff]
        %v800 = vld [vmem:[#allocation9 + $0x8] sm:$0xff]
        %v801 = vld [vmem:[#allocation9 + $0x10] sm:$0xff]
        %v802 = vld [vmem:[#allocation9 + $0x18] sm:$0xff]
        %v803 = vld [vmem:[#allocation9 + $0x20] sm:$0xff]
        %v804 = vld [vmem:[#allocation9 + $0x28] sm:$0xff]
        %v805 = vld [vmem:[#allocation9 + $0x30] sm:$0xff]
        %v806 = vld [vmem:[#allocation9 + $0x38] sm:$0xff]
        %v807 = vld [vmem:[#allocation9 + $0x40] sm:$0xff]
        %v808 = vld [vmem:[#allocation9 + $0x48] sm:$0xff]
        %v809 = vld [vmem:[#allocation9 + $0x50] sm:$0xff]
        %v810 = vld [vmem:[#allocation9 + $0x58] sm:$0xff]
        %v811 = vld [vmem:[#allocation9 + $0x60] sm:$0xff]
        %v812 = vld [vmem:[#allocation9 + $0x68] sm:$0xff]
        %v813 = vld [vmem:[#allocation9 + $0x70] sm:$0xff]
        %v814 = vld [vmem:[#allocation9 + $0x78] sm:$0xff]
        %v815 = vld [vmem:[#allocation9 + $0x80] sm:$0xff]
        %v816 = vld [vmem:[#allocation9 + $0x88] sm:$0xff]
        %v817 = vld [vmem:[#allocation9 + $0x90] sm:$0xff]
        %v818 = vld [vmem:[#allocation9 + $0x98] sm:$0xff]
        %v819 = vld [vmem:[#allocation9 + $0xa0] sm:$0xff]
        %v820 = vld [vmem:[#allocation9 + $0xa8] sm:$0xff]
        %v821 = vld [vmem:[#allocation9 + $0xb0] sm:$0xff]
        %v822 = vld [vmem:[#allocation9 + $0xb8] sm:$0xff]
        %v823 = vld [vmem:[#allocation9 + $0xc0] sm:$0xff]
        %v824 = vld [vmem:[#allocation9 + $0xc8] sm:$0xff]
        %v825 = vld [vmem:[#allocation9 + $0xd0] sm:$0xff]
        %v826 = vld [vmem:[#allocation9 + $0xd8] sm:$0xff]
        %v827 = vld [vmem:[#allocation9 + $0xe0] sm:$0xff]
        %v828 = vld [vmem:[#allocation9 + $0xe8] sm:$0xff]
        %v829 = vld [vmem:[#allocation9 + $0xf0] sm:$0xff]
        %v830 = vld [vmem:[#allocation9 + $0xf8] sm:$0xff]
        %v831 = vld [vmem:[%s11] sm:$0x3]
        %v833 = vlaneseq
        %v834 = vshrl.u32 %v833, 7
        %v835 = vsub.s32 0, %v834
        %v836 = vrot.slane %v831, %v835
        %v837 = vlaneseq
        %v838 = vshrl.u32 %v837, 7
        %v839 = vsub.s32 1, %v838
        %v840 = vrot.slane %v831, %v839
        %843 = vmatprep.subr.mxu0 %v800
        %844 = vmatpush1.msra.mxu0 %v799
        %845 = vmatprep.subr.mxu0 %v802
        %846 = vmatpush1.msra.mxu0 %v801
        %847 = vmatprep.subr.mxu0 %v804
        %848 = vmatpush1.msra.mxu0 %v803
        %849 = vmatprep.subr.mxu0 %v806
        %850 = vmatpush1.msra.mxu0 %v805
        %851 = vmatprep.subr.mxu0 %v808
        %852 = vmatpush1.msra.mxu0 %v807
        %853 = vmatprep.subr.mxu0 %v810
        %854 = vmatpush1.msra.mxu0 %v809
        %855 = vmatprep.subr.mxu0 %v812
        %856 = vmatpush1.msra.mxu0 %v811
        %857 = vmatprep.subr.mxu0 %v814
        %858 = vmatpush1.msra.mxu0 %v813
        %859 = vmatprep.subr.mxu0 %v816
        %860 = vmatpush1.msra.mxu0 %v815
        %861 = vmatprep.subr.mxu0 %v818
        %862 = vmatpush1.msra.mxu0 %v817
        %863 = vmatprep.subr.mxu0 %v820
        %864 = vmatpush1.msra.mxu0 %v819
        %865 = vmatprep.subr.mxu0 %v822
        %866 = vmatpush1.msra.mxu0 %v821
        %867 = vmatprep.subr.mxu0 %v824
        %868 = vmatpush1.msra.mxu0 %v823
        %869 = vmatprep.subr.mxu0 %v826
        %870 = vmatpush1.msra.mxu0 %v825
        %871 = vmatprep.subr.mxu0 %v828
        %872 = vmatpush1.msra.mxu0 %v827
        %873 = vmatprep.subr.mxu0 %v830
        %874 = vmatpush1.msra.mxu0 %v829
        %875 = vmatprep.subr.mxu0 0.0
        %876 = vmatpush1.msra.mxu0 0.0
        %877 = vmatprep.subr.mxu0 0.0
        %878 = vmatpush1.msra.mxu0 0.0
        %879 = vmatprep.subr.mxu0 0.0
        %880 = vmatpush1.msra.mxu0 0.0
        %881 = vmatprep.subr.mxu0 0.0
        %882 = vmatpush1.msra.mxu0 0.0
        %883 = vmatprep.subr.mxu0 0.0
        %884 = vmatpush1.msra.mxu0 0.0
        %885 = vmatprep.subr.mxu0 0.0
        %886 = vmatpush1.msra.mxu0 0.0
        %887 = vmatprep.subr.mxu0 0.0
        %888 = vmatpush1.msra.mxu0 0.0
        %889 = vmatprep.subr.mxu0 0.0
        %890 = vmatpush1.msra.mxu0 0.0
        %891 = vmatprep.subr.mxu0 0.0
        %892 = vmatpush1.msra.mxu0 0.0
        %893 = vmatprep.subr.mxu0 0.0
        %894 = vmatpush1.msra.mxu0 0.0
        %895 = vmatprep.subr.mxu0 0.0
        %896 = vmatpush1.msra.mxu0 0.0
        %897 = vmatprep.subr.mxu0 0.0
        %898 = vmatpush1.msra.mxu0 0.0
        %899 = vmatprep.subr.mxu0 0.0
        %900 = vmatpush1.msra.mxu0 0.0
        %901 = vmatprep.subr.mxu0 0.0
        %902 = vmatpush1.msra.mxu0 0.0
        %903 = vmatprep.subr.mxu0 0.0
        %904 = vmatpush1.msra.mxu0 0.0
        %905 = vmatprep.subr.mxu0 0.0
        %906 = vmatpush1.msra.mxu0 0.0
        %907 = vmatprep.mubr.f32.mxu0 0.0
        %908 = vmatmul.mubr.f32.gmra.mrb[0].mxu0 %v704
        %v909 = vpop.f32.mrb[0].mxu0
        %v910 = vadd.f32 %v836, %v909
        %v911 = vpop.f32.mrb[0].mxu0
        %v912 = vadd.f32 %v840, %v911
        %913 = vmatprep.mubr.f32.mxu0 0.0
        %914 = vmatmul.mubr.f32.gmra.mrb[0].mxu0 %v705
        %v915 = vpop.f32.mrb[0].mxu0
        %v916 = vadd.f32 %v836, %v915
        %v917 = vpop.f32.mrb[0].mxu0
        %v918 = vadd.f32 %v840, %v917
        %919 = vdwg.mxu0
        %vm920 = vcmask 523264
        %v922 = vsel %vm920, %v796, 0
        %v925 = vsel %vm920, %v910, 0
        %v928 = vsel %vm920, %v916, 0
        %930 = vmatprep.subr.mxu0 0.0
        %931 = vmatpush1.xpose.msra.mxu0 %v925
        %932 = vmatprep.subr.mxu0 0.0
        %933 = vmatpush1.xpose.msra.mxu0 %v928
        %934 = vmatprep.subr.mxu0 0.0
        %935 = vmatpush1.xpose.msra.mxu0 0.0
        %936 = vmatprep.subr.mxu0 0.0
        %937 = vmatpush1.xpose.msra.mxu0 0.0
        %938 = vmatprep.subr.mxu0 0.0
        %939 = vmatpush1.xpose.msra.mxu0 0.0
        %940 = vmatprep.subr.mxu0 0.0
        %941 = vmatpush1.xpose.msra.mxu0 0.0
        %942 = vmatprep.subr.mxu0 0.0
        %943 = vmatpush1.xpose.msra.mxu0 0.0
        %944 = vmatprep.subr.mxu0 0.0
        %945 = vmatpush1.xpose.msra.mxu0 0.0
        %946 = vmatprep.subr.mxu0 0.0
        %947 = vmatpush1.xpose.msra.mxu0 0.0
        %948 = vmatprep.subr.mxu0 0.0
        %949 = vmatpush1.xpose.msra.mxu0 0.0
        %950 = vmatprep.subr.mxu0 0.0
        %951 = vmatpush1.xpose.msra.mxu0 0.0
        %952 = vmatprep.subr.mxu0 0.0
        %953 = vmatpush1.xpose.msra.mxu0 0.0
        %954 = vmatprep.subr.mxu0 0.0
        %955 = vmatpush1.xpose.msra.mxu0 0.0
        %956 = vmatprep.subr.mxu0 0.0
        %957 = vmatpush1.xpose.msra.mxu0 0.0
        %958 = vmatprep.subr.mxu0 0.0
        %959 = vmatpush1.xpose.msra.mxu0 0.0
        %960 = vmatprep.subr.mxu0 0.0
        %961 = vmatpush1.xpose.msra.mxu0 0.0
        %962 = vmatprep.subr.mxu0 0.0
        %963 = vmatpush1.xpose.msra.mxu0 0.0
        %964 = vmatprep.subr.mxu0 0.0
        %965 = vmatpush1.xpose.msra.mxu0 0.0
        %966 = vmatprep.subr.mxu0 0.0
        %967 = vmatpush1.xpose.msra.mxu0 0.0
        %968 = vmatprep.subr.mxu0 0.0
        %969 = vmatpush1.xpose.msra.mxu0 0.0
        %970 = vmatprep.subr.mxu0 0.0
        %971 = vmatpush1.xpose.msra.mxu0 0.0
        %972 = vmatprep.subr.mxu0 0.0
        %973 = vmatpush1.xpose.msra.mxu0 0.0
        %974 = vmatprep.subr.mxu0 0.0
        %975 = vmatpush1.xpose.msra.mxu0 0.0
        %976 = vmatprep.subr.mxu0 0.0
        %977 = vmatpush1.xpose.msra.mxu0 0.0
        %978 = vmatprep.subr.mxu0 0.0
        %979 = vmatpush1.xpose.msra.mxu0 0.0
        %980 = vmatprep.subr.mxu0 0.0
        %981 = vmatpush1.xpose.msra.mxu0 0.0
        %982 = vmatprep.subr.mxu0 0.0
        %983 = vmatpush1.xpose.msra.mxu0 0.0
        %984 = vmatprep.subr.mxu0 0.0
        %985 = vmatpush1.xpose.msra.mxu0 0.0
        %986 = vmatprep.subr.mxu0 0.0
        %987 = vmatpush1.xpose.msra.mxu0 0.0
        %988 = vmatprep.subr.mxu0 0.0
        %989 = vmatpush1.xpose.msra.mxu0 0.0
        %990 = vmatprep.subr.mxu0 0.0
        %991 = vmatpush1.xpose.msra.mxu0 0.0
        %992 = vmatprep.subr.mxu0 0.0
        %993 = vmatpush1.xpose.msra.mxu0 0.0
        %994 = vmatprep.mubr.f32.mxu0 0.0
        %995 = vmatmul.mubr.f32.gmra.mrb[0].mxu0 %v922
        %v996 = vpop.f32.mrb[0].mxu0
        %v997 = vadd.f32 0.0, %v996
        %v998 = vpop.f32.mrb[0].mxu0
        %999 = vdwg.mxu0
        %vm1000 = vcmask 130048
        %v1001 = vsel %vm1000, %v997, -inf
        %1002 = vmax.xlane.f32.xlu0 %v1001
        %v1003 = vpop.xlane.xlu0 %1002
        %v1004 = vsub.f32 %v997, %v1003
        %v1005 = vmul.f32 %v1004, 1.442695
        %v1006 = vpow.pop %v1005
        %v1007 = vsel %vm1000, %v1006, 0.0
        %1008 = vadd.xlane.f32.xlu0 %v1007
        %v1009 = vpop.xlane.xlu0 %1008
        %v1010 = vrcp.pop %v1009
        %v1011 = vmul.f32 %v1006, %v1010
        %v1013 = vsel %vm1000, %v1011, 0
        %1015 = vmatprep.subr.mxu0 0.0
        %1016 = vmatpush1.msra.mxu0 %v912
        %1017 = vmatprep.subr.mxu0 0.0
        %1018 = vmatpush1.msra.mxu0 %v918
        %1019 = vmatprep.subr.mxu0 0.0
        %1020 = vmatpush1.msra.mxu0 0.0
        %1021 = vmatprep.subr.mxu0 0.0
        %1022 = vmatpush1.msra.mxu0 0.0
        %1023 = vmatprep.subr.mxu0 0.0
        %1024 = vmatpush1.msra.mxu0 0.0
        %1025 = vmatprep.subr.mxu0 0.0
        %1026 = vmatpush1.msra.mxu0 0.0
        %1027 = vmatprep.subr.mxu0 0.0
        %1028 = vmatpush1.msra.mxu0 0.0
        %1029 = vmatprep.subr.mxu0 0.0
        %1030 = vmatpush1.msra.mxu0 0.0
        %1031 = vmatprep.subr.mxu0 0.0
        %1032 = vmatpush1.msra.mxu0 0.0
        %1033 = vmatprep.subr.mxu0 0.0
        %1034 = vmatpush1.msra.mxu0 0.0
        %1035 = vmatprep.subr.mxu0 0.0
        %1036 = vmatpush1.msra.mxu0 0.0
        %1037 = vmatprep.subr.mxu0 0.0
        %1038 = vmatpush1.msra.mxu0 0.0
        %1039 = vmatprep.subr.mxu0 0.0
        %1040 = vmatpush1.msra.mxu0 0.0
        %1041 = vmatprep.subr.mxu0 0.0
        %1042 = vmatpush1.msra.mxu0 0.0
        %1043 = vmatprep.subr.mxu0 0.0
        %1044 = vmatpush1.msra.mxu0 0.0
        %1045 = vmatprep.subr.mxu0 0.0
        %1046 = vmatpush1.msra.mxu0 0.0
        %1047 = vmatprep.subr.mxu0 0.0
        %1048 = vmatpush1.msra.mxu0 0.0
        %1049 = vmatprep.subr.mxu0 0.0
        %1050 = vmatpush1.msra.mxu0 0.0
        %1051 = vmatprep.subr.mxu0 0.0
        %1052 = vmatpush1.msra.mxu0 0.0
        %1053 = vmatprep.subr.mxu0 0.0
        %1054 = vmatpush1.msra.mxu0 0.0
        %1055 = vmatprep.subr.mxu0 0.0
        %1056 = vmatpush1.msra.mxu0 0.0
        %1057 = vmatprep.subr.mxu0 0.0
        %1058 = vmatpush1.msra.mxu0 0.0
        %1059 = vmatprep.subr.mxu0 0.0
        %1060 = vmatpush1.msra.mxu0 0.0
        %1061 = vmatprep.subr.mxu0 0.0
        %1062 = vmatpush1.msra.mxu0 0.0
        %1063 = vmatprep.subr.mxu0 0.0
        %1064 = vmatpush1.msra.mxu0 0.0
        %1065 = vmatprep.subr.mxu0 0.0
        %1066 = vmatpush1.msra.mxu0 0.0
        %1067 = vmatprep.subr.mxu0 0.0
        %1068 = vmatpush1.msra.mxu0 0.0
        %1069 = vmatprep.subr.mxu0 0.0
        %1070 = vmatpush1.msra.mxu0 0.0
        %1071 = vmatprep.subr.mxu0 0.0
        %1072 = vmatpush1.msra.mxu0 0.0
        %1073 = vmatprep.subr.mxu0 0.0
        %1074 = vmatpush1.msra.mxu0 0.0
        %1075 = vmatprep.subr.mxu0 0.0
        %1076 = vmatpush1.msra.mxu0 0.0
        %1077 = vmatprep.subr.mxu0 0.0
        %1078 = vmatpush1.msra.mxu0 0.0
        %1079 = vmatprep.mubr.f32.mxu0 0.0
        %1080 = vmatmul.mubr.f32.gmra.mrb[0].mxu0 %v1013
        %v1081 = vpop.f32.mrb[0].mxu0
        %v1082 = vadd.f32 0.0, %v1081
        %v1083 = vpop.f32.mrb[0].mxu0
        %1084 = vdwg.mxu0
        %1085 = vst.msk [vmem:[#allocation2] sm:$0xff] %vm920, %v1082
        %1086 = vrot.lane.b32.xlu0 %v796, 64
        %v1087 = vpop.permute.xlu0 %1086
        %1088 = vrot.lane.b32.xlu0 %v910, 64
        %v1089 = vpop.permute.xlu0 %1088
        %1090 = vrot.lane.b32.xlu0 %v916, 64
        %v1091 = vpop.permute.xlu0 %1090
        %v1092 = vsel %vm920, %v1087, 0
        %v1094 = vsel %vm920, %v1089, 0
        %v1096 = vsel %vm920, %v1091, 0
        %1098 = vmatprep.subr.mxu0 0.0
        %1099 = vmatpush1.xpose.msra.mxu0 %v1094
        %1100 = vmatprep.subr.mxu0 0.0
        %1101 = vmatpush1.xpose.msra.mxu0 %v1096
        %1102 = vmatprep.subr.mxu0 0.0
        %1103 = vmatpush1.xpose.msra.mxu0 0.0
        %1104 = vmatprep.subr.mxu0 0.0
        %1105 = vmatpush1.xpose.msra.mxu0 0.0
        %1106 = vmatprep.subr.mxu0 0.0
        %1107 = vmatpush1.xpose.msra.mxu0 0.0
        %1108 = vmatprep.subr.mxu0 0.0
        %1109 = vmatpush1.xpose.msra.mxu0 0.0
        %1110 = vmatprep.subr.mxu0 0.0
        %1111 = vmatpush1.xpose.msra.mxu0 0.0
        %1112 = vmatprep.subr.mxu0 0.0
        %1113 = vmatpush1.xpose.msra.mxu0 0.0
        %1114 = vmatprep.subr.mxu0 0.0
        %1115 = vmatpush1.xpose.msra.mxu0 0.0
        %1116 = vmatprep.subr.mxu0 0.0
        %1117 = vmatpush1.xpose.msra.mxu0 0.0
        %1118 = vmatprep.subr.mxu0 0.0
        %1119 = vmatpush1.xpose.msra.mxu0 0.0
        %1120 = vmatprep.subr.mxu0 0.0
        %1121 = vmatpush1.xpose.msra.mxu0 0.0
        %1122 = vmatprep.subr.mxu0 0.0
        %1123 = vmatpush1.xpose.msra.mxu0 0.0
        %1124 = vmatprep.subr.mxu0 0.0
        %1125 = vmatpush1.xpose.msra.mxu0 0.0
        %1126 = vmatprep.subr.mxu0 0.0
        %1127 = vmatpush1.xpose.msra.mxu0 0.0
        %1128 = vmatprep.subr.mxu0 0.0
        %1129 = vmatpush1.xpose.msra.mxu0 0.0
        %1130 = vmatprep.subr.mxu0 0.0
        %1131 = vmatpush1.xpose.msra.mxu0 0.0
        %1132 = vmatprep.subr.mxu0 0.0
        %1133 = vmatpush1.xpose.msra.mxu0 0.0
        %1134 = vmatprep.subr.mxu0 0.0
        %1135 = vmatpush1.xpose.msra.mxu0 0.0
        %1136 = vmatprep.subr.mxu0 0.0
        %1137 = vmatpush1.xpose.msra.mxu0 0.0
        %1138 = vmatprep.subr.mxu0 0.0
        %1139 = vmatpush1.xpose.msra.mxu0 0.0
        %1140 = vmatprep.subr.mxu0 0.0
        %1141 = vmatpush1.xpose.msra.mxu0 0.0
        %1142 = vmatprep.subr.mxu0 0.0
        %1143 = vmatpush1.xpose.msra.mxu0 0.0
        %1144 = vmatprep.subr.mxu0 0.0
        %1145 = vmatpush1.xpose.msra.mxu0 0.0
        %1146 = vmatprep.subr.mxu0 0.0
        %1147 = vmatpush1.xpose.msra.mxu0 0.0
        %1148 = vmatprep.subr.mxu0 0.0
        %1149 = vmatpush1.xpose.msra.mxu0 0.0
        %1150 = vmatprep.subr.mxu0 0.0
        %1151 = vmatpush1.xpose.msra.mxu0 0.0
        %1152 = vmatprep.subr.mxu0 0.0
        %1153 = vmatpush1.xpose.msra.mxu0 0.0
        %1154 = vmatprep.subr.mxu0 0.0
        %1155 = vmatpush1.xpose.msra.mxu0 0.0
        %1156 = vmatprep.subr.mxu0 0.0
        %1157 = vmatpush1.xpose.msra.mxu0 0.0
        %1158 = vmatprep.subr.mxu0 0.0
        %1159 = vmatpush1.xpose.msra.mxu0 0.0
        %1160 = vmatprep.subr.mxu0 0.0
        %1161 = vmatpush1.xpose.msra.mxu0 0.0
        %1162 = vmatprep.mubr.f32.mxu0 0.0
        %1163 = vmatmul.mubr.f32.gmra.mrb[0].mxu0 %v1092
        %v1164 = vpop.f32.mrb[0].mxu0
        %v1165 = vadd.f32 0.0, %v1164
        %v1166 = vpop.f32.mrb[0].mxu0
        %1167 = vdwg.mxu0
        %v1168 = vsel %vm1000, %v1165, -inf
        %1169 = vmax.xlane.f32.xlu0 %v1168
        %v1170 = vpop.xlane.xlu0 %1169
        %v1171 = vsub.f32 %v1165, %v1170
        %v1172 = vmul.f32 %v1171, 1.442695
        %v1173 = vpow.pop %v1172
        %v1174 = vsel %vm1000, %v1173, 0.0
        %1175 = vadd.xlane.f32.xlu0 %v1174
        %v1176 = vpop.xlane.xlu0 %1175
        %v1177 = vrcp.pop %v1176
        %v1178 = vmul.f32 %v1173, %v1177
        %1181 = vrot.lane.b32.xlu0 %v912, 64
        %v1182 = vpop.permute.xlu0 %1181
        %1183 = vrot.lane.b32.xlu0 %v918, 64
        %v1184 = vpop.permute.xlu0 %1183
        %v1188 = vsel %vm1000, %v1178, 0
        %1190 = vmatprep.subr.mxu0 0.0
        %1191 = vmatpush1.msra.mxu0 %v1182
        %1192 = vmatprep.subr.mxu0 0.0
        %1193 = vmatpush1.msra.mxu0 %v1184
        %1194 = vmatprep.subr.mxu0 0.0
        %1195 = vmatpush1.msra.mxu0 0.0
        %1196 = vmatprep.subr.mxu0 0.0
        %1197 = vmatpush1.msra.mxu0 0.0
        %1198 = vmatprep.subr.mxu0 0.0
        %1199 = vmatpush1.msra.mxu0 0.0
        %1200 = vmatprep.subr.mxu0 0.0
        %1201 = vmatpush1.msra.mxu0 0.0
        %1202 = vmatprep.subr.mxu0 0.0
        %1203 = vmatpush1.msra.mxu0 0.0
        %1204 = vmatprep.subr.mxu0 0.0
        %1205 = vmatpush1.msra.mxu0 0.0
        %1206 = vmatprep.subr.mxu0 0.0
        %1207 = vmatpush1.msra.mxu0 0.0
        %1208 = vmatprep.subr.mxu0 0.0
        %1209 = vmatpush1.msra.mxu0 0.0
        %1210 = vmatprep.subr.mxu0 0.0
        %1211 = vmatpush1.msra.mxu0 0.0
        %1212 = vmatprep.subr.mxu0 0.0
        %1213 = vmatpush1.msra.mxu0 0.0
        %1214 = vmatprep.subr.mxu0 0.0
        %1215 = vmatpush1.msra.mxu0 0.0
        %1216 = vmatprep.subr.mxu0 0.0
        %1217 = vmatpush1.msra.mxu0 0.0
        %1218 = vmatprep.subr.mxu0 0.0
        %1219 = vmatpush1.msra.mxu0 0.0
        %1220 = vmatprep.subr.mxu0 0.0
        %1221 = vmatpush1.msra.mxu0 0.0
        %1222 = vmatprep.subr.mxu0 0.0
        %1223 = vmatpush1.msra.mxu0 0.0
        %1224 = vmatprep.subr.mxu0 0.0
        %1225 = vmatpush1.msra.mxu0 0.0
        %1226 = vmatprep.subr.mxu0 0.0
        %1227 = vmatpush1.msra.mxu0 0.0
        %1228 = vmatprep.subr.mxu0 0.0
        %1229 = vmatpush1.msra.mxu0 0.0
        %1230 = vmatprep.subr.mxu0 0.0
        %1231 = vmatpush1.msra.mxu0 0.0
        %1232 = vmatprep.subr.mxu0 0.0
        %1233 = vmatpush1.msra.mxu0 0.0
        %1234 = vmatprep.subr.mxu0 0.0
        %1235 = vmatpush1.msra.mxu0 0.0
        %1236 = vmatprep.subr.mxu0 0.0
        %1237 = vmatpush1.msra.mxu0 0.0
        %1238 = vmatprep.subr.mxu0 0.0
        %1239 = vmatpush1.msra.mxu0 0.0
        %1240 = vmatprep.subr.mxu0 0.0
        %1241 = vmatpush1.msra.mxu0 0.0
        %1242 = vmatprep.subr.mxu0 0.0
        %1243 = vmatpush1.msra.mxu0 0.0
        %1244 = vmatprep.subr.mxu0 0.0
        %1245 = vmatpush1.msra.mxu0 0.0
        %1246 = vmatprep.subr.mxu0 0.0
        %1247 = vmatpush1.msra.mxu0 0.0
        %1248 = vmatprep.subr.mxu0 0.0
        %1249 = vmatpush1.msra.mxu0 0.0
        %1250 = vmatprep.subr.mxu0 0.0
        %1251 = vmatpush1.msra.mxu0 0.0
        %1252 = vmatprep.subr.mxu0 0.0
        %1253 = vmatpush1.msra.mxu0 0.0
        %1254 = vmatprep.mubr.f32.mxu0 0.0
        %1255 = vmatmul.mubr.f32.gmra.mrb[0].mxu0 %v1188
        %v1256 = vpop.f32.mrb[0].mxu0
        %v1257 = vadd.f32 0.0, %v1256
        %v1258 = vpop.f32.mrb[0].mxu0
        %1259 = vdwg.mxu0
        %1261 = vrot.lane.b32.xlu0 %v1257, 64
        %v1262 = vpop.permute.xlu0 %1261
        %vm1264 = vcmask 1048064
        %1265 = vst.msk [vmem:[#allocation2] sm:$0xff] %vm1264, %v1262
        %v1266 = vld [vmem:[#allocation2] sm:$0xff]
        %v1267 = vadd.f32 %v635, %v1266
        %v1268 = vld [vmem:[%s6] sm:$0x1]
        %v1269 = vld [vmem:[%s7] sm:$0x1]
        %1270 = vadd.xlane.f32.xlu0 %v1267
        %v1271 = vpop.xlane.xlu0 %1270
        %v1272 = vmul.f32 %v1271, %v642
        %v1273 = vsub.f32 %v1267, %v1272
        %v1274 = vmul.f32 %v1273, %v1273
        %1275 = vadd.xlane.f32.xlu0 %v1274
        %v1276 = vpop.xlane.xlu0 %1275
        %v1277 = vmul.f32 %v1276, %v642
        %v1278 = vadd.f32 %v1277, 1e-05
        %v1279 = vrsqrt.pop %v1278
        %v1280 = vmul.f32 %v1273, %v1279
        %v1282 = vlaneseq
        %v1283 = vshrl.u32 %v1282, 7
        %v1284 = vsub.s32 0, %v1283
        %v1285 = vrot.slane %v1268, %v1284
        %v1287 = vmul.f32 %v1280, %v1285
        %v1289 = vlaneseq
        %v1290 = vshrl.u32 %v1289, 7
        %v1291 = vsub.s32 0, %v1290
        %v1292 = vrot.slane %v1269, %v1291
        %v1294 = vadd.f32 %v1287, %v1292
        %v1295 = vld [vmem:[%s15] sm:$0x1]
        %v1297 = vlaneseq
        %v1298 = vshrl.u32 %v1297, 7
        %v1299 = vsub.s32 0, %v1298
        %v1300 = vrot.slane %v1295, %v1299
        %v1302 = vadd.f32 %v1300, 0.0
        %v1303 = vld [vmem:[#allocation11] sm:$0xff]
        %v1304 = vld [vmem:[#allocation11 + $0x8] sm:$0xff]
        %v1305 = vld [vmem:[#allocation11 + $0x10] sm:$0xff]
        %v1306 = vld [vmem:[#allocation11 + $0x18] sm:$0xff]
        %v1307 = vld [vmem:[#allocation11 + $0x20] sm:$0xff]
        %v1308 = vld [vmem:[#allocation11 + $0x28] sm:$0xff]
        %v1309 = vld [vmem:[#allocation11 + $0x30] sm:$0xff]
        %v1310 = vld [vmem:[#allocation11 + $0x38] sm:$0xff]
        %v1311 = vld [vmem:[#allocation11 + $0x40] sm:$0xff]
        %v1312 = vld [vmem:[#allocation11 + $0x48] sm:$0xff]
        %v1313 = vld [vmem:[#allocation11 + $0x50] sm:$0xff]
        %v1314 = vld [vmem:[#allocation11 + $0x58] sm:$0xff]
        %v1315 = vld [vmem:[#allocation11 + $0x60] sm:$0xff]
        %v1316 = vld [vmem:[#allocation11 + $0x68] sm:$0xff]
        %v1317 = vld [vmem:[#allocation11 + $0x70] sm:$0xff]
        %v1318 = vld [vmem:[#allocation11 + $0x78] sm:$0xff]
        %v1319 = vld [vmem:[#allocation11 + $0x80] sm:$0xff]
        %v1320 = vld [vmem:[#allocation11 + $0x88] sm:$0xff]
        %v1321 = vld [vmem:[#allocation11 + $0x90] sm:$0xff]
        %v1322 = vld [vmem:[#allocation11 + $0x98] sm:$0xff]
        %v1323 = vld [vmem:[#allocation11 + $0xa0] sm:$0xff]
        %v1324 = vld [vmem:[#allocation11 + $0xa8] sm:$0xff]
        %v1325 = vld [vmem:[#allocation11 + $0xb0] sm:$0xff]
        %v1326 = vld [vmem:[#allocation11 + $0xb8] sm:$0xff]
        %v1327 = vld [vmem:[#allocation11 + $0xc0] sm:$0xff]
        %v1328 = vld [vmem:[#allocation11 + $0xc8] sm:$0xff]
        %v1329 = vld [vmem:[#allocation11 + $0xd0] sm:$0xff]
        %v1330 = vld [vmem:[#allocation11 + $0xd8] sm:$0xff]
        %v1331 = vld [vmem:[#allocation11 + $0xe0] sm:$0xff]
        %v1332 = vld [vmem:[#allocation11 + $0xe8] sm:$0xff]
        %v1333 = vld [vmem:[#allocation11 + $0xf0] sm:$0xff]
        %v1334 = vld [vmem:[#allocation11 + $0xf8] sm:$0xff]
        %v1335 = vld [vmem:[#allocation11 + $0x100] sm:$0xff]
        %v1336 = vld [vmem:[#allocation11 + $0x108] sm:$0xff]
        %v1337 = vld [vmem:[#allocation11 + $0x110] sm:$0xff]
        %v1338 = vld [vmem:[#allocation11 + $0x118] sm:$0xff]
        %v1339 = vld [vmem:[#allocation11 + $0x120] sm:$0xff]
        %v1340 = vld [vmem:[#allocation11 + $0x128] sm:$0xff]
        %v1341 = vld [vmem:[#allocation11 + $0x130] sm:$0xff]
        %v1342 = vld [vmem:[#allocation11 + $0x138] sm:$0xff]
        %v1343 = vld [vmem:[#allocation11 + $0x140] sm:$0xff]
        %v1344 = vld [vmem:[#allocation11 + $0x148] sm:$0xff]
        %v1345 = vld [vmem:[#allocation11 + $0x150] sm:$0xff]
        %v1346 = vld [vmem:[#allocation11 + $0x158] sm:$0xff]
        %v1347 = vld [vmem:[#allocation11 + $0x160] sm:$0xff]
        %v1348 = vld [vmem:[#allocation11 + $0x168] sm:$0xff]
        %v1349 = vld [vmem:[#allocation11 + $0x170] sm:$0xff]
        %v1350 = vld [vmem:[#allocation11 + $0x178] sm:$0xff]
        %v1351 = vld [vmem:[#allocation11 + $0x180] sm:$0xff]
        %v1352 = vld [vmem:[#allocation11 + $0x188] sm:$0xff]
        %v1353 = vld [vmem:[#allocation11 + $0x190] sm:$0xff]
        %v1354 = vld [vmem:[#allocation11 + $0x198] sm:$0xff]
        %v1355 = vld [vmem:[#allocation11 + $0x1a0] sm:$0xff]
        %v1356 = vld [vmem:[#allocation11 + $0x1a8] sm:$0xff]
        %v1357 = vld [vmem:[#allocation11 + $0x1b0] sm:$0xff]
        %v1358 = vld [vmem:[#allocation11 + $0x1b8] sm:$0xff]
        %v1359 = vld [vmem:[#allocation11 + $0x1c0] sm:$0xff]
        %v1360 = vld [vmem:[#allocation11 + $0x1c8] sm:$0xff]
        %v1361 = vld [vmem:[#allocation11 + $0x1d0] sm:$0xff]
        %v1362 = vld [vmem:[#allocation11 + $0x1d8] sm:$0xff]
        %v1363 = vld [vmem:[#allocation11 + $0x1e0] sm:$0xff]
        %v1364 = vld [vmem:[#allocation11 + $0x1e8] sm:$0xff]
        %v1365 = vld [vmem:[#allocation11 + $0x1f0] sm:$0xff]
        %v1366 = vld [vmem:[#allocation11 + $0x1f8] sm:$0xff]
        %v1367 = vld [vmem:[%s13] sm:$0xf]
        %v1369 = vlaneseq
        %v1370 = vshrl.u32 %v1369, 7
        %v1371 = vsub.s32 0, %v1370
        %v1372 = vrot.slane %v1367, %v1371
        %v1373 = vlaneseq
        %v1374 = vshrl.u32 %v1373, 7
        %v1375 = vsub.s32 1, %v1374
        %v1376 = vrot.slane %v1367, %v1375
        %v1377 = vlaneseq
        %v1378 = vshrl.u32 %v1377, 7
        %v1379 = vsub.s32 2, %v1378
        %v1380 = vrot.slane %v1367, %v1379
        %v1381 = vlaneseq
        %v1382 = vshrl.u32 %v1381, 7
        %v1383 = vsub.s32 3, %v1382
        %v1384 = vrot.slane %v1367, %v1383
        %1389 = vmatprep.subr.mxu0 %v1304
        %1390 = vmatpush1.msra.mxu0 %v1303
        %1391 = vmatprep.subr.mxu0 %v1308
        %1392 = vmatpush1.msra.mxu0 %v1307
        %1393 = vmatprep.subr.mxu0 %v1312
        %1394 = vmatpush1.msra.mxu0 %v1311
        %1395 = vmatprep.subr.mxu0 %v1316
        %1396 = vmatpush1.msra.mxu0 %v1315
        %1397 = vmatprep.subr.mxu0 %v1320
        %1398 = vmatpush1.msra.mxu0 %v1319
        %1399 = vmatprep.subr.mxu0 %v1324
        %1400 = vmatpush1.msra.mxu0 %v1323
        %1401 = vmatprep.subr.mxu0 %v1328
        %1402 = vmatpush1.msra.mxu0 %v1327
        %1403 = vmatprep.subr.mxu0 %v1332
        %1404 = vmatpush1.msra.mxu0 %v1331
        %1405 = vmatprep.subr.mxu0 %v1336
        %1406 = vmatpush1.msra.mxu0 %v1335
        %1407 = vmatprep.subr.mxu0 %v1340
        %1408 = vmatpush1.msra.mxu0 %v1339
        %1409 = vmatprep.subr.mxu0 %v1344
        %1410 = vmatpush1.msra.mxu0 %v1343
        %1411 = vmatprep.subr.mxu0 %v1348
        %1412 = vmatpush1.msra.mxu0 %v1347
        %1413 = vmatprep.subr.mxu0 %v1352
        %1414 = vmatpush1.msra.mxu0 %v1351
        %1415 = vmatprep.subr.mxu0 %v1356
        %1416 = vmatpush1.msra.mxu0 %v1355
        %1417 = vmatprep.subr.mxu0 %v1360
        %1418 = vmatpush1.msra.mxu0 %v1359
        %1419 = vmatprep.subr.mxu0 %v1364
        %1420 = vmatpush1.msra.mxu0 %v1363
        %1421 = vmatprep.subr.mxu0 0.0
        %1422 = vmatpush1.msra.mxu0 0.0
        %1423 = vmatprep.subr.mxu0 0.0
        %1424 = vmatpush1.msra.mxu0 0.0
        %1425 = vmatprep.subr.mxu0 0.0
        %1426 = vmatpush1.msra.mxu0 0.0
        %1427 = vmatprep.subr.mxu0 0.0
        %1428 = vmatpush1.msra.mxu0 0.0
        %1429 = vmatprep.subr.mxu0 0.0
        %1430 = vmatpush1.msra.mxu0 0.0
        %1431 = vmatprep.subr.mxu0 0.0
        %1432 = vmatpush1.msra.mxu0 0.0
        %1433 = vmatprep.subr.mxu0 0.0
        %1434 = vmatpush1.msra.mxu0 0.0
        %1435 = vmatprep.subr.mxu0 0.0
        %1436 = vmatpush1.msra.mxu0 0.0
        %1437 = vmatprep.subr.mxu0 0.0
        %1438 = vmatpush1.msra.mxu0 0.0
        %1439 = vmatprep.subr.mxu0 0.0
        %1440 = vmatpush1.msra.mxu0 0.0
        %1441 = vmatprep.subr.mxu0 0.0
        %1442 = vmatpush1.msra.mxu0 0.0
        %1443 = vmatprep.subr.mxu0 0.0
        %1444 = vmatpush1.msra.mxu0 0.0
        %1445 = vmatprep.subr.mxu0 0.0
        %1446 = vmatpush1.msra.mxu0 0.0
        %1447 = vmatprep.subr.mxu0 0.0
        %1448 = vmatpush1.msra.mxu0 0.0
        %1449 = vmatprep.subr.mxu0 0.0
        %1450 = vmatpush1.msra.mxu0 0.0
        %1451 = vmatprep.subr.mxu0 0.0
        %1452 = vmatpush1.msra.mxu0 0.0
        %1453 = vmatprep.mubr.f32.mxu0 0.0
        %1454 = vmatmul.mubr.f32.gmra.mrb[0].mxu0 %v1294
        %v1455 = vpop.f32.mrb[0].mxu0
        %v1456 = vadd.f32 %v1372, %v1455
        %v1457 = vpop.f32.mrb[0].mxu0
        %v1458 = vadd.f32 %v1376, %v1457
        %1459 = vdwg.mxu0
        %1460 = vmatprep.subr.mxu0 %v1306
        %1461 = vmatpush1.msra.mxu0 %v1305
        %1462 = vmatprep.subr.mxu0 %v1310
        %1463 = vmatpush1.msra.mxu0 %v1309
        %1464 = vmatprep.subr.mxu0 %v1314
        %1465 = vmatpush1.msra.mxu0 %v1313
        %1466 = vmatprep.subr.mxu0 %v1318
        %1467 = vmatpush1.msra.mxu0 %v1317
        %1468 = vmatprep.subr.mxu0 %v1322
        %1469 = vmatpush1.msra.mxu0 %v1321
        %1470 = vmatprep.subr.mxu0 %v1326
        %1471 = vmatpush1.msra.mxu0 %v1325
        %1472 = vmatprep.subr.mxu0 %v1330
        %1473 = vmatpush1.msra.mxu0 %v1329
        %1474 = vmatprep.subr.mxu0 %v1334
        %1475 = vmatpush1.msra.mxu0 %v1333
        %1476 = vmatprep.subr.mxu0 %v1338
        %1477 = vmatpush1.msra.mxu0 %v1337
        %1478 = vmatprep.subr.mxu0 %v1342
        %1479 = vmatpush1.msra.mxu0 %v1341
        %1480 = vmatprep.subr.mxu0 %v1346
        %1481 = vmatpush1.msra.mxu0 %v1345
        %1482 = vmatprep.subr.mxu0 %v1350
        %1483 = vmatpush1.msra.mxu0 %v1349
        %1484 = vmatprep.subr.mxu0 %v1354
        %1485 = vmatpush1.msra.mxu0 %v1353
        %1486 = vmatprep.subr.mxu0 %v1358
        %1487 = vmatpush1.msra.mxu0 %v1357
        %1488 = vmatprep.subr.mxu0 %v1362
        %1489 = vmatpush1.msra.mxu0 %v1361
        %1490 = vmatprep.subr.mxu0 %v1366
        %1491 = vmatpush1.msra.mxu0 %v1365
        %1492 = vmatprep.subr.mxu0 0.0
        %1493 = vmatpush1.msra.mxu0 0.0
        %1494 = vmatprep.subr.mxu0 0.0
        %1495 = vmatpush1.msra.mxu0 0.0
        %1496 = vmatprep.subr.mxu0 0.0
        %1497 = vmatpush1.msra.mxu0 0.0
        %1498 = vmatprep.subr.mxu0 0.0
        %1499 = vmatpush1.msra.mxu0 0.0
        %1500 = vmatprep.subr.mxu0 0.0
        %1501 = vmatpush1.msra.mxu0 0.0
        %1502 = vmatprep.subr.mxu0 0.0
        %1503 = vmatpush1.msra.mxu0 0.0
        %1504 = vmatprep.subr.mxu0 0.0
        %1505 = vmatpush1.msra.mxu0 0.0
        %1506 = vmatprep.subr.mxu0 0.0
        %1507 = vmatpush1.msra.mxu0 0.0
        %1508 = vmatprep.subr.mxu0 0.0
        %1509 = vmatpush1.msra.mxu0 0.0
        %1510 = vmatprep.subr.mxu0 0.0
        %1511 = vmatpush1.msra.mxu0 0.0
        %1512 = vmatprep.subr.mxu0 0.0
        %1513 = vmatpush1.msra.mxu0 0.0
        %1514 = vmatprep.subr.mxu0 0.0
        %1515 = vmatpush1.msra.mxu0 0.0
        %1516 = vmatprep.subr.mxu0 0.0
        %1517 = vmatpush1.msra.mxu0 0.0
        %1518 = vmatprep.subr.mxu0 0.0
        %1519 = vmatpush1.msra.mxu0 0.0
        %1520 = vmatprep.subr.mxu0 0.0
        %1521 = vmatpush1.msra.mxu0 0.0
        %1522 = vmatprep.subr.mxu0 0.0
        %1523 = vmatpush1.msra.mxu0 0.0
        %1524 = vmatprep.mubr.f32.mxu0 0.0
        %1525 = vmatmul.mubr.f32.gmra.mrb[0].mxu0 %v1294
        %v1526 = vpop.f32.mrb[0].mxu0
        %v1527 = vadd.f32 %v1380, %v1526
        %v1528 = vpop.f32.mrb[0].mxu0
        %v1529 = vadd.f32 %v1384, %v1528
        %1530 = vdwg.mxu0
        %v1531 = vmul.f32 %v1456, 1.702
        %v1532 = vmul.f32 %v1458, 1.702
        %v1533 = vmul.f32 %v1527, 1.702
        %v1534 = vmul.f32 %v1529, 1.702
        %v1535 = vxor.u32 %v1531, 2147483648
        %v1536 = vxor.u32 %v1532, 2147483648
        %v1537 = vxor.u32 %v1533, 2147483648
        %v1538 = vxor.u32 %v1534, 2147483648
        %v1539 = vmul.f32 %v1535, 1.442695
        %v1540 = vpow.pop %v1539
        %v1541 = vmul.f32 %v1536, 1.442695
        %v1542 = vpow.pop %v1541
        %v1543 = vmul.f32 %v1537, 1.442695
        %v1544 = vpow.pop %v1543
        %v1545 = vmul.f32 %v1538, 1.442695
        %v1546 = vpow.pop %v1545
        %v1547 = vadd.f32 %v1540, 1.0
        %v1548 = vadd.f32 %v1542, 1.0
        %v1549 = vadd.f32 %v1544, 1.0
        %v1550 = vadd.f32 %v1546, 1.0
        %v1551 = vrcp.pop %v1547
        %v1552 = vmul.f32 1.0, %v1551
        %v1553 = vrcp.pop %v1548
        %v1554 = vmul.f32 1.0, %v1553
        %v1555 = vrcp.pop %v1549
        %v1556 = vmul.f32 1.0, %v1555
        %v1557 = vrcp.pop %v1550
        %v1558 = vmul.f32 1.0, %v1557
        %v1559 = vmul.f32 %v1456, %v1552
        %v1560 = vmul.f32 %v1458, %v1554
        %v1561 = vmul.f32 %v1527, %v1556
        %v1562 = vmul.f32 %v1529, %v1558
        %v1563 = vld [vmem:[#allocation12] sm:$0xff]
        %v1564 = vld [vmem:[#allocation12 + $0x8] sm:$0xff]
        %v1565 = vld [vmem:[#allocation12 + $0x10] sm:$0xff]
        %v1566 = vld [vmem:[#allocation12 + $0x18] sm:$0xff]
        %v1567 = vld [vmem:[#allocation12 + $0x20] sm:$0xff]
        %v1568 = vld [vmem:[#allocation12 + $0x28] sm:$0xff]
        %v1569 = vld [vmem:[#allocation12 + $0x30] sm:$0xff]
        %v1570 = vld [vmem:[#allocation12 + $0x38] sm:$0xff]
        %v1571 = vld [vmem:[#allocation12 + $0x40] sm:$0xff]
        %v1572 = vld [vmem:[#allocation12 + $0x48] sm:$0xff]
        %v1573 = vld [vmem:[#allocation12 + $0x50] sm:$0xff]
        %v1574 = vld [vmem:[#allocation12 + $0x58] sm:$0xff]
        %v1575 = vld [vmem:[#allocation12 + $0x60] sm:$0xff]
        %v1576 = vld [vmem:[#allocation12 + $0x68] sm:$0xff]
        %v1577 = vld [vmem:[#allocation12 + $0x70] sm:$0xff]
        %v1578 = vld [vmem:[#allocation12 + $0x78] sm:$0xff]
        %v1579 = vld [vmem:[#allocation12 + $0x80] sm:$0xff]
        %v1580 = vld [vmem:[#allocation12 + $0x88] sm:$0xff]
        %v1581 = vld [vmem:[#allocation12 + $0x90] sm:$0xff]
        %v1582 = vld [vmem:[#allocation12 + $0x98] sm:$0xff]
        %v1583 = vld [vmem:[#allocation12 + $0xa0] sm:$0xff]
        %v1584 = vld [vmem:[#allocation12 + $0xa8] sm:$0xff]
        %v1585 = vld [vmem:[#allocation12 + $0xb0] sm:$0xff]
        %v1586 = vld [vmem:[#allocation12 + $0xb8] sm:$0xff]
        %v1587 = vld [vmem:[#allocation12 + $0xc0] sm:$0xff]
        %v1588 = vld [vmem:[#allocation12 + $0xc8] sm:$0xff]
        %v1589 = vld [vmem:[#allocation12 + $0xd0] sm:$0xff]
        %v1590 = vld [vmem:[#allocation12 + $0xd8] sm:$0xff]
        %v1591 = vld [vmem:[#allocation12 + $0xe0] sm:$0xff]
        %v1592 = vld [vmem:[#allocation12 + $0xe8] sm:$0xff]
        %v1593 = vld [vmem:[#allocation12 + $0xf0] sm:$0xff]
        %v1594 = vld [vmem:[#allocation12 + $0xf8] sm:$0xff]
        %v1595 = vld [vmem:[#allocation12 + $0x100] sm:$0xff]
        %v1596 = vld [vmem:[#allocation12 + $0x108] sm:$0xff]
        %v1597 = vld [vmem:[#allocation12 + $0x110] sm:$0xff]
        %v1598 = vld [vmem:[#allocation12 + $0x118] sm:$0xff]
        %v1599 = vld [vmem:[#allocation12 + $0x120] sm:$0xff]
        %v1600 = vld [vmem:[#allocation12 + $0x128] sm:$0xff]
        %v1601 = vld [vmem:[#allocation12 + $0x130] sm:$0xff]
        %v1602 = vld [vmem:[#allocation12 + $0x138] sm:$0xff]
        %v1603 = vld [vmem:[#allocation12 + $0x140] sm:$0xff]
        %v1604 = vld [vmem:[#allocation12 + $0x148] sm:$0xff]
        %v1605 = vld [vmem:[#allocation12 + $0x150] sm:$0xff]
        %v1606 = vld [vmem:[#allocation12 + $0x158] sm:$0xff]
        %v1607 = vld [vmem:[#allocation12 + $0x160] sm:$0xff]
        %v1608 = vld [vmem:[#allocation12 + $0x168] sm:$0xff]
        %v1609 = vld [vmem:[#allocation12 + $0x170] sm:$0xff]
        %v1610 = vld [vmem:[#allocation12 + $0x178] sm:$0xff]
        %v1611 = vld [vmem:[#allocation12 + $0x180] sm:$0xff]
        %v1612 = vld [vmem:[#allocation12 + $0x188] sm:$0xff]
        %v1613 = vld [vmem:[#allocation12 + $0x190] sm:$0xff]
        %v1614 = vld [vmem:[#allocation12 + $0x198] sm:$0xff]
        %v1615 = vld [vmem:[#allocation12 + $0x1a0] sm:$0xff]
        %v1616 = vld [vmem:[#allocation12 + $0x1a8] sm:$0xff]
        %v1617 = vld [vmem:[#allocation12 + $0x1b0] sm:$0xff]
        %v1618 = vld [vmem:[#allocation12 + $0x1b8] sm:$0xff]
        %v1619 = vld [vmem:[#allocation12 + $0x1c0] sm:$0xff]
        %v1620 = vld [vmem:[#allocation12 + $0x1c8] sm:$0xff]
        %v1621 = vld [vmem:[#allocation12 + $0x1d0] sm:$0xff]
        %v1622 = vld [vmem:[#allocation12 + $0x1d8] sm:$0xff]
        %v1623 = vld [vmem:[#allocation12 + $0x1e0] sm:$0xff]
        %v1624 = vld [vmem:[#allocation12 + $0x1e8] sm:$0xff]
        %v1625 = vld [vmem:[#allocation12 + $0x1f0] sm:$0xff]
        %v1626 = vld [vmem:[#allocation12 + $0x1f8] sm:$0xff]
        %1627 = vmatprep.subr.mxu0 0.0
        %1628 = vmatpush1.msra.mxu0 %v1563
        %1629 = vmatprep.subr.mxu0 0.0
        %1630 = vmatpush1.msra.mxu0 %v1564
        %1631 = vmatprep.subr.mxu0 0.0
        %1632 = vmatpush1.msra.mxu0 %v1565
        %1633 = vmatprep.subr.mxu0 0.0
        %1634 = vmatpush1.msra.mxu0 %v1566
        %1635 = vmatprep.subr.mxu0 0.0
        %1636 = vmatpush1.msra.mxu0 %v1567
        %1637 = vmatprep.subr.mxu0 0.0
        %1638 = vmatpush1.msra.mxu0 %v1568
        %1639 = vmatprep.subr.mxu0 0.0
        %1640 = vmatpush1.msra.mxu0 %v1569
        %1641 = vmatprep.subr.mxu0 0.0
        %1642 = vmatpush1.msra.mxu0 %v1570
        %1643 = vmatprep.subr.mxu0 0.0
        %1644 = vmatpush1.msra.mxu0 %v1571
        %1645 = vmatprep.subr.mxu0 0.0
        %1646 = vmatpush1.msra.mxu0 %v1572
        %1647 = vmatprep.subr.mxu0 0.0
        %1648 = vmatpush1.msra.mxu0 %v1573
        %1649 = vmatprep.subr.mxu0 0.0
        %1650 = vmatpush1.msra.mxu0 %v1574
        %1651 = vmatprep.subr.mxu0 0.0
        %1652 = vmatpush1.msra.mxu0 %v1575
        %1653 = vmatprep.subr.mxu0 0.0
        %1654 = vmatpush1.msra.mxu0 %v1576
        %1655 = vmatprep.subr.mxu0 0.0
        %1656 = vmatpush1.msra.mxu0 %v1577
        %1657 = vmatprep.subr.mxu0 0.0
        %1658 = vmatpush1.msra.mxu0 %v1578
        %1659 = vmatprep.subr.mxu0 0.0
        %1660 = vmatpush1.msra.mxu0 %v1579
        %1661 = vmatprep.subr.mxu0 0.0
        %1662 = vmatpush1.msra.mxu0 %v1580
        %1663 = vmatprep.subr.mxu0 0.0
        %1664 = vmatpush1.msra.mxu0 %v1581
        %1665 = vmatprep.subr.mxu0 0.0
        %1666 = vmatpush1.msra.mxu0 %v1582
        %1667 = vmatprep.subr.mxu0 0.0
        %1668 = vmatpush1.msra.mxu0 %v1583
        %1669 = vmatprep.subr.mxu0 0.0
        %1670 = vmatpush1.msra.mxu0 %v1584
        %1671 = vmatprep.subr.mxu0 0.0
        %1672 = vmatpush1.msra.mxu0 %v1585
        %1673 = vmatprep.subr.mxu0 0.0
        %1674 = vmatpush1.msra.mxu0 %v1586
        %1675 = vmatprep.subr.mxu0 0.0
        %1676 = vmatpush1.msra.mxu0 %v1587
        %1677 = vmatprep.subr.mxu0 0.0
        %1678 = vmatpush1.msra.mxu0 %v1588
        %1679 = vmatprep.subr.mxu0 0.0
        %1680 = vmatpush1.msra.mxu0 %v1589
        %1681 = vmatprep.subr.mxu0 0.0
        %1682 = vmatpush1.msra.mxu0 %v1590
        %1683 = vmatprep.subr.mxu0 0.0
        %1684 = vmatpush1.msra.mxu0 %v1591
        %1685 = vmatprep.subr.mxu0 0.0
        %1686 = vmatpush1.msra.mxu0 %v1592
        %1687 = vmatprep.subr.mxu0 0.0
        %1688 = vmatpush1.msra.mxu0 %v1593
        %1689 = vmatprep.subr.mxu0 0.0
        %1690 = vmatpush1.msra.mxu0 %v1594
        %1691 = vmatprep.mubr.f32.mxu0 %v1560
        %1692 = vmatmul.mubr.f32.gmra.mrb[0].mxu0 %v1559
        %v1693 = vpop.f32.mrb[0].mxu0
        %v1694 = vadd.f32 0.0, %v1693
        %v1695 = vpop.f32.mrb[0].mxu0
        %1696 = vdwg.mxu0
        %1697 = vmatprep.subr.mxu0 0.0
        %1698 = vmatpush1.msra.mxu0 %v1595
        %1699 = vmatprep.subr.mxu0 0.0
        %1700 = vmatpush1.msra.mxu0 %v1596
        %1701 = vmatprep.subr.mxu0 0.0
        %1702 = vmatpush1.msra.mxu0 %v1597
        %1703 = vmatprep.subr.mxu0 0.0
        %1704 = vmatpush1.msra.mxu0 %v1598
        %1705 = vmatprep.subr.mxu0 0.0
        %1706 = vmatpush1.msra.mxu0 %v1599
        %1707 = vmatprep.subr.mxu0 0.0
        %1708 = vmatpush1.msra.mxu0 %v1600
        %1709 = vmatprep.subr.mxu0 0.0
        %1710 = vmatpush1.msra.mxu0 %v1601
        %1711 = vmatprep.subr.mxu0 0.0
        %1712 = vmatpush1.msra.mxu0 %v1602
        %1713 = vmatprep.subr.mxu0 0.0
        %1714 = vmatpush1.msra.mxu0 %v1603
        %1715 = vmatprep.subr.mxu0 0.0
        %1716 = vmatpush1.msra.mxu0 %v1604
        %1717 = vmatprep.subr.mxu0 0.0
        %1718 = vmatpush1.msra.mxu0 %v1605
        %1719 = vmatprep.subr.mxu0 0.0
        %1720 = vmatpush1.msra.mxu0 %v1606
        %1721 = vmatprep.subr.mxu0 0.0
        %1722 = vmatpush1.msra.mxu0 %v1607
        %1723 = vmatprep.subr.mxu0 0.0
        %1724 = vmatpush1.msra.mxu0 %v1608
        %1725 = vmatprep.subr.mxu0 0.0
        %1726 = vmatpush1.msra.mxu0 %v1609
        %1727 = vmatprep.subr.mxu0 0.0
        %1728 = vmatpush1.msra.mxu0 %v1610
        %1729 = vmatprep.subr.mxu0 0.0
        %1730 = vmatpush1.msra.mxu0 %v1611
        %1731 = vmatprep.subr.mxu0 0.0
        %1732 = vmatpush1.msra.mxu0 %v1612
        %1733 = vmatprep.subr.mxu0 0.0
        %1734 = vmatpush1.msra.mxu0 %v1613
        %1735 = vmatprep.subr.mxu0 0.0
        %1736 = vmatpush1.msra.mxu0 %v1614
        %1737 = vmatprep.subr.mxu0 0.0
        %1738 = vmatpush1.msra.mxu0 %v1615
        %1739 = vmatprep.subr.mxu0 0.0
        %1740 = vmatpush1.msra.mxu0 %v1616
        %1741 = vmatprep.subr.mxu0 0.0
        %1742 = vmatpush1.msra.mxu0 %v1617
        %1743 = vmatprep.subr.mxu0 0.0
        %1744 = vmatpush1.msra.mxu0 %v1618
        %1745 = vmatprep.subr.mxu0 0.0
        %1746 = vmatpush1.msra.mxu0 %v1619
        %1747 = vmatprep.subr.mxu0 0.0
        %1748 = vmatpush1.msra.mxu0 %v1620
        %1749 = vmatprep.subr.mxu0 0.0
        %1750 = vmatpush1.msra.mxu0 %v1621
        %1751 = vmatprep.subr.mxu0 0.0
        %1752 = vmatpush1.msra.mxu0 %v1622
        %1753 = vmatprep.subr.mxu0 0.0
        %1754 = vmatpush1.msra.mxu0 %v1623
        %1755 = vmatprep.subr.mxu0 0.0
        %1756 = vmatpush1.msra.mxu0 %v1624
        %1757 = vmatprep.subr.mxu0 0.0
        %1758 = vmatpush1.msra.mxu0 %v1625
        %1759 = vmatprep.subr.mxu0 0.0
        %1760 = vmatpush1.msra.mxu0 %v1626
        %1761 = vmatprep.mubr.f32.mxu0 %v1562
        %1762 = vmatmul.mubr.f32.gmra.mrb[0].mxu0 %v1561
        %v1763 = vpop.f32.mrb[0].mxu0
        %v1764 = vadd.f32 %v1694, %v1763
        %v1765 = vpop.f32.mrb[0].mxu0
        %1766 = vdwg.mxu0
        %v1767 = vadd.f32 %v1302, %v1764
        %v1768 = vadd.f32 %v1267, %v1767
        %1769 = vst [vmem:[%s634] sm:$0xff] %v1768
        %s1770 = sand.u32 %s392, 1
        %s1771 = scalar_lea.sflag [#allocation5], %s1770
        %s1772 = sand.u32 %s392, 1
        %s1773 = smul.addr %s1772, 8
        %s1774 = scalar_lea.vmem [#allocation14], %s1773
        // Predicated region
        $region109: #{tpu_custom_call.1} parent=83 // pred_check
          %p1775 = pneg %p402
        $region110: #{tpu_custom_call.1} parent=83 // pred_check_branch
          %1777 = sbr.rel (%p1775) target = $region112
        $region111: #{tpu_custom_call.1} parent=83 // pred_region
          %s1779 = ssub.s32 128, 128
          %1780 = vsyncadd %s1771, %s1779
          %s1781 = smul.addr %s38, 128
          %s1782 = scalar_lea.hbm %s16, %s1781
          %s1784 = sshll.u32 %s1774, 4
          %s1785 = int_to_ptr.vmem [resolvable:$true] %s1784
          %1787 = dma.vmem_to_hbm [thread:$0]  %s1785, 128, %s1782, %s1771
        $region112: #{tpu_custom_call.1} parent=83 // pred_fallthru
          _
      $region84: #{tpu_custom_call.1} parent=5 // pred_fallthru
        _
      %p1788 = scmp.le.s32.totalorder 2, %s33
      // Predicated region
      $region113: #{tpu_custom_call.1} parent=5 // pred_check
        %p1789 = pneg %p1788
      $region114: #{tpu_custom_call.1} parent=5 // pred_check_branch
        %1791 = sbr.rel (%p1789) target = $region116
      $region115: #{tpu_custom_call.1} parent=5 // pred_region
        %s1792 = ssub.s32 %s33, 2
        // Predicated region
        $region117: #{tpu_custom_call.1} parent=115 // pred_check
          %p1793 = pneg %p408
        $region118: #{tpu_custom_call.1} parent=115 // pred_check_branch
          %1795 = sbr.rel (%p1793) target = $region120
        $region119: #{tpu_custom_call.1} parent=115 // pred_region
          %s1796 = sand.u32 %s393, 1
          %s1797 = scalar_lea.sflag [#allocation5], %s1796
          %s1798 = sand.u32 %s393, 1
          %s1799 = smul.addr %s1798, 8
          %s1800 = scalar_lea.vmem [#allocation14], %s1799
          %1801 = dma.done %s1797, 128
        $region120: #{tpu_custom_call.1} parent=115 // pred_fallthru
          _
      $region116: #{tpu_custom_call.1} parent=5 // pred_fallthru
        _
    $region6: #{tpu_custom_call.1} parent=1 // loop_footer
      %s37 = sadd.s32 1, %s33
    $region7: #{tpu_custom_call.1} parent=1 // loop_footer_branch
      %32 = sbr.rel target = $region3
    $region8: #{tpu_custom_call.1} parent=1 // loop_exit
      _
    %1802 = vsyncpa [#allocation4], 1
    %s1803 = scalar_lea.sflag [#allocation4], 1
    %1804 = vsyncpa %s1803, 1
    %1805 = vsyncpa [#allocation7], 1
    %s1806 = scalar_lea.sflag [#allocation7], 1
    %1807 = vsyncpa %s1806, 1
    %1808 = vsyncpa [#allocation10], 1
    %1809 = vsyncpa [#allocation13], 1
    %1810 = vsyncpa [#allocation5], 1
    %s1811 = scalar_lea.sflag [#allocation5], 1
    %1812 = vsyncpa %s1811, 1

// kernel: tpu_custom_call.1
$region0: #{tpu_custom_call.1}
  #allocation0 [shape = 'u32[]', space=smem, size = 0x4, offset = 0x4, fixed_abs, tag = 'smem constant byte address 0x4 - core index']
  #allocation1 [shape = 'u32[144,128]{1,0:T(1,128)}', space=vmem, size = 0x12000, scoped, tag = 'internal scratch']
  #allocation2 [shape = 'f32[1,8,128]{2,1,0:T(8,128)}', space=vmem, size = 0x1000, scoped, tag = 'scratch operand']
  %s0 = inlined_call_operand.hbm [shape: f32[2,8,128], index: 0, kind: input, shape index: {}]
  %s1 = inlined_call_operand.hbm [shape: f32[2,16,128], index: 1, kind: input, shape index: {}]
  %s2 = inlined_call_operand.vmem [shape: f32[1,128], index: 2, kind: input, shape index: {}]
  %s3 = inlined_call_operand.vmem [shape: f32[1,128], index: 3, kind: input, shape index: {}]
  %s4 = inlined_call_operand.vmem [shape: f32[1,128], index: 4, kind: input, shape index: {}]
  %s5 = inlined_call_operand.vmem [shape: f32[1,128], index: 5, kind: input, shape index: {}]
  %s6 = inlined_call_operand.vmem [shape: f32[1,128], index: 6, kind: input, shape index: {}]
  %s7 = inlined_call_operand.vmem [shape: f32[1,128], index: 7, kind: input, shape index: {}]
  %s8 = inlined_call_operand.hbm [shape: f32[128,128], index: 8, kind: input, shape index: {}]
  %s9 = inlined_call_operand.hbm [shape: f32[128,256], index: 9, kind: input, shape index: {}]
  %s10 = inlined_call_operand.vmem [shape: f32[1,128], index: 10, kind: input, shape index: {}]
  %s11 = inlined_call_operand.vmem [shape: f32[1,256], index: 11, kind: input, shape index: {}]
  %s12 = inlined_call_operand.hbm [shape: f32[128,512], index: 12, kind: input, shape index: {}]
  %s13 = inlined_call_operand.vmem [shape: f32[1,512], index: 13, kind: input, shape index: {}]
  %s14 = inlined_call_operand.hbm [shape: f32[512,128], index: 14, kind: input, shape index: {}]
  %s15 = inlined_call_operand.vmem [shape: f32[1,128], index: 15, kind: input, shape index: {}]
  %s16 = inlined_call_operand.hbm [shape: f32[2,8,128], index: 16, kind: output, shape index: {}]
  %s17 = sld [smem:[#allocation0]]
  $region121: #{tpu_custom_call.1} parent=0
    _
  %s19 = ssub.s32 1, %s17
  %s20 = scalar_select 0, %s19, %s17
  $region1: #{tpu_custom_call.1} parent=0
    #allocation3 [shape = 'u8[8192]{0}', space=vmem, size = 0x2000, scoped, tag = 'input window, operand 0']
    #allocation4 [shape = 's32[2]{0}', space=sflag, size = 0x8, scoped, tag = 'scoped memory for tpu_custom_call.1']
    #allocation5 [shape = 's32[2]{0}', space=sflag, size = 0x8, scoped, tag = 'scoped memory for tpu_custom_call.1']
    #allocation6 [shape = 'u8[16384]{0}', space=vmem, size = 0x4000, scoped, tag = 'input window, operand 1']
    #allocation7 [shape = 's32[2]{0}', space=sflag, size = 0x8, scoped, tag = 'scoped memory for tpu_custom_call.1']
    #allocation8 [shape = 'u8[65536]{0}', space=vmem, size = 0x10000, scoped, tag = 'input window, operand 8, single buffered']
    #allocation9 [shape = 'u8[131072]{0}', space=vmem, size = 0x20000, scoped, tag = 'input window, operand 9, single buffered']
    #allocation10 [shape = 's32[1]{0}', space=sflag, size = 0x4, scoped, tag = 'scoped memory for tpu_custom_call.1']
    #allocation11 [shape = 'u8[262144]{0}', space=vmem, size = 0x40000, scoped, tag = 'input window, operand 12, single buffered']
    #allocation12 [shape = 'u8[262144]{0}', space=vmem, size = 0x40000, scoped, tag = 'input window, operand 14, single buffered']
    #allocation13 [shape = 's32[1]{0}', space=sflag, size = 0x4, scoped, tag = 'scoped memory for tpu_custom_call.1']
    #allocation14 [shape = 'u8[8192]{0}', space=vmem, size = 0x2000, scoped, tag = 'output window, operand 0']
    %21 = vsyncpa [#allocation4], 0
    %s22 = scalar_lea.sflag [#allocation4], 1
    %23 = vsyncpa %s22, 0
    %24 = vsyncpa [#allocation7], 0
    %s25 = scalar_lea.sflag [#allocation7], 1
    %26 = vsyncpa %s25, 0
    %27 = vsyncpa [#allocation10], 0
    %28 = vsyncpa [#allocation13], 0
    %29 = vsyncpa [#allocation5], 0
    %s30 = scalar_lea.sflag [#allocation5], 1
    %31 = vsyncpa %s30, 0
    loop: start=0, step=1, limit=4
    $region2: #{tpu_custom_call.1} parent=1 // loop_pre_header
      _
    $region3: #{tpu_custom_call.1} parent=1 // loop_header
      %s33 = sphi 0, %s37
      %p34 = scmp.ge.s32.totalorder %s33, 4
      %s43 = sphi 0, %s45
      %s46 = sphi 0, %s43
      %s47 = sphi 0, %s46
      %s63 = sphi 0, %s47
      %s69 = sphi 0, %s71
      %s72 = sphi 0, %s69
      %s73 = sphi 0, %s72
      %s89 = sphi 0, %s73
      %s93 = sphi 0, %s93
      %s95 = sphi 0, %s93
      %s96 = sphi 0, %s95
      %s110 = sphi 0, %s96
      %s114 = sphi 0, %s114
      %s116 = sphi 0, %s114
      %s117 = sphi 0, %s116
      %s131 = sphi 0, %s117
      %s135 = sphi 0, %s135
      %s137 = sphi 0, %s135
      %s138 = sphi 0, %s137
      %s152 = sphi 0, %s138
      %s156 = sphi 0, %s156
      %s158 = sphi 0, %s156
      %s159 = sphi 0, %s158
      %s173 = sphi 0, %s159
      %s177 = sphi 0, %s177
      %s179 = sphi 0, %s177
      %s180 = sphi 0, %s179
      %s194 = sphi 0, %s180
      %s198 = sphi 0, %s198
      %s200 = sphi 0, %s198
      %s201 = sphi 0, %s200
      %s215 = sphi 0, %s201
      %s219 = sphi 0, %s219
      %s221 = sphi 0, %s219
      %s222 = sphi 0, %s221
      %s236 = sphi 0, %s222
      %s240 = sphi 0, %s240
      %s242 = sphi 0, %s240
      %s243 = sphi 0, %s242
      %s257 = sphi 0, %s243
      %s261 = sphi 0, %s261
      %s263 = sphi 0, %s261
      %s264 = sphi 0, %s263
      %s278 = sphi 0, %s264
      %s282 = sphi 0, %s282
      %s284 = sphi 0, %s282
      %s285 = sphi 0, %s284
      %s299 = sphi 0, %s285
      %s303 = sphi 0, %s303
      %s305 = sphi 0, %s303
      %s306 = sphi 0, %s305
      %s320 = sphi 0, %s306
      %s324 = sphi 0, %s324
      %s326 = sphi 0, %s324
      %s327 = sphi 0, %s326
      %s341 = sphi 0, %s327
      %s345 = sphi 0, %s345
      %s347 = sphi 0, %s345
      %s348 = sphi 0, %s347
      %s362 = sphi 0, %s348
      %s366 = sphi 0, %s366
      %s368 = sphi 0, %s366
      %s369 = sphi 0, %s368
      %s383 = sphi 0, %s369
      %s389 = sphi 0, %s391
      %s392 = sphi 0, %s389
      %s393 = sphi 0, %s392
      %s409 = sphi 0, %s393
    $region4: #{tpu_custom_call.1} parent=1 // loop_header_branch
      %36 = sbr.rel (%p34) target = $region8
    $region5: #{tpu_custom_call.1} parent=1 // loop_body
      %s38 = ssub.s32 %s33, 1
      %s39 = ssub.s32 %s33, 2
      %s40 = sadd.s32 %s33, 1
      %s41 = ssub.s32 %s33, %s40
      %p42 = scmp.eq.s32.totalorder %s41, 0
      %s44 = sadd.s32 %s43, 1
      %s45 = scalar_select %p42, %s43, %s44
      %p48 = pneg %p42
      %p49 = scmp.eq.s32.totalorder %s33, 1
      %p50 = por %p48, %p49
      %p51 = scmp.ne.s32.totalorder %s43, %s46
      %p52 = scmp.eq.s32.totalorder %s33, 0
      %p53 = por %p51, %p52
      %p54 = scmp.ne.s32.totalorder %s43, %s46
      %p55 = scmp.eq.s32.totalorder %s38, 1
      %p56 = por %p54, %p55
      %p57 = scmp.ne.s32.totalorder %s46, %s47
      %p58 = scmp.eq.s32.totalorder %s38, 0
      %p59 = por %p57, %p58
      %p60 = scmp.ne.s32.totalorder %s46, %s47
      %p61 = scmp.eq.s32.totalorder %s39, 1
      %p62 = por %p60, %p61
      %p64 = scmp.ne.s32.totalorder %s47, %s63
      %p65 = scmp.eq.s32.totalorder %s39, 0
      %p66 = por %p64, %p65
      %s67 = ssub.s32 %s33, %s40
      %p68 = scmp.eq.s32.totalorder %s67, 0
      %s70 = sadd.s32 %s69, 1
      %s71 = scalar_select %p68, %s69, %s70
      %p74 = pneg %p68
      %p75 = scmp.eq.s32.totalorder %s33, 1
      %p76 = por %p74, %p75
      %p77 = scmp.ne.s32.totalorder %s69, %s72
      %p78 = scmp.eq.s32.totalorder %s33, 0
      %p79 = por %p77, %p78
      %p80 = scmp.ne.s32.totalorder %s69, %s72
      %p81 = scmp.eq.s32.totalorder %s38, 1
      %p82 = por %p80, %p81
      %p83 = scmp.ne.s32.totalorder %s72, %s73
      %p84 = scmp.eq.s32.totalorder %s38, 0
      %p85 = por %p83, %p84
      %p86 = scmp.ne.s32.totalorder %s72, %s73
      %p87 = scmp.eq.s32.totalorder %s39, 1
      %p88 = por %p86, %p87
      %p90 = scmp.ne.s32.totalorder %s73, %s89
      %p91 = scmp.eq.s32.totalorder %s39, 0
      %p92 = por %p90, %p91
      %s94 = sadd.s32 %s93, 1
      %p97 = scmp.eq.s32.totalorder %s33, 1
      %p98 = scmp.ne.s32.totalorder %s93, %s95
      %p99 = scmp.eq.s32.totalorder %s33, 0
      %p100 = por %p98, %p99
      %p101 = scmp.ne.s32.totalorder %s93, %s95
      %p102 = scmp.eq.s32.totalorder %s38, 1
      %p103 = por %p101, %p102
      %p104 = scmp.ne.s32.totalorder %s95, %s96
      %p105 = scmp.eq.s32.totalorder %s38, 0
      %p106 = por %p104, %p105
      %p107 = scmp.ne.s32.totalorder %s95, %s96
      %p108 = scmp.eq.s32.totalorder %s39, 1
      %p109 = por %p107, %p108
      %p111 = scmp.ne.s32.totalorder %s96, %s110
      %p112 = scmp.eq.s32.totalorder %s39, 0
      %p113 = por %p111, %p112
      %s115 = sadd.s32 %s114, 1
      %p118 = scmp.eq.s32.totalorder %s33, 1
      %p119 = scmp.ne.s32.totalorder %s114, %s116
      %p120 = scmp.eq.s32.totalorder %s33, 0
      %p121 = por %p119, %p120
      %p122 = scmp.ne.s32.totalorder %s114, %s116
      %p123 = scmp.eq.s32.totalorder %s38, 1
      %p124 = por %p122, %p123
      %p125 = scmp.ne.s32.totalorder %s116, %s117
      %p126 = scmp.eq.s32.totalorder %s38, 0
      %p127 = por %p125, %p126
      %p128 = scmp.ne.s32.totalorder %s116, %s117
      %p129 = scmp.eq.s32.totalorder %s39, 1
      %p130 = por %p128, %p129
      %p132 = scmp.ne.s32.totalorder %s117, %s131
      %p133 = scmp.eq.s32.totalorder %s39, 0
      %p134 = por %p132, %p133
      %s136 = sadd.s32 %s135, 1
      %p139 = scmp.eq.s32.totalorder %s33, 1
      %p140 = scmp.ne.s32.totalorder %s135, %s137
      %p141 = scmp.eq.s32.totalorder %s33, 0
      %p142 = por %p140, %p141
      %p143 = scmp.ne.s32.totalorder %s135, %s137
      %p144 = scmp.eq.s32.totalorder %s38, 1
      %p145 = por %p143, %p144
      %p146 = scmp.ne.s32.totalorder %s137, %s138
      %p147 = scmp.eq.s32.totalorder %s38, 0
      %p148 = por %p146, %p147
      %p149 = scmp.ne.s32.totalorder %s137, %s138
      %p150 = scmp.eq.s32.totalorder %s39, 1
      %p151 = por %p149, %p150
      %p153 = scmp.ne.s32.totalorder %s138, %s152
      %p154 = scmp.eq.s32.totalorder %s39, 0
      %p155 = por %p153, %p154
      %s157 = sadd.s32 %s156, 1
      %p160 = scmp.eq.s32.totalorder %s33, 1
      %p161 = scmp.ne.s32.totalorder %s156, %s158
      %p162 = scmp.eq.s32.totalorder %s33, 0
      %p163 = por %p161, %p162
      %p164 = scmp.ne.s32.totalorder %s156, %s158
      %p165 = scmp.eq.s32.totalorder %s38, 1
      %p166 = por %p164, %p165
      %p167 = scmp.ne.s32.totalorder %s158, %s159
      %p168 = scmp.eq.s32.totalorder %s38, 0
      %p169 = por %p167, %p168
      %p170 = scmp.ne.s32.totalorder %s158, %s159
      %p171 = scmp.eq.s32.totalorder %s39, 1
      %p172 = por %p170, %p171
      %p174 = scmp.ne.s32.totalorder %s159, %s173
      %p175 = scmp.eq.s32.totalorder %s39, 0
      %p176 = por %p174, %p175
      %s178 = sadd.s32 %s177, 1
      %p181 = scmp.eq.s32.totalorder %s33, 1
      %p182 = scmp.ne.s32.totalorder %s177, %s179
      %p183 = scmp.eq.s32.totalorder %s33, 0
      %p184 = por %p182, %p183
      %p185 = scmp.ne.s32.totalorder %s177, %s179
      %p186 = scmp.eq.s32.totalorder %s38, 1
      %p187 = por %p185, %p186
      %p188 = scmp.ne.s32.totalorder %s179, %s180
      %p189 = scmp.eq.s32.totalorder %s38, 0
      %p190 = por %p188, %p189
      %p191 = scmp.ne.s32.totalorder %s179, %s180
      %p192 = scmp.eq.s32.totalorder %s39, 1
      %p193 = por %p191, %p192
      %p195 = scmp.ne.s32.totalorder %s180, %s194
      %p196 = scmp.eq.s32.totalorder %s39, 0
      %p197 = por %p195, %p196
      %s199 = sadd.s32 %s198, 1
      %p202 = scmp.eq.s32.totalorder %s33, 1
      %p203 = scmp.ne.s32.totalorder %s198, %s200
      %p204 = scmp.eq.s32.totalorder %s33, 0
      %p205 = por %p203, %p204
      %p206 = scmp.ne.s32.totalorder %s198, %s200
      %p207 = scmp.eq.s32.totalorder %s38, 1
      %p208 = por %p206, %p207
      %p209 = scmp.ne.s32.totalorder %s200, %s201
      %p210 = scmp.eq.s32.totalorder %s38, 0
      %p211 = por %p209, %p210
      %p212 = scmp.ne.s32.totalorder %s200, %s201
      %p213 = scmp.eq.s32.totalorder %s39, 1
      %p214 = por %p212, %p213
      %p216 = scmp.ne.s32.totalorder %s201, %s215
      %p217 = scmp.eq.s32.totalorder %s39, 0
      %p218 = por %p216, %p217
      %s220 = sadd.s32 %s219, 1
      %p223 = scmp.eq.s32.totalorder %s33, 1
      %p224 = scmp.ne.s32.totalorder %s219, %s221
      %p225 = scmp.eq.s32.totalorder %s33, 0
      %p226 = por %p224, %p225
      %p227 = scmp.ne.s32.totalorder %s219, %s221
      %p228 = scmp.eq.s32.totalorder %s38, 1
      %p229 = por %p227, %p228
      %p230 = scmp.ne.s32.totalorder %s221, %s222
      %p231 = scmp.eq.s32.totalorder %s38, 0
      %p232 = por %p230, %p231
      %p233 = scmp.ne.s32.totalorder %s221, %s222
      %p234 = scmp.eq.s32.totalorder %s39, 1
      %p235 = por %p233, %p234
      %p237 = scmp.ne.s32.totalorder %s222, %s236
      %p238 = scmp.eq.s32.totalorder %s39, 0
      %p239 = por %p237, %p238
      %s241 = sadd.s32 %s240, 1
      %p244 = scmp.eq.s32.totalorder %s33, 1
      %p245 = scmp.ne.s32.totalorder %s240, %s242
      %p246 = scmp.eq.s32.totalorder %s33, 0
      %p247 = por %p245, %p246
      %p248 = scmp.ne.s32.totalorder %s240, %s242
      %p249 = scmp.eq.s32.totalorder %s38, 1
      %p250 = por %p248, %p249
      %p251 = scmp.ne.s32.totalorder %s242, %s243
      %p252 = scmp.eq.s32.totalorder %s38, 0
      %p253 = por %p251, %p252
      %p254 = scmp.ne.s32.totalorder %s242, %s243
      %p255 = scmp.eq.s32.totalorder %s39, 1
      %p256 = por %p254, %p255
      %p258 = scmp.ne.s32.totalorder %s243, %s257
      %p259 = scmp.eq.s32.totalorder %s39, 0
      %p260 = por %p258, %p259
      %s262 = sadd.s32 %s261, 1
      %p265 = scmp.eq.s32.totalorder %s33, 1
      %p266 = scmp.ne.s32.totalorder %s261, %s263
      %p267 = scmp.eq.s32.totalorder %s33, 0
      %p268 = por %p266, %p267
      %p269 = scmp.ne.s32.totalorder %s261, %s263
      %p270 = scmp.eq.s32.totalorder %s38, 1
      %p271 = por %p269, %p270
      %p272 = scmp.ne.s32.totalorder %s263, %s264
      %p273 = scmp.eq.s32.totalorder %s38, 0
      %p274 = por %p272, %p273
      %p275 = scmp.ne.s32.totalorder %s263, %s264
      %p276 = scmp.eq.s32.totalorder %s39, 1
      %p277 = por %p275, %p276
      %p279 = scmp.ne.s32.totalorder %s264, %s278
      %p280 = scmp.eq.s32.totalorder %s39, 0
      %p281 = por %p279, %p280
      %s283 = sadd.s32 %s282, 1
      %p286 = scmp.eq.s32.totalorder %s33, 1
      %p287 = scmp.ne.s32.totalorder %s282, %s284
      %p288 = scmp.eq.s32.totalorder %s33, 0
      %p289 = por %p287, %p288
      %p290 = scmp.ne.s32.totalorder %s282, %s284
      %p291 = scmp.eq.s32.totalorder %s38, 1
      %p292 = por %p290, %p291
      %p293 = scmp.ne.s32.totalorder %s284, %s285
      %p294 = scmp.eq.s32.totalorder %s38, 0
      %p295 = por %p293, %p294
      %p296 = scmp.ne.s32.totalorder %s284, %s285
      %p297 = scmp.eq.s32.totalorder %s39, 1
      %p298 = por %p296, %p297
      %p300 = scmp.ne.s32.totalorder %s285, %s299
      %p301 = scmp.eq.s32.totalorder %s39, 0
      %p302 = por %p300, %p301
      %s304 = sadd.s32 %s303, 1
      %p307 = scmp.eq.s32.totalorder %s33, 1
      %p308 = scmp.ne.s32.totalorder %s303, %s305
      %p309 = scmp.eq.s32.totalorder %s33, 0
      %p310 = por %p308, %p309
      %p311 = scmp.ne.s32.totalorder %s303, %s305
      %p312 = scmp.eq.s32.totalorder %s38, 1
      %p313 = por %p311, %p312
      %p314 = scmp.ne.s32.totalorder %s305, %s306
      %p315 = scmp.eq.s32.totalorder %s38, 0
      %p316 = por %p314, %p315
      %p317 = scmp.ne.s32.totalorder %s305, %s306
      %p318 = scmp.eq.s32.totalorder %s39, 1
      %p319 = por %p317, %p318
      %p321 = scmp.ne.s32.totalorder %s306, %s320
      %p322 = scmp.eq.s32.totalorder %s39, 0
      %p323 = por %p321, %p322
      %s325 = sadd.s32 %s324, 1
      %p328 = scmp.eq.s32.totalorder %s33, 1
      %p329 = scmp.ne.s32.totalorder %s324, %s326
      %p330 = scmp.eq.s32.totalorder %s33, 0
      %p331 = por %p329, %p330
      %p332 = scmp.ne.s32.totalorder %s324, %s326
      %p333 = scmp.eq.s32.totalorder %s38, 1
      %p334 = por %p332, %p333
      %p335 = scmp.ne.s32.totalorder %s326, %s327
      %p336 = scmp.eq.s32.totalorder %s38, 0
      %p337 = por %p335, %p336
      %p338 = scmp.ne.s32.totalorder %s326, %s327
      %p339 = scmp.eq.s32.totalorder %s39, 1
      %p340 = por %p338, %p339
      %p342 = scmp.ne.s32.totalorder %s327, %s341
      %p343 = scmp.eq.s32.totalorder %s39, 0
      %p344 = por %p342, %p343
      %s346 = sadd.s32 %s345, 1
      %p349 = scmp.eq.s32.totalorder %s33, 1
      %p350 = scmp.ne.s32.totalorder %s345, %s347
      %p351 = scmp.eq.s32.totalorder %s33, 0
      %p352 = por %p350, %p351
      %p353 = scmp.ne.s32.totalorder %s345, %s347
      %p354 = scmp.eq.s32.totalorder %s38, 1
      %p355 = por %p353, %p354
      %p356 = scmp.ne.s32.totalorder %s347, %s348
      %p357 = scmp.eq.s32.totalorder %s38, 0
      %p358 = por %p356, %p357
      %p359 = scmp.ne.s32.totalorder %s347, %s348
      %p360 = scmp.eq.s32.totalorder %s39, 1
      %p361 = por %p359, %p360
      %p363 = scmp.ne.s32.totalorder %s348, %s362
      %p364 = scmp.eq.s32.totalorder %s39, 0
      %p365 = por %p363, %p364
      %s367 = sadd.s32 %s366, 1
      %p370 = scmp.eq.s32.totalorder %s33, 1
      %p371 = scmp.ne.s32.totalorder %s366, %s368
      %p372 = scmp.eq.s32.totalorder %s33, 0
      %p373 = por %p371, %p372
      %p374 = scmp.ne.s32.totalorder %s366, %s368
      %p375 = scmp.eq.s32.totalorder %s38, 1
      %p376 = por %p374, %p375
      %p377 = scmp.ne.s32.totalorder %s368, %s369
      %p378 = scmp.eq.s32.totalorder %s38, 0
      %p379 = por %p377, %p378
      %p380 = scmp.ne.s32.totalorder %s368, %s369
      %p381 = scmp.eq.s32.totalorder %s39, 1
      %p382 = por %p380, %p381
      %p384 = scmp.ne.s32.totalorder %s369, %s383
      %p385 = scmp.eq.s32.totalorder %s39, 0
      %p386 = por %p384, %p385
      %s387 = ssub.s32 %s33, %s40
      %p388 = scmp.eq.s32.totalorder %s387, 0
      %s390 = sadd.s32 %s389, 1
      %s391 = scalar_select %p388, %s389, %s390
      %p394 = pneg %p388
      %p395 = scmp.eq.s32.totalorder %s33, 1
      %p396 = por %p394, %p395
      %p397 = scmp.ne.s32.totalorder %s389, %s392
      %p398 = scmp.eq.s32.totalorder %s33, 0
      %p399 = por %p397, %p398
      %p400 = scmp.ne.s32.totalorder %s389, %s392
      %p401 = scmp.eq.s32.totalorder %s38, 1
      %p402 = por %p400, %p401
      %p403 = scmp.ne.s32.totalorder %s392, %s393
      %p404 = scmp.eq.s32.totalorder %s38, 0
      %p405 = por %p403, %p404
      %p406 = scmp.ne.s32.totalorder %s392, %s393
      %p407 = scmp.eq.s32.totalorder %s39, 1
      %p408 = por %p406, %p407
      %p410 = scmp.ne.s32.totalorder %s393, %s409
      %p411 = scmp.eq.s32.totalorder %s39, 0
      %p412 = por %p410, %p411
      %p413 = scmp.le.s32.totalorder 1, %s33
      %p414 = scmp.lt.s32.totalorder %s33, 3
      %p415 = pnand %p413, %p414
      %p416 = pneg %p415
      // Predicated region
      $region9: #{tpu_custom_call.1} parent=5 // pred_check
        _
      $region10: #{tpu_custom_call.1} parent=5 // pred_check_branch
        %418 = sbr.rel (%p415) target = $region12
      $region11: #{tpu_custom_call.1} parent=5 // pred_region
        %s419 = ssub.s32 %s33, 1
        // Predicated region
        $region13: #{tpu_custom_call.1} parent=11 // pred_check
          %p420 = pneg %p106
        $region14: #{tpu_custom_call.1} parent=11 // pred_check_branch
          %422 = sbr.rel (%p420) target = $region16
        $region15: #{tpu_custom_call.1} parent=11 // pred_region
          _
        $region16: #{tpu_custom_call.1} parent=11 // pred_fallthru
          _
        // Predicated region
        $region17: #{tpu_custom_call.1} parent=11 // pred_check
          %p423 = pneg %p127
        $region18: #{tpu_custom_call.1} parent=11 // pred_check_branch
          %425 = sbr.rel (%p423) target = $region20
        $region19: #{tpu_custom_call.1} parent=11 // pred_region
          _
        $region20: #{tpu_custom_call.1} parent=11 // pred_fallthru
          _
        // Predicated region
        $region21: #{tpu_custom_call.1} parent=11 // pred_check
          %p426 = pneg %p148
        $region22: #{tpu_custom_call.1} parent=11 // pred_check_branch
          %428 = sbr.rel (%p426) target = $region24
        $region23: #{tpu_custom_call.1} parent=11 // pred_region
          _
        $region24: #{tpu_custom_call.1} parent=11 // pred_fallthru
          _
        // Predicated region
        $region25: #{tpu_custom_call.1} parent=11 // pred_check
          %p429 = pneg %p169
        $region26: #{tpu_custom_call.1} parent=11 // pred_check_branch
          %431 = sbr.rel (%p429) target = $region28
        $region27: #{tpu_custom_call.1} parent=11 // pred_region
          _
        $region28: #{tpu_custom_call.1} parent=11 // pred_fallthru
          _
        // Predicated region
        $region29: #{tpu_custom_call.1} parent=11 // pred_check
          %p432 = pneg %p190
        $region30: #{tpu_custom_call.1} parent=11 // pred_check_branch
          %434 = sbr.rel (%p432) target = $region32
        $region31: #{tpu_custom_call.1} parent=11 // pred_region
          _
        $region32: #{tpu_custom_call.1} parent=11 // pred_fallthru
          _
        // Predicated region
        $region33: #{tpu_custom_call.1} parent=11 // pred_check
          %p435 = pneg %p211
        $region34: #{tpu_custom_call.1} parent=11 // pred_check_branch
          %437 = sbr.rel (%p435) target = $region36
        $region35: #{tpu_custom_call.1} parent=11 // pred_region
          _
        $region36: #{tpu_custom_call.1} parent=11 // pred_fallthru
          _
        // Predicated region
        $region37: #{tpu_custom_call.1} parent=11 // pred_check
          %p438 = pneg %p232
        $region38: #{tpu_custom_call.1} parent=11 // pred_check_branch
          %440 = sbr.rel (%p438) target = $region40
        $region39: #{tpu_custom_call.1} parent=11 // pred_region
          %s442 = ssub.s32 2048, 2048
          %443 = vsyncadd [#allocation7], %s442
          %s444 = sshll.u32 [#allocation8], 4
          %s445 = int_to_ptr.vmem [resolvable:$true] %s444
          %450 = dma.hbm_to_vmem [thread:$0]  %s8, 2048, %s445, [#allocation7], 128, 128, 8
        $region40: #{tpu_custom_call.1} parent=11 // pred_fallthru
          _
        // Predicated region
        $region41: #{tpu_custom_call.1} parent=11 // pred_check
          %p451 = pneg %p253
        $region42: #{tpu_custom_call.1} parent=11 // pred_check_branch
          %453 = sbr.rel (%p451) target = $region44
        $region43: #{tpu_custom_call.1} parent=11 // pred_region
          %s455 = ssub.s32 4096, 4096
          %456 = vsyncadd [#allocation10], %s455
          %s457 = sshll.u32 [#allocation9], 4
          %s458 = int_to_ptr.vmem [resolvable:$true] %s457
          %463 = dma.hbm_to_vmem [thread:$0]  %s9, 4096, %s458, [#allocation10], 256, 256, 16
        $region44: #{tpu_custom_call.1} parent=11 // pred_fallthru
          _
        // Predicated region
        $region45: #{tpu_custom_call.1} parent=11 // pred_check
          %p464 = pneg %p274
        $region46: #{tpu_custom_call.1} parent=11 // pred_check_branch
          %466 = sbr.rel (%p464) target = $region48
        $region47: #{tpu_custom_call.1} parent=11 // pred_region
          _
        $region48: #{tpu_custom_call.1} parent=11 // pred_fallthru
          _
        // Predicated region
        $region49: #{tpu_custom_call.1} parent=11 // pred_check
          %p467 = pneg %p295
        $region50: #{tpu_custom_call.1} parent=11 // pred_check_branch
          %469 = sbr.rel (%p467) target = $region52
        $region51: #{tpu_custom_call.1} parent=11 // pred_region
          _
        $region52: #{tpu_custom_call.1} parent=11 // pred_fallthru
          _
        // Predicated region
        $region53: #{tpu_custom_call.1} parent=11 // pred_check
          %p470 = pneg %p316
        $region54: #{tpu_custom_call.1} parent=11 // pred_check_branch
          %472 = sbr.rel (%p470) target = $region56
        $region55: #{tpu_custom_call.1} parent=11 // pred_region
          %s474 = ssub.s32 8192, 8192
          %475 = vsyncadd [#allocation10], %s474
          %s476 = sshll.u32 [#allocation11], 4
          %s477 = int_to_ptr.vmem [resolvable:$true] %s476
          %482 = dma.hbm_to_vmem [thread:$0]  %s12, 8192, %s477, [#allocation10], 512, 512, 32
        $region56: #{tpu_custom_call.1} parent=11 // pred_fallthru
          _
        // Predicated region
        $region57: #{tpu_custom_call.1} parent=11 // pred_check
          %p483 = pneg %p337
        $region58: #{tpu_custom_call.1} parent=11 // pred_check_branch
          %485 = sbr.rel (%p483) target = $region60
        $region59: #{tpu_custom_call.1} parent=11 // pred_region
          _
        $region60: #{tpu_custom_call.1} parent=11 // pred_fallthru
          _
        // Predicated region
        $region61: #{tpu_custom_call.1} parent=11 // pred_check
          %p486 = pneg %p358
        $region62: #{tpu_custom_call.1} parent=11 // pred_check_branch
          %488 = sbr.rel (%p486) target = $region64
        $region63: #{tpu_custom_call.1} parent=11 // pred_region
          %s490 = ssub.s32 8192, 8192
          %491 = vsyncadd [#allocation13], %s490
          %s492 = sshll.u32 [#allocation12], 4
          %s493 = int_to_ptr.vmem [resolvable:$true] %s492
          %498 = dma.hbm_to_vmem [thread:$0]  %s14, 8192, %s493, [#allocation13], 128, 128, 8
        $region64: #{tpu_custom_call.1} parent=11 // pred_fallthru
          _
        // Predicated region
        $region65: #{tpu_custom_call.1} parent=11 // pred_check
          %p499 = pneg %p379
        $region66: #{tpu_custom_call.1} parent=11 // pred_check_branch
          %501 = sbr.rel (%p499) target = $region68
        $region67: #{tpu_custom_call.1} parent=11 // pred_region
          _
        $region68: #{tpu_custom_call.1} parent=11 // pred_fallthru
          _
      $region12: #{tpu_custom_call.1} parent=5 // pred_fallthru
        _
      %p502 = scmp.lt.s32.totalorder %s33, 2
      // Predicated region
      $region69: #{tpu_custom_call.1} parent=5 // pred_check
        %p503 = pneg %p502
      $region70: #{tpu_custom_call.1} parent=5 // pred_check_branch
        %505 = sbr.rel (%p503) target = $region72
      $region71: #{tpu_custom_call.1} parent=5 // pred_region
        // Predicated region
        $region73: #{tpu_custom_call.1} parent=71 // pred_check
          %p506 = pneg %p53
        $region74: #{tpu_custom_call.1} parent=71 // pred_check_branch
          %508 = sbr.rel (%p506) target = $region76
        $region75: #{tpu_custom_call.1} parent=71 // pred_region
          %s509 = sand.u32 %s43, 1
          %s510 = scalar_lea.sflag [#allocation4], %s509
          %s511 = sand.u32 %s43, 1
          %s512 = smul.addr %s511, 8
          %s513 = scalar_lea.vmem [#allocation3], %s512
          %s515 = ssub.s32 128, 128
          %516 = vsyncadd %s510, %s515
          %s517 = smul.addr %s33, 128
          %s518 = scalar_lea.hbm %s0, %s517
          %s520 = sshll.u32 %s513, 4
          %s521 = int_to_ptr.vmem [resolvable:$true] %s520
          %523 = dma.hbm_to_vmem [thread:$0]  %s518, 128, %s521, %s510
        $region76: #{tpu_custom_call.1} parent=71 // pred_fallthru
          _
        // Predicated region
        $region77: #{tpu_custom_call.1} parent=71 // pred_check
          %p524 = pneg %p79
        $region78: #{tpu_custom_call.1} parent=71 // pred_check_branch
          %526 = sbr.rel (%p524) target = $region80
        $region79: #{tpu_custom_call.1} parent=71 // pred_region
          %s527 = sand.u32 %s33, 1
          %s528 = scalar_lea.sflag [#allocation7], %s527
          %s529 = sand.u32 %s69, 1
          %s530 = smul.addr %s529, 16
          %s531 = scalar_lea.vmem [#allocation6], %s530
          %s533 = ssub.s32 256, 256
          %534 = vsyncadd %s528, %s533
          %s535 = smul.addr %s33, 2
          %s536 = smul.addr %s535, 128
          %s537 = scalar_lea.hbm %s1, %s536
          %s538 = sshll.u32 %s531, 4
          %s539 = int_to_ptr.vmem [resolvable:$true] %s538
          %544 = dma.hbm_to_vmem [thread:$0]  %s537, 256, %s539, %s528, 128, 128, 8
        $region80: #{tpu_custom_call.1} parent=71 // pred_fallthru
          _
      $region72: #{tpu_custom_call.1} parent=5 // pred_fallthru
        _
      %p545 = scmp.le.s32.totalorder 1, %s33
      %p546 = scmp.lt.s32.totalorder %s33, 3
      %p547 = pnand %p545, %p546
      %p548 = pneg %p547
      // Predicated region
      $region81: #{tpu_custom_call.1} parent=5 // pred_check
        _
      $region82: #{tpu_custom_call.1} parent=5 // pred_check_branch
        %550 = sbr.rel (%p547) target = $region84
      $region83: #{tpu_custom_call.1} parent=5 // pred_region
        %s551 = ssub.s32 %s33, 1
        %s552 = sand.u32 %s46, 1
        %s553 = scalar_lea.sflag [#allocation4], %s552
        %s554 = sand.u32 %s46, 1
        %s555 = smul.addr %s554, 8
        %s556 = scalar_lea.vmem [#allocation3], %s555
        // Predicated region
        $region85: #{tpu_custom_call.1} parent=83 // pred_check
          %p557 = pneg %p59
        $region86: #{tpu_custom_call.1} parent=83 // pred_check_branch
          %559 = sbr.rel (%p557) target = $region88
        $region87: #{tpu_custom_call.1} parent=83 // pred_region
          %560 = dma.done %s553, 128
        $region88: #{tpu_custom_call.1} parent=83 // pred_fallthru
          _
        %s561 = sand.u32 %s38, 1
        %s562 = scalar_lea.sflag [#allocation7], %s561
        %s563 = sand.u32 %s72, 1
        %s564 = smul.addr %s563, 16
        %s565 = scalar_lea.vmem [#allocation6], %s564
        // Predicated region
        $region89: #{tpu_custom_call.1} parent=83 // pred_check
          %p566 = pneg %p85
        $region90: #{tpu_custom_call.1} parent=83 // pred_check_branch
          %568 = sbr.rel (%p566) target = $region92
        $region91: #{tpu_custom_call.1} parent=83 // pred_region
          %569 = dma.done %s562, 256
        $region92: #{tpu_custom_call.1} parent=83 // pred_fallthru
          _
        // Predicated region
        $region93: #{tpu_custom_call.1} parent=83 // pred_check
          %p570 = pneg %p232
        $region94: #{tpu_custom_call.1} parent=83 // pred_check_branch
          %572 = sbr.rel (%p570) target = $region96
        $region95: #{tpu_custom_call.1} parent=83 // pred_region
          %573 = dma.done [#allocation7], 2048
        $region96: #{tpu_custom_call.1} parent=83 // pred_fallthru
          _
        // Predicated region
        $region97: #{tpu_custom_call.1} parent=83 // pred_check
          %p574 = pneg %p253
        $region98: #{tpu_custom_call.1} parent=83 // pred_check_branch
          %576 = sbr.rel (%p574) target = $region100
        $region99: #{tpu_custom_call.1} parent=83 // pred_region
          %577 = dma.done [#allocation10], 4096
        $region100: #{tpu_custom_call.1} parent=83 // pred_fallthru
          _
        // Predicated region
        $region101: #{tpu_custom_call.1} parent=83 // pred_check
          %p578 = pneg %p316
        $region102: #{tpu_custom_call.1} parent=83 // pred_check_branch
          %580 = sbr.rel (%p578) target = $region104
        $region103: #{tpu_custom_call.1} parent=83 // pred_region
          %581 = dma.done [#allocation10], 8192
        $region104: #{tpu_custom_call.1} parent=83 // pred_fallthru
          _
        // Predicated region
        $region105: #{tpu_custom_call.1} parent=83 // pred_check
          %p582 = pneg %p358
        $region106: #{tpu_custom_call.1} parent=83 // pred_check_branch
          %584 = sbr.rel (%p582) target = $region108
        $region107: #{tpu_custom_call.1} parent=83 // pred_region
          %585 = dma.done [#allocation13], 8192
        $region108: #{tpu_custom_call.1} parent=83 // pred_fallthru
          _
        %s586 = sand.u32 %s46, 1
        %s587 = scalar_lea.sflag [#allocation4], %s586
        %s588 = sand.u32 %s46, 1
        %s589 = smul.addr %s588, 8
        %s590 = scalar_lea.vmem [#allocation3], %s589
        %p591 = pneg %p59
        %p592 = pneg %p56
        %s593 = sand.u32 %s38, 1
        %s594 = scalar_lea.sflag [#allocation7], %s593
        %s595 = sand.u32 %s72, 1
        %s596 = smul.addr %s595, 16
        %s597 = scalar_lea.vmem [#allocation6], %s596
        %p598 = pneg %p85
        %p599 = pneg %p82
        %p600 = pneg %p106
        %p601 = pneg %p103
        %p602 = pneg %p127
        %p603 = pneg %p124
        %p604 = pneg %p148
        %p605 = pneg %p145
        %p606 = pneg %p169
        %p607 = pneg %p166
        %p608 = pneg %p190
        %p609 = pneg %p187
        %p610 = pneg %p211
        %p611 = pneg %p208
        %p612 = pneg %p232
        %p613 = pneg %p229
        %p614 = pneg %p253
        %p615 = pneg %p250
        %p616 = pneg %p274
        %p617 = pneg %p271
        %p618 = pneg %p295
        %p619 = pneg %p292
        %p620 = pneg %p316
        %p621 = pneg %p313
        %p622 = pneg %p337
        %p623 = pneg %p334
        %p624 = pneg %p358
        %p625 = pneg %p355
        %p626 = pneg %p379
        %p627 = pneg %p376
        %p628 = pneg %p405
        %p629 = pneg %p402
        %s630 = sand.u32 %s392, 1
        %s631 = scalar_lea.sflag [#allocation5], %s630
        %s632 = sand.u32 %s392, 1
        %s633 = smul.addr %s632, 8
        %s634 = scalar_lea.vmem [#allocation14], %s633
        %v635 = vld [vmem:[%s556] sm:$0xff]
        %v636 = vld [vmem:[%s565] sm:$0xff]
        %v637 = vld [vmem:[%s565 + $0x8] sm:$0xff]
        %v638 = vld [vmem:[%s2] sm:$0x1]
        %v639 = vld [vmem:[%s3] sm:$0x1]
        %640 = vadd.xlane.f32.xlu0 %v635
        %v641 = vpop.xlane.xlu0 %640
        %v642 = vrcp.pop 128.0
        %v643 = vmul.f32 %v641, %v642
        %v644 = vsub.f32 %v635, %v643
        %v645 = vmul.f32 %v644, %v644
        %646 = vadd.xlane.f32.xlu0 %v645
        %v647 = vpop.xlane.xlu0 %646
        %v648 = vmul.f32 %v647, %v642
        %v649 = vadd.f32 %v648, 1e-05
        %v650 = vrsqrt.pop %v649
        %v651 = vmul.f32 %v644, %v650
        %v653 = vlaneseq
        %v654 = vshrl.u32 %v653, 7
        %v655 = vsub.s32 0, %v654
        %v656 = vrot.slane %v638, %v655
        %v658 = vmul.f32 %v651, %v656
        %v660 = vlaneseq
        %v661 = vshrl.u32 %v660, 7
        %v662 = vsub.s32 0, %v661
        %v663 = vrot.slane %v639, %v662
        %v665 = vadd.f32 %v658, %v663
        %v666 = vld [vmem:[%s4] sm:$0x1]
        %v667 = vld [vmem:[%s5] sm:$0x1]
        %668 = vadd.xlane.f32.xlu0 %v636
        %v669 = vpop.xlane.xlu0 %668
        %670 = vadd.xlane.f32.xlu0 %v637
        %v671 = vpop.xlane.xlu0 %670
        %v672 = vmul.f32 %v669, %v642
        %v673 = vmul.f32 %v671, %v642
        %v674 = vsub.f32 %v636, %v672
        %v675 = vsub.f32 %v637, %v673
        %v676 = vmul.f32 %v674, %v674
        %v677 = vmul.f32 %v675, %v675
        %678 = vadd.xlane.f32.xlu0 %v676
        %v679 = vpop.xlane.xlu0 %678
        %680 = vadd.xlane.f32.xlu0 %v677
        %v681 = vpop.xlane.xlu0 %680
        %v682 = vmul.f32 %v679, %v642
        %v683 = vmul.f32 %v681, %v642
        %v684 = vadd.f32 %v682, 1e-05
        %v685 = vadd.f32 %v683, 1e-05
        %v686 = vrsqrt.pop %v684
        %v687 = vrsqrt.pop %v685
        %v688 = vmul.f32 %v674, %v686
        %v689 = vmul.f32 %v675, %v687
        %v691 = vlaneseq
        %v692 = vshrl.u32 %v691, 7
        %v693 = vsub.s32 0, %v692
        %v694 = vrot.slane %v666, %v693
        %v696 = vmul.f32 %v688, %v694
        %v697 = vmul.f32 %v689, %v694
        %v699 = vlaneseq
        %v700 = vshrl.u32 %v699, 7
        %v701 = vsub.s32 0, %v700
        %v702 = vrot.slane %v667, %v701
        %v704 = vadd.f32 %v696, %v702
        %v705 = vadd.f32 %v697, %v702
        %v706 = vld [vmem:[#allocation8] sm:$0xff]
        %v707 = vld [vmem:[#allocation8 + $0x8] sm:$0xff]
        %v708 = vld [vmem:[#allocation8 + $0x10] sm:$0xff]
        %v709 = vld [vmem:[#allocation8 + $0x18] sm:$0xff]
        %v710 = vld [vmem:[#allocation8 + $0x20] sm:$0xff]
        %v711 = vld [vmem:[#allocation8 + $0x28] sm:$0xff]
        %v712 = vld [vmem:[#allocation8 + $0x30] sm:$0xff]
        %v713 = vld [vmem:[#allocation8 + $0x38] sm:$0xff]
        %v714 = vld [vmem:[#allocation8 + $0x40] sm:$0xff]
        %v715 = vld [vmem:[#allocation8 + $0x48] sm:$0xff]
        %v716 = vld [vmem:[#allocation8 + $0x50] sm:$0xff]
        %v717 = vld [vmem:[#allocation8 + $0x58] sm:$0xff]
        %v718 = vld [vmem:[#allocation8 + $0x60] sm:$0xff]
        %v719 = vld [vmem:[#allocation8 + $0x68] sm:$0xff]
        %v720 = vld [vmem:[#allocation8 + $0x70] sm:$0xff]
        %v721 = vld [vmem:[#allocation8 + $0x78] sm:$0xff]
        %v722 = vld [vmem:[%s10] sm:$0x1]
        %v724 = vlaneseq
        %v725 = vshrl.u32 %v724, 7
        %v726 = vsub.s32 0, %v725
        %v727 = vrot.slane %v722, %v726
        %729 = vmatprep.subr.mxu0 0.0
        %730 = vmatpush1.msra.mxu0 %v706
        %731 = vmatprep.subr.mxu0 0.0
        %732 = vmatpush1.msra.mxu0 %v707
        %733 = vmatprep.subr.mxu0 0.0
        %734 = vmatpush1.msra.mxu0 %v708
        %735 = vmatprep.subr.mxu0 0.0
        %736 = vmatpush1.msra.mxu0 %v709
        %737 = vmatprep.subr.mxu0 0.0
        %738 = vmatpush1.msra.mxu0 %v710
        %739 = vmatprep.subr.mxu0 0.0
        %740 = vmatpush1.msra.mxu0 %v711
        %741 = vmatprep.subr.mxu0 0.0
        %742 = vmatpush1.msra.mxu0 %v712
        %743 = vmatprep.subr.mxu0 0.0
        %744 = vmatpush1.msra.mxu0 %v713
        %745 = vmatprep.subr.mxu0 0.0
        %746 = vmatpush1.msra.mxu0 %v714
        %747 = vmatprep.subr.mxu0 0.0
        %748 = vmatpush1.msra.mxu0 %v715
        %749 = vmatprep.subr.mxu0 0.0
        %750 = vmatpush1.msra.mxu0 %v716
        %751 = vmatprep.subr.mxu0 0.0
        %752 = vmatpush1.msra.mxu0 %v717
        %753 = vmatprep.subr.mxu0 0.0
        %754 = vmatpush1.msra.mxu0 %v718
        %755 = vmatprep.subr.mxu0 0.0
        %756 = vmatpush1.msra.mxu0 %v719
        %757 = vmatprep.subr.mxu0 0.0
        %758 = vmatpush1.msra.mxu0 %v720
        %759 = vmatprep.subr.mxu0 0.0
        %760 = vmatpush1.msra.mxu0 %v721
        %761 = vmatprep.subr.mxu0 0.0
        %762 = vmatpush1.msra.mxu0 0.0
        %763 = vmatprep.subr.mxu0 0.0
        %764 = vmatpush1.msra.mxu0 0.0
        %765 = vmatprep.subr.mxu0 0.0
        %766 = vmatpush1.msra.mxu0 0.0
        %767 = vmatprep.subr.mxu0 0.0
        %768 = vmatpush1.msra.mxu0 0.0
        %769 = vmatprep.subr.mxu0 0.0
        %770 = vmatpush1.msra.mxu0 0.0
        %771 = vmatprep.subr.mxu0 0.0
        %772 = vmatpush1.msra.mxu0 0.0
        %773 = vmatprep.subr.mxu0 0.0
        %774 = vmatpush1.msra.mxu0 0.0
        %775 = vmatprep.subr.mxu0 0.0
        %776 = vmatpush1.msra.mxu0 0.0
        %777 = vmatprep.subr.mxu0 0.0
        %778 = vmatpush1.msra.mxu0 0.0
        %779 = vmatprep.subr.mxu0 0.0
        %780 = vmatpush1.msra.mxu0 0.0
        %781 = vmatprep.subr.mxu0 0.0
        %782 = vmatpush1.msra.mxu0 0.0
        %783 = vmatprep.subr.mxu0 0.0
        %784 = vmatpush1.msra.mxu0 0.0
        %785 = vmatprep.subr.mxu0 0.0
        %786 = vmatpush1.msra.mxu0 0.0
        %787 = vmatprep.subr.mxu0 0.0
        %788 = vmatpush1.msra.mxu0 0.0
        %789 = vmatprep.subr.mxu0 0.0
        %790 = vmatpush1.msra.mxu0 0.0
        %791 = vmatprep.subr.mxu0 0.0
        %792 = vmatpush1.msra.mxu0 0.0
        %793 = vmatprep.mubr.f32.mxu0 0.0
        %794 = vmatmul.mubr.f32.gmra.mrb[0].mxu0 %v665
        %v795 = vpop.f32.mrb[0].mxu0
        %v796 = vadd.f32 %v727, %v795
        %v797 = vpop.f32.mrb[0].mxu0
        %798 = vdwg.mxu0
        %v799 = vld [vmem:[#allocation9] sm:$0xff]
        %v800 = vld [vmem:[#allocation9 + $0x8] sm:$0xff]
        %v801 = vld [vmem:[#allocation9 + $0x10] sm:$0xff]
        %v802 = vld [vmem:[#allocation9 + $0x18] sm:$0xff]
        %v803 = vld [vmem:[#allocation9 + $0x20] sm:$0xff]
        %v804 = vld [vmem:[#allocation9 + $0x28] sm:$0xff]
        %v805 = vld [vmem:[#allocation9 + $0x30] sm:$0xff]
        %v806 = vld [vmem:[#allocation9 + $0x38] sm:$0xff]
        %v807 = vld [vmem:[#allocation9 + $0x40] sm:$0xff]
        %v808 = vld [vmem:[#allocation9 + $0x48] sm:$0xff]
        %v809 = vld [vmem:[#allocation9 + $0x50] sm:$0xff]
        %v810 = vld [vmem:[#allocation9 + $0x58] sm:$0xff]
        %v811 = vld [vmem:[#allocation9 + $0x60] sm:$0xff]
        %v812 = vld [vmem:[#allocation9 + $0x68] sm:$0xff]
        %v813 = vld [vmem:[#allocation9 + $0x70] sm:$0xff]
        %v814 = vld [vmem:[#allocation9 + $0x78] sm:$0xff]
        %v815 = vld [vmem:[#allocation9 + $0x80] sm:$0xff]
        %v816 = vld [vmem:[#allocation9 + $0x88] sm:$0xff]
        %v817 = vld [vmem:[#allocation9 + $0x90] sm:$0xff]
        %v818 = vld [vmem:[#allocation9 + $0x98] sm:$0xff]
        %v819 = vld [vmem:[#allocation9 + $0xa0] sm:$0xff]
        %v820 = vld [vmem:[#allocation9 + $0xa8] sm:$0xff]
        %v821 = vld [vmem:[#allocation9 + $0xb0] sm:$0xff]
        %v822 = vld [vmem:[#allocation9 + $0xb8] sm:$0xff]
        %v823 = vld [vmem:[#allocation9 + $0xc0] sm:$0xff]
        %v824 = vld [vmem:[#allocation9 + $0xc8] sm:$0xff]
        %v825 = vld [vmem:[#allocation9 + $0xd0] sm:$0xff]
        %v826 = vld [vmem:[#allocation9 + $0xd8] sm:$0xff]
        %v827 = vld [vmem:[#allocation9 + $0xe0] sm:$0xff]
        %v828 = vld [vmem:[#allocation9 + $0xe8] sm:$0xff]
        %v829 = vld [vmem:[#allocation9 + $0xf0] sm:$0xff]
        %v830 = vld [vmem:[#allocation9 + $0xf8] sm:$0xff]
        %v831 = vld [vmem:[%s11] sm:$0x3]
        %v833 = vlaneseq
        %v834 = vshrl.u32 %v833, 7
        %v835 = vsub.s32 0, %v834
        %v836 = vrot.slane %v831, %v835
        %v837 = vlaneseq
        %v838 = vshrl.u32 %v837, 7
        %v839 = vsub.s32 1, %v838
        %v840 = vrot.slane %v831, %v839
        %843 = vmatprep.subr.mxu0 %v800
        %844 = vmatpush1.msra.mxu0 %v799
        %845 = vmatprep.subr.mxu0 %v802
        %846 = vmatpush1.msra.mxu0 %v801
        %847 = vmatprep.subr.mxu0 %v804
        %848 = vmatpush1.msra.mxu0 %v803
        %849 = vmatprep.subr.mxu0 %v806
        %850 = vmatpush1.msra.mxu0 %v805
        %851 = vmatprep.subr.mxu0 %v808
        %852 = vmatpush1.msra.mxu0 %v807
        %853 = vmatprep.subr.mxu0 %v810
        %854 = vmatpush1.msra.mxu0 %v809
        %855 = vmatprep.subr.mxu0 %v812
        %856 = vmatpush1.msra.mxu0 %v811
        %857 = vmatprep.subr.mxu0 %v814
        %858 = vmatpush1.msra.mxu0 %v813
        %859 = vmatprep.subr.mxu0 %v816
        %860 = vmatpush1.msra.mxu0 %v815
        %861 = vmatprep.subr.mxu0 %v818
        %862 = vmatpush1.msra.mxu0 %v817
        %863 = vmatprep.subr.mxu0 %v820
        %864 = vmatpush1.msra.mxu0 %v819
        %865 = vmatprep.subr.mxu0 %v822
        %866 = vmatpush1.msra.mxu0 %v821
        %867 = vmatprep.subr.mxu0 %v824
        %868 = vmatpush1.msra.mxu0 %v823
        %869 = vmatprep.subr.mxu0 %v826
        %870 = vmatpush1.msra.mxu0 %v825
        %871 = vmatprep.subr.mxu0 %v828
        %872 = vmatpush1.msra.mxu0 %v827
        %873 = vmatprep.subr.mxu0 %v830
        %874 = vmatpush1.msra.mxu0 %v829
        %875 = vmatprep.subr.mxu0 0.0
        %876 = vmatpush1.msra.mxu0 0.0
        %877 = vmatprep.subr.mxu0 0.0
        %878 = vmatpush1.msra.mxu0 0.0
        %879 = vmatprep.subr.mxu0 0.0
        %880 = vmatpush1.msra.mxu0 0.0
        %881 = vmatprep.subr.mxu0 0.0
        %882 = vmatpush1.msra.mxu0 0.0
        %883 = vmatprep.subr.mxu0 0.0
        %884 = vmatpush1.msra.mxu0 0.0
        %885 = vmatprep.subr.mxu0 0.0
        %886 = vmatpush1.msra.mxu0 0.0
        %887 = vmatprep.subr.mxu0 0.0
        %888 = vmatpush1.msra.mxu0 0.0
        %889 = vmatprep.subr.mxu0 0.0
        %890 = vmatpush1.msra.mxu0 0.0
        %891 = vmatprep.subr.mxu0 0.0
        %892 = vmatpush1.msra.mxu0 0.0
        %893 = vmatprep.subr.mxu0 0.0
        %894 = vmatpush1.msra.mxu0 0.0
        %895 = vmatprep.subr.mxu0 0.0
        %896 = vmatpush1.msra.mxu0 0.0
        %897 = vmatprep.subr.mxu0 0.0
        %898 = vmatpush1.msra.mxu0 0.0
        %899 = vmatprep.subr.mxu0 0.0
        %900 = vmatpush1.msra.mxu0 0.0
        %901 = vmatprep.subr.mxu0 0.0
        %902 = vmatpush1.msra.mxu0 0.0
        %903 = vmatprep.subr.mxu0 0.0
        %904 = vmatpush1.msra.mxu0 0.0
        %905 = vmatprep.subr.mxu0 0.0
        %906 = vmatpush1.msra.mxu0 0.0
        %907 = vmatprep.mubr.f32.mxu0 0.0
        %908 = vmatmul.mubr.f32.gmra.mrb[0].mxu0 %v704
        %v909 = vpop.f32.mrb[0].mxu0
        %v910 = vadd.f32 %v836, %v909
        %v911 = vpop.f32.mrb[0].mxu0
        %v912 = vadd.f32 %v840, %v911
        %913 = vmatprep.mubr.f32.mxu0 0.0
        %914 = vmatmul.mubr.f32.gmra.mrb[0].mxu0 %v705
        %v915 = vpop.f32.mrb[0].mxu0
        %v916 = vadd.f32 %v836, %v915
        %v917 = vpop.f32.mrb[0].mxu0
        %v918 = vadd.f32 %v840, %v917
        %919 = vdwg.mxu0
        %vm920 = vcmask 523264
        %v922 = vsel %vm920, %v796, 0
        %v925 = vsel %vm920, %v910, 0
        %v928 = vsel %vm920, %v916, 0
        %930 = vmatprep.subr.mxu0 0.0
        %931 = vmatpush1.xpose.msra.mxu0 %v925
        %932 = vmatprep.subr.mxu0 0.0
        %933 = vmatpush1.xpose.msra.mxu0 %v928
        %934 = vmatprep.subr.mxu0 0.0
        %935 = vmatpush1.xpose.msra.mxu0 0.0
        %936 = vmatprep.subr.mxu0 0.0
        %937 = vmatpush1.xpose.msra.mxu0 0.0
        %938 = vmatprep.subr.mxu0 0.0
        %939 = vmatpush1.xpose.msra.mxu0 0.0
        %940 = vmatprep.subr.mxu0 0.0
        %941 = vmatpush1.xpose.msra.mxu0 0.0
        %942 = vmatprep.subr.mxu0 0.0
        %943 = vmatpush1.xpose.msra.mxu0 0.0
        %944 = vmatprep.subr.mxu0 0.0
        %945 = vmatpush1.xpose.msra.mxu0 0.0
        %946 = vmatprep.subr.mxu0 0.0
        %947 = vmatpush1.xpose.msra.mxu0 0.0
        %948 = vmatprep.subr.mxu0 0.0
        %949 = vmatpush1.xpose.msra.mxu0 0.0
        %950 = vmatprep.subr.mxu0 0.0
        %951 = vmatpush1.xpose.msra.mxu0 0.0
        %952 = vmatprep.subr.mxu0 0.0
        %953 = vmatpush1.xpose.msra.mxu0 0.0
        %954 = vmatprep.subr.mxu0 0.0
        %955 = vmatpush1.xpose.msra.mxu0 0.0
        %956 = vmatprep.subr.mxu0 0.0
        %957 = vmatpush1.xpose.msra.mxu0 0.0
        %958 = vmatprep.subr.mxu0 0.0
        %959 = vmatpush1.xpose.msra.mxu0 0.0
        %960 = vmatprep.subr.mxu0 0.0
        %961 = vmatpush1.xpose.msra.mxu0 0.0
        %962 = vmatprep.subr.mxu0 0.0
        %963 = vmatpush1.xpose.msra.mxu0 0.0
        %964 = vmatprep.subr.mxu0 0.0
        %965 = vmatpush1.xpose.msra.mxu0 0.0
        %966 = vmatprep.subr.mxu0 0.0
        %967 = vmatpush1.xpose.msra.mxu0 0.0
        %968 = vmatprep.subr.mxu0 0.0
        %969 = vmatpush1.xpose.msra.mxu0 0.0
        %970 = vmatprep.subr.mxu0 0.0
        %971 = vmatpush1.xpose.msra.mxu0 0.0
        %972 = vmatprep.subr.mxu0 0.0
        %973 = vmatpush1.xpose.msra.mxu0 0.0
        %974 = vmatprep.subr.mxu0 0.0
        %975 = vmatpush1.xpose.msra.mxu0 0.0
        %976 = vmatprep.subr.mxu0 0.0
        %977 = vmatpush1.xpose.msra.mxu0 0.0
        %978 = vmatprep.subr.mxu0 0.0
        %979 = vmatpush1.xpose.msra.mxu0 0.0
        %980 = vmatprep.subr.mxu0 0.0
        %981 = vmatpush1.xpose.msra.mxu0 0.0
        %982 = vmatprep.subr.mxu0 0.0
        %983 = vmatpush1.xpose.msra.mxu0 0.0
        %984 = vmatprep.subr.mxu0 0.0
        %985 = vmatpush1.xpose.msra.mxu0 0.0
        %986 = vmatprep.subr.mxu0 0.0
        %987 = vmatpush1.xpose.msra.mxu0 0.0
        %988 = vmatprep.subr.mxu0 0.0
        %989 = vmatpush1.xpose.msra.mxu0 0.0
        %990 = vmatprep.subr.mxu0 0.0
        %991 = vmatpush1.xpose.msra.mxu0 0.0
        %992 = vmatprep.subr.mxu0 0.0
        %993 = vmatpush1.xpose.msra.mxu0 0.0
        %994 = vmatprep.mubr.f32.mxu0 0.0
        %995 = vmatmul.mubr.f32.gmra.mrb[0].mxu0 %v922
        %v996 = vpop.f32.mrb[0].mxu0
        %v997 = vadd.f32 0.0, %v996
        %v998 = vpop.f32.mrb[0].mxu0
        %999 = vdwg.mxu0
        %vm1000 = vcmask 130048
        %v1001 = vsel %vm1000, %v997, -inf
        %1002 = vmax.xlane.f32.xlu0 %v1001
        %v1003 = vpop.xlane.xlu0 %1002
        %v1004 = vsub.f32 %v997, %v1003
        %v1005 = vmul.f32 %v1004, 1.442695
        %v1006 = vpow.pop %v1005
        %v1007 = vsel %vm1000, %v1006, 0.0
        %1008 = vadd.xlane.f32.xlu0 %v1007
        %v1009 = vpop.xlane.xlu0 %1008
        %v1010 = vrcp.pop %v1009
        %v1011 = vmul.f32 %v1006, %v1010
        %v1013 = vsel %vm1000, %v1011, 0
        %1015 = vmatprep.subr.mxu0 0.0
        %1016 = vmatpush1.msra.mxu0 %v912
        %1017 = vmatprep.subr.mxu0 0.0
        %1018 = vmatpush1.msra.mxu0 %v918
        %1019 = vmatprep.subr.mxu0 0.0
        %1020 = vmatpush1.msra.mxu0 0.0
        %1021 = vmatprep.subr.mxu0 0.0
        %1022 = vmatpush1.msra.mxu0 0.0
        %1023 = vmatprep.subr.mxu0 0.0
        %1024 = vmatpush1.msra.mxu0 0.0
        %1025 = vmatprep.subr.mxu0 0.0
        %1026 = vmatpush1.msra.mxu0 0.0
        %1027 = vmatprep.subr.mxu0 0.0
        %1028 = vmatpush1.msra.mxu0 0.0
        %1029 = vmatprep.subr.mxu0 0.0
        %1030 = vmatpush1.msra.mxu0 0.0
        %1031 = vmatprep.subr.mxu0 0.0
        %1032 = vmatpush1.msra.mxu0 0.0
        %1033 = vmatprep.subr.mxu0 0.0
        %1034 = vmatpush1.msra.mxu0 0.0
        %1035 = vmatprep.subr.mxu0 0.0
        %1036 = vmatpush1.msra.mxu0 0.0
        %1037 = vmatprep.subr.mxu0 0.0
        %1038 = vmatpush1.msra.mxu0 0.0
        %1039 = vmatprep.subr.mxu0 0.0
        %1040 = vmatpush1.msra.mxu0 0.0
        %1041 = vmatprep.subr.mxu0 0.0
        %1042 = vmatpush1.msra.mxu0 0.0
        %1043 = vmatprep.subr.mxu0 0.0
        %1044 = vmatpush1.msra.mxu0 0.0
        %1045 = vmatprep.subr.mxu0 0.0
        %1046 = vmatpush1.msra.mxu0 0.0
        %1047 = vmatprep.subr.mxu0 0.0
        %1048 = vmatpush1.msra.mxu0 0.0
        %1049 = vmatprep.subr.mxu0 0.0
        %1050 = vmatpush1.msra.mxu0 0.0
        %1051 = vmatprep.subr.mxu0 0.0
        %1052 = vmatpush1.msra.mxu0 0.0
        %1053 = vmatprep.subr.mxu0 0.0
        %1054 = vmatpush1.msra.mxu0 0.0
        %1055 = vmatprep.subr.mxu0 0.0
        %1056 = vmatpush1.msra.mxu0 0.0
        %1057 = vmatprep.subr.mxu0 0.0
        %1058 = vmatpush1.msra.mxu0 0.0
        %1059 = vmatprep.subr.mxu0 0.0
        %1060 = vmatpush1.msra.mxu0 0.0
        %1061 = vmatprep.subr.mxu0 0.0
        %1062 = vmatpush1.msra.mxu0 0.0
        %1063 = vmatprep.subr.mxu0 0.0
        %1064 = vmatpush1.msra.mxu0 0.0
        %1065 = vmatprep.subr.mxu0 0.0
        %1066 = vmatpush1.msra.mxu0 0.0
        %1067 = vmatprep.subr.mxu0 0.0
        %1068 = vmatpush1.msra.mxu0 0.0
        %1069 = vmatprep.subr.mxu0 0.0
        %1070 = vmatpush1.msra.mxu0 0.0
        %1071 = vmatprep.subr.mxu0 0.0
        %1072 = vmatpush1.msra.mxu0 0.0
        %1073 = vmatprep.subr.mxu0 0.0
        %1074 = vmatpush1.msra.mxu0 0.0
        %1075 = vmatprep.subr.mxu0 0.0
        %1076 = vmatpush1.msra.mxu0 0.0
        %1077 = vmatprep.subr.mxu0 0.0
        %1078 = vmatpush1.msra.mxu0 0.0
        %1079 = vmatprep.mubr.f32.mxu0 0.0
        %1080 = vmatmul.mubr.f32.gmra.mrb[0].mxu0 %v1013
        %v1081 = vpop.f32.mrb[0].mxu0
        %v1082 = vadd.f32 0.0, %v1081
        %v1083 = vpop.f32.mrb[0].mxu0
        %1084 = vdwg.mxu0
        %1085 = vst.msk [vmem:[#allocation2] sm:$0xff] %vm920, %v1082
        %1086 = vrot.lane.b32.xlu0 %v796, 64
        %v1087 = vpop.permute.xlu0 %1086
        %1088 = vrot.lane.b32.xlu0 %v910, 64
        %v1089 = vpop.permute.xlu0 %1088
        %1090 = vrot.lane.b32.xlu0 %v916, 64
        %v1091 = vpop.permute.xlu0 %1090
        %v1092 = vsel %vm920, %v1087, 0
        %v1094 = vsel %vm920, %v1089, 0
        %v1096 = vsel %vm920, %v1091, 0
        %1098 = vmatprep.subr.mxu0 0.0
        %1099 = vmatpush1.xpose.msra.mxu0 %v1094
        %1100 = vmatprep.subr.mxu0 0.0
        %1101 = vmatpush1.xpose.msra.mxu0 %v1096
        %1102 = vmatprep.subr.mxu0 0.0
        %1103 = vmatpush1.xpose.msra.mxu0 0.0
        %1104 = vmatprep.subr.mxu0 0.0
        %1105 = vmatpush1.xpose.msra.mxu0 0.0
        %1106 = vmatprep.subr.mxu0 0.0
        %1107 = vmatpush1.xpose.msra.mxu0 0.0
        %1108 = vmatprep.subr.mxu0 0.0
        %1109 = vmatpush1.xpose.msra.mxu0 0.0
        %1110 = vmatprep.subr.mxu0 0.0
        %1111 = vmatpush1.xpose.msra.mxu0 0.0
        %1112 = vmatprep.subr.mxu0 0.0
        %1113 = vmatpush1.xpose.msra.mxu0 0.0
        %1114 = vmatprep.subr.mxu0 0.0
        %1115 = vmatpush1.xpose.msra.mxu0 0.0
        %1116 = vmatprep.subr.mxu0 0.0
        %1117 = vmatpush1.xpose.msra.mxu0 0.0
        %1118 = vmatprep.subr.mxu0 0.0
        %1119 = vmatpush1.xpose.msra.mxu0 0.0
        %1120 = vmatprep.subr.mxu0 0.0
        %1121 = vmatpush1.xpose.msra.mxu0 0.0
        %1122 = vmatprep.subr.mxu0 0.0
        %1123 = vmatpush1.xpose.msra.mxu0 0.0
        %1124 = vmatprep.subr.mxu0 0.0
        %1125 = vmatpush1.xpose.msra.mxu0 0.0
        %1126 = vmatprep.subr.mxu0 0.0
        %1127 = vmatpush1.xpose.msra.mxu0 0.0
        %1128 = vmatprep.subr.mxu0 0.0
        %1129 = vmatpush1.xpose.msra.mxu0 0.0
        %1130 = vmatprep.subr.mxu0 0.0
        %1131 = vmatpush1.xpose.msra.mxu0 0.0
        %1132 = vmatprep.subr.mxu0 0.0
        %1133 = vmatpush1.xpose.msra.mxu0 0.0
        %1134 = vmatprep.subr.mxu0 0.0
        %1135 = vmatpush1.xpose.msra.mxu0 0.0
        %1136 = vmatprep.subr.mxu0 0.0
        %1137 = vmatpush1.xpose.msra.mxu0 0.0
        %1138 = vmatprep.subr.mxu0 0.0
        %1139 = vmatpush1.xpose.msra.mxu0 0.0
        %1140 = vmatprep.subr.mxu0 0.0
        %1141 = vmatpush1.xpose.msra.mxu0 0.0
        %1142 = vmatprep.subr.mxu0 0.0
        %1143 = vmatpush1.xpose.msra.mxu0 0.0
        %1144 = vmatprep.subr.mxu0 0.0
        %1145 = vmatpush1.xpose.msra.mxu0 0.0
        %1146 = vmatprep.subr.mxu0 0.0
        %1147 = vmatpush1.xpose.msra.mxu0 0.0
        %1148 = vmatprep.subr.mxu0 0.0
        %1149 = vmatpush1.xpose.msra.mxu0 0.0
        %1150 = vmatprep.subr.mxu0 0.0
        %1151 = vmatpush1.xpose.msra.mxu0 0.0
        %1152 = vmatprep.subr.mxu0 0.0
        %1153 = vmatpush1.xpose.msra.mxu0 0.0
        %1154 = vmatprep.subr.mxu0 0.0
        %1155 = vmatpush1.xpose.msra.mxu0 0.0
        %1156 = vmatprep.subr.mxu0 0.0
        %1157 = vmatpush1.xpose.msra.mxu0 0.0
        %1158 = vmatprep.subr.mxu0 0.0
        %1159 = vmatpush1.xpose.msra.mxu0 0.0
        %1160 = vmatprep.subr.mxu0 0.0
        %1161 = vmatpush1.xpose.msra.mxu0 0.0
        %1162 = vmatprep.mubr.f32.mxu0 0.0
        %1163 = vmatmul.mubr.f32.gmra.mrb[0].mxu0 %v1092
        %v1164 = vpop.f32.mrb[0].mxu0
        %v1165 = vadd.f32 0.0, %v1164
        %v1166 = vpop.f32.mrb[0].mxu0
        %1167 = vdwg.mxu0
        %v1168 = vsel %vm1000, %v1165, -inf
        %1169 = vmax.xlane.f32.xlu0 %v1168
        %v1170 = vpop.xlane.xlu0 %1169
        %v1171 = vsub.f32 %v1165, %v1170
        %v1172 = vmul.f32 %v1171, 1.442695
        %v1173 = vpow.pop %v1172
        %v1174 = vsel %vm1000, %v1173, 0.0
        %1175 = vadd.xlane.f32.xlu0 %v1174
        %v1176 = vpop.xlane.xlu0 %1175
        %v1177 = vrcp.pop %v1176
        %v1178 = vmul.f32 %v1173, %v1177
        %1181 = vrot.lane.b32.xlu0 %v912, 64
        %v1182 = vpop.permute.xlu0 %1181
        %1183 = vrot.lane.b32.xlu0 %v918, 64
        %v1184 = vpop.permute.xlu0 %1183
        %v1188 = vsel %vm1000, %v1178, 0
        %1190 = vmatprep.subr.mxu0 0.0
        %1191 = vmatpush1.msra.mxu0 %v1182
        %1192 = vmatprep.subr.mxu0 0.0
        %1193 = vmatpush1.msra.mxu0 %v1184
        %1194 = vmatprep.subr.mxu0 0.0
        %1195 = vmatpush1.msra.mxu0 0.0
        %1196 = vmatprep.subr.mxu0 0.0
        %1197 = vmatpush1.msra.mxu0 0.0
        %1198 = vmatprep.subr.mxu0 0.0
        %1199 = vmatpush1.msra.mxu0 0.0
        %1200 = vmatprep.subr.mxu0 0.0
        %1201 = vmatpush1.msra.mxu0 0.0
        %1202 = vmatprep.subr.mxu0 0.0
        %1203 = vmatpush1.msra.mxu0 0.0
        %1204 = vmatprep.subr.mxu0 0.0
        %1205 = vmatpush1.msra.mxu0 0.0
        %1206 = vmatprep.subr.mxu0 0.0
        %1207 = vmatpush1.msra.mxu0 0.0
        %1208 = vmatprep.subr.mxu0 0.0
        %1209 = vmatpush1.msra.mxu0 0.0
        %1210 = vmatprep.subr.mxu0 0.0
        %1211 = vmatpush1.msra.mxu0 0.0
        %1212 = vmatprep.subr.mxu0 0.0
        %1213 = vmatpush1.msra.mxu0 0.0
        %1214 = vmatprep.subr.mxu0 0.0
        %1215 = vmatpush1.msra.mxu0 0.0
        %1216 = vmatprep.subr.mxu0 0.0
        %1217 = vmatpush1.msra.mxu0 0.0
        %1218 = vmatprep.subr.mxu0 0.0
        %1219 = vmatpush1.msra.mxu0 0.0
        %1220 = vmatprep.subr.mxu0 0.0
        %1221 = vmatpush1.msra.mxu0 0.0
        %1222 = vmatprep.subr.mxu0 0.0
        %1223 = vmatpush1.msra.mxu0 0.0
        %1224 = vmatprep.subr.mxu0 0.0
        %1225 = vmatpush1.msra.mxu0 0.0
        %1226 = vmatprep.subr.mxu0 0.0
        %1227 = vmatpush1.msra.mxu0 0.0
        %1228 = vmatprep.subr.mxu0 0.0
        %1229 = vmatpush1.msra.mxu0 0.0
        %1230 = vmatprep.subr.mxu0 0.0
        %1231 = vmatpush1.msra.mxu0 0.0
        %1232 = vmatprep.subr.mxu0 0.0
        %1233 = vmatpush1.msra.mxu0 0.0
        %1234 = vmatprep.subr.mxu0 0.0
        %1235 = vmatpush1.msra.mxu0 0.0
        %1236 = vmatprep.subr.mxu0 0.0
        %1237 = vmatpush1.msra.mxu0 0.0
        %1238 = vmatprep.subr.mxu0 0.0
        %1239 = vmatpush1.msra.mxu0 0.0
        %1240 = vmatprep.subr.mxu0 0.0
        %1241 = vmatpush1.msra.mxu0 0.0
        %1242 = vmatprep.subr.mxu0 0.0
        %1243 = vmatpush1.msra.mxu0 0.0
        %1244 = vmatprep.subr.mxu0 0.0
        %1245 = vmatpush1.msra.mxu0 0.0
        %1246 = vmatprep.subr.mxu0 0.0
        %1247 = vmatpush1.msra.mxu0 0.0
        %1248 = vmatprep.subr.mxu0 0.0
        %1249 = vmatpush1.msra.mxu0 0.0
        %1250 = vmatprep.subr.mxu0 0.0
        %1251 = vmatpush1.msra.mxu0 0.0
        %1252 = vmatprep.subr.mxu0 0.0
        %1253 = vmatpush1.msra.mxu0 0.0
        %1254 = vmatprep.mubr.f32.mxu0 0.0
        %1255 = vmatmul.mubr.f32.gmra.mrb[0].mxu0 %v1188
        %v1256 = vpop.f32.mrb[0].mxu0
        %v1257 = vadd.f32 0.0, %v1256
        %v1258 = vpop.f32.mrb[0].mxu0
        %1259 = vdwg.mxu0
        %1261 = vrot.lane.b32.xlu0 %v1257, 64
        %v1262 = vpop.permute.xlu0 %1261
        %vm1264 = vcmask 1048064
        %1265 = vst.msk [vmem:[#allocation2] sm:$0xff] %vm1264, %v1262
        %v1266 = vld [vmem:[#allocation2] sm:$0xff]
        %v1267 = vadd.f32 %v635, %v1266
        %v1268 = vld [vmem:[%s6] sm:$0x1]
        %v1269 = vld [vmem:[%s7] sm:$0x1]
        %1270 = vadd.xlane.f32.xlu0 %v1267
        %v1271 = vpop.xlane.xlu0 %1270
        %v1272 = vmul.f32 %v1271, %v642
        %v1273 = vsub.f32 %v1267, %v1272
        %v1274 = vmul.f32 %v1273, %v1273
        %1275 = vadd.xlane.f32.xlu0 %v1274
        %v1276 = vpop.xlane.xlu0 %1275
        %v1277 = vmul.f32 %v1276, %v642
        %v1278 = vadd.f32 %v1277, 1e-05
        %v1279 = vrsqrt.pop %v1278
        %v1280 = vmul.f32 %v1273, %v1279
        %v1282 = vlaneseq
        %v1283 = vshrl.u32 %v1282, 7
        %v1284 = vsub.s32 0, %v1283
        %v1285 = vrot.slane %v1268, %v1284
        %v1287 = vmul.f32 %v1280, %v1285
        %v1289 = vlaneseq
        %v1290 = vshrl.u32 %v1289, 7
        %v1291 = vsub.s32 0, %v1290
        %v1292 = vrot.slane %v1269, %v1291
        %v1294 = vadd.f32 %v1287, %v1292
        %v1295 = vld [vmem:[%s15] sm:$0x1]
        %v1297 = vlaneseq
        %v1298 = vshrl.u32 %v1297, 7
        %v1299 = vsub.s32 0, %v1298
        %v1300 = vrot.slane %v1295, %v1299
        %v1302 = vadd.f32 %v1300, 0.0
        %v1303 = vld [vmem:[#allocation11] sm:$0xff]
        %v1304 = vld [vmem:[#allocation11 + $0x8] sm:$0xff]
        %v1305 = vld [vmem:[#allocation11 + $0x10] sm:$0xff]
        %v1306 = vld [vmem:[#allocation11 + $0x18] sm:$0xff]
        %v1307 = vld [vmem:[#allocation11 + $0x20] sm:$0xff]
        %v1308 = vld [vmem:[#allocation11 + $0x28] sm:$0xff]
        %v1309 = vld [vmem:[#allocation11 + $0x30] sm:$0xff]
        %v1310 = vld [vmem:[#allocation11 + $0x38] sm:$0xff]
        %v1311 = vld [vmem:[#allocation11 + $0x40] sm:$0xff]
        %v1312 = vld [vmem:[#allocation11 + $0x48] sm:$0xff]
        %v1313 = vld [vmem:[#allocation11 + $0x50] sm:$0xff]
        %v1314 = vld [vmem:[#allocation11 + $0x58] sm:$0xff]
        %v1315 = vld [vmem:[#allocation11 + $0x60] sm:$0xff]
        %v1316 = vld [vmem:[#allocation11 + $0x68] sm:$0xff]
        %v1317 = vld [vmem:[#allocation11 + $0x70] sm:$0xff]
        %v1318 = vld [vmem:[#allocation11 + $0x78] sm:$0xff]
        %v1319 = vld [vmem:[#allocation11 + $0x80] sm:$0xff]
        %v1320 = vld [vmem:[#allocation11 + $0x88] sm:$0xff]
        %v1321 = vld [vmem:[#allocation11 + $0x90] sm:$0xff]
        %v1322 = vld [vmem:[#allocation11 + $0x98] sm:$0xff]
        %v1323 = vld [vmem:[#allocation11 + $0xa0] sm:$0xff]
        %v1324 = vld [vmem:[#allocation11 + $0xa8] sm:$0xff]
        %v1325 = vld [vmem:[#allocation11 + $0xb0] sm:$0xff]
        %v1326 = vld [vmem:[#allocation11 + $0xb8] sm:$0xff]
        %v1327 = vld [vmem:[#allocation11 + $0xc0] sm:$0xff]
        %v1328 = vld [vmem:[#allocation11 + $0xc8] sm:$0xff]
        %v1329 = vld [vmem:[#allocation11 + $0xd0] sm:$0xff]
        %v1330 = vld [vmem:[#allocation11 + $0xd8] sm:$0xff]
        %v1331 = vld [vmem:[#allocation11 + $0xe0] sm:$0xff]
        %v1332 = vld [vmem:[#allocation11 + $0xe8] sm:$0xff]
        %v1333 = vld [vmem:[#allocation11 + $0xf0] sm:$0xff]
        %v1334 = vld [vmem:[#allocation11 + $0xf8] sm:$0xff]
        %v1335 = vld [vmem:[#allocation11 + $0x100] sm:$0xff]
        %v1336 = vld [vmem:[#allocation11 + $0x108] sm:$0xff]
        %v1337 = vld [vmem:[#allocation11 + $0x110] sm:$0xff]
        %v1338 = vld [vmem:[#allocation11 + $0x118] sm:$0xff]
        %v1339 = vld [vmem:[#allocation11 + $0x120] sm:$0xff]
        %v1340 = vld [vmem:[#allocation11 + $0x128] sm:$0xff]
        %v1341 = vld [vmem:[#allocation11 + $0x130] sm:$0xff]
        %v1342 = vld [vmem:[#allocation11 + $0x138] sm:$0xff]
        %v1343 = vld [vmem:[#allocation11 + $0x140] sm:$0xff]
        %v1344 = vld [vmem:[#allocation11 + $0x148] sm:$0xff]
        %v1345 = vld [vmem:[#allocation11 + $0x150] sm:$0xff]
        %v1346 = vld [vmem:[#allocation11 + $0x158] sm:$0xff]
        %v1347 = vld [vmem:[#allocation11 + $0x160] sm:$0xff]
        %v1348 = vld [vmem:[#allocation11 + $0x168] sm:$0xff]
        %v1349 = vld [vmem:[#allocation11 + $0x170] sm:$0xff]
        %v1350 = vld [vmem:[#allocation11 + $0x178] sm:$0xff]
        %v1351 = vld [vmem:[#allocation11 + $0x180] sm:$0xff]
        %v1352 = vld [vmem:[#allocation11 + $0x188] sm:$0xff]
        %v1353 = vld [vmem:[#allocation11 + $0x190] sm:$0xff]
        %v1354 = vld [vmem:[#allocation11 + $0x198] sm:$0xff]
        %v1355 = vld [vmem:[#allocation11 + $0x1a0] sm:$0xff]
        %v1356 = vld [vmem:[#allocation11 + $0x1a8] sm:$0xff]
        %v1357 = vld [vmem:[#allocation11 + $0x1b0] sm:$0xff]
        %v1358 = vld [vmem:[#allocation11 + $0x1b8] sm:$0xff]
        %v1359 = vld [vmem:[#allocation11 + $0x1c0] sm:$0xff]
        %v1360 = vld [vmem:[#allocation11 + $0x1c8] sm:$0xff]
        %v1361 = vld [vmem:[#allocation11 + $0x1d0] sm:$0xff]
        %v1362 = vld [vmem:[#allocation11 + $0x1d8] sm:$0xff]
        %v1363 = vld [vmem:[#allocation11 + $0x1e0] sm:$0xff]
        %v1364 = vld [vmem:[#allocation11 + $0x1e8] sm:$0xff]
        %v1365 = vld [vmem:[#allocation11 + $0x1f0] sm:$0xff]
        %v1366 = vld [vmem:[#allocation11 + $0x1f8] sm:$0xff]
        %v1367 = vld [vmem:[%s13] sm:$0xf]
        %v1369 = vlaneseq
        %v1370 = vshrl.u32 %v1369, 7
        %v1371 = vsub.s32 0, %v1370
        %v1372 = vrot.slane %v1367, %v1371
        %v1373 = vlaneseq
        %v1374 = vshrl.u32 %v1373, 7
        %v1375 = vsub.s32 1, %v1374
        %v1376 = vrot.slane %v1367, %v1375
        %v1377 = vlaneseq
        %v1378 = vshrl.u32 %v1377, 7
        %v1379 = vsub.s32 2, %v1378
        %v1380 = vrot.slane %v1367, %v1379
        %v1381 = vlaneseq
        %v1382 = vshrl.u32 %v1381, 7
        %v1383 = vsub.s32 3, %v1382
        %v1384 = vrot.slane %v1367, %v1383
        %1389 = vmatprep.subr.mxu0 %v1304
        %1390 = vmatpush1.msra.mxu0 %v1303
        %1391 = vmatprep.subr.mxu0 %v1308
        %1392 = vmatpush1.msra.mxu0 %v1307
        %1393 = vmatprep.subr.mxu0 %v1312
        %1394 = vmatpush1.msra.mxu0 %v1311
        %1395 = vmatprep.subr.mxu0 %v1316
        %1396 = vmatpush1.msra.mxu0 %v1315
        %1397 = vmatprep.subr.mxu0 %v1320
        %1398 = vmatpush1.msra.mxu0 %v1319
        %1399 = vmatprep.subr.mxu0 %v1324
        %1400 = vmatpush1.msra.mxu0 %v1323
        %1401 = vmatprep.subr.mxu0 %v1328
        %1402 = vmatpush1.msra.mxu0 %v1327
        %1403 = vmatprep.subr.mxu0 %v1332
        %1404 = vmatpush1.msra.mxu0 %v1331
        %1405 = vmatprep.subr.mxu0 %v1336
        %1406 = vmatpush1.msra.mxu0 %v1335
        %1407 = vmatprep.subr.mxu0 %v1340
        %1408 = vmatpush1.msra.mxu0 %v1339
        %1409 = vmatprep.subr.mxu0 %v1344
        %1410 = vmatpush1.msra.mxu0 %v1343
        %1411 = vmatprep.subr.mxu0 %v1348
        %1412 = vmatpush1.msra.mxu0 %v1347
        %1413 = vmatprep.subr.mxu0 %v1352
        %1414 = vmatpush1.msra.mxu0 %v1351
        %1415 = vmatprep.subr.mxu0 %v1356
        %1416 = vmatpush1.msra.mxu0 %v1355
        %1417 = vmatprep.subr.mxu0 %v1360
        %1418 = vmatpush1.msra.mxu0 %v1359
        %1419 = vmatprep.subr.mxu0 %v1364
        %1420 = vmatpush1.msra.mxu0 %v1363
        %1421 = vmatprep.subr.mxu0 0.0
        %1422 = vmatpush1.msra.mxu0 0.0
        %1423 = vmatprep.subr.mxu0 0.0
        %1424 = vmatpush1.msra.mxu0 0.0
        %1425 = vmatprep.subr.mxu0 0.0
        %1426 = vmatpush1.msra.mxu0 0.0
        %1427 = vmatprep.subr.mxu0 0.0
        %1428 = vmatpush1.msra.mxu0 0.0
        %1429 = vmatprep.subr.mxu0 0.0
        %1430 = vmatpush1.msra.mxu0 0.0
        %1431 = vmatprep.subr.mxu0 0.0
        %1432 = vmatpush1.msra.mxu0 0.0
        %1433 = vmatprep.subr.mxu0 0.0
        %1434 = vmatpush1.msra.mxu0 0.0
        %1435 = vmatprep.subr.mxu0 0.0
        %1436 = vmatpush1.msra.mxu0 0.0
        %1437 = vmatprep.subr.mxu0 0.0
        %1438 = vmatpush1.msra.mxu0 0.0
        %1439 = vmatprep.subr.mxu0 0.0
        %1440 = vmatpush1.msra.mxu0 0.0
        %1441 = vmatprep.subr.mxu0 0.0
        %1442 = vmatpush1.msra.mxu0 0.0
        %1443 = vmatprep.subr.mxu0 0.0
        %1444 = vmatpush1.msra.mxu0 0.0
        %1445 = vmatprep.subr.mxu0 0.0
        %1446 = vmatpush1.msra.mxu0 0.0
        %1447 = vmatprep.subr.mxu0 0.0
        %1448 = vmatpush1.msra.mxu0 0.0
        %1449 = vmatprep.subr.mxu0 0.0
        %1450 = vmatpush1.msra.mxu0 0.0
        %1451 = vmatprep.subr.mxu0 0.0
        %1452 = vmatpush1.msra.mxu0 0.0
        %1453 = vmatprep.mubr.f32.mxu0 0.0
        %1454 = vmatmul.mubr.f32.gmra.mrb[0].mxu0 %v1294
        %v1455 = vpop.f32.mrb[0].mxu0
        %v1456 = vadd.f32 %v1372, %v1455
        %v1457 = vpop.f32.mrb[0].mxu0
        %v1458 = vadd.f32 %v1376, %v1457
        %1459 = vdwg.mxu0
        %1460 = vmatprep.subr.mxu0 %v1306
        %1461 = vmatpush1.msra.mxu0 %v1305
        %1462 = vmatprep.subr.mxu0 %v1310
        %1463 = vmatpush1.msra.mxu0 %v1309
        %1464 = vmatprep.subr.mxu0 %v1314
        %1465 = vmatpush1.msra.mxu0 %v1313
        %1466 = vmatprep.subr.mxu0 %v1318
        %1467 = vmatpush1.msra.mxu0 %v1317
        %1468 = vmatprep.subr.mxu0 %v1322
        %1469 = vmatpush1.msra.mxu0 %v1321
        %1470 = vmatprep.subr.mxu0 %v1326
        %1471 = vmatpush1.msra.mxu0 %v1325
        %1472 = vmatprep.subr.mxu0 %v1330
        %1473 = vmatpush1.msra.mxu0 %v1329
        %1474 = vmatprep.subr.mxu0 %v1334
        %1475 = vmatpush1.msra.mxu0 %v1333
        %1476 = vmatprep.subr.mxu0 %v1338
        %1477 = vmatpush1.msra.mxu0 %v1337
        %1478 = vmatprep.subr.mxu0 %v1342
        %1479 = vmatpush1.msra.mxu0 %v1341
        %1480 = vmatprep.subr.mxu0 %v1346
        %1481 = vmatpush1.msra.mxu0 %v1345
        %1482 = vmatprep.subr.mxu0 %v1350
        %1483 = vmatpush1.msra.mxu0 %v1349
        %1484 = vmatprep.subr.mxu0 %v1354
        %1485 = vmatpush1.msra.mxu0 %v1353
        %1486 = vmatprep.subr.mxu0 %v1358
        %1487 = vmatpush1.msra.mxu0 %v1357
        %1488 = vmatprep.subr.mxu0 %v1362
        %1489 = vmatpush1.msra.mxu0 %v1361
        %1490 = vmatprep.subr.mxu0 %v1366
        %1491 = vmatpush1.msra.mxu0 %v1365
        %1492 = vmatprep.subr.mxu0 0.0
        %1493 = vmatpush1.msra.mxu0 0.0
        %1494 = vmatprep.subr.mxu0 0.0
        %1495 = vmatpush1.msra.mxu0 0.0
        %1496 = vmatprep.subr.mxu0 0.0
        %1497 = vmatpush1.msra.mxu0 0.0
        %1498 = vmatprep.subr.mxu0 0.0
        %1499 = vmatpush1.msra.mxu0 0.0
        %1500 = vmatprep.subr.mxu0 0.0
        %1501 = vmatpush1.msra.mxu0 0.0
        %1502 = vmatprep.subr.mxu0 0.0
        %1503 = vmatpush1.msra.mxu0 0.0
        %1504 = vmatprep.subr.mxu0 0.0
        %1505 = vmatpush1.msra.mxu0 0.0
        %1506 = vmatprep.subr.mxu0 0.0
        %1507 = vmatpush1.msra.mxu0 0.0
        %1508 = vmatprep.subr.mxu0 0.0
        %1509 = vmatpush1.msra.mxu0 0.0
        %1510 = vmatprep.subr.mxu0 0.0
        %1511 = vmatpush1.msra.mxu0 0.0
        %1512 = vmatprep.subr.mxu0 0.0
        %1513 = vmatpush1.msra.mxu0 0.0
        %1514 = vmatprep.subr.mxu0 0.0
        %1515 = vmatpush1.msra.mxu0 0.0
        %1516 = vmatprep.subr.mxu0 0.0
        %1517 = vmatpush1.msra.mxu0 0.0
        %1518 = vmatprep.subr.mxu0 0.0
        %1519 = vmatpush1.msra.mxu0 0.0
        %1520 = vmatprep.subr.mxu0 0.0
        %1521 = vmatpush1.msra.mxu0 0.0
        %1522 = vmatprep.subr.mxu0 0.0
        %1523 = vmatpush1.msra.mxu0 0.0
        %1524 = vmatprep.mubr.f32.mxu0 0.0
        %1525 = vmatmul.mubr.f32.gmra.mrb[0].mxu0 %v1294
        %v1526 = vpop.f32.mrb[0].mxu0
        %v1527 = vadd.f32 %v1380, %v1526
        %v1528 = vpop.f32.mrb[0].mxu0
        %v1529 = vadd.f32 %v1384, %v1528
        %1530 = vdwg.mxu0
        %v1531 = vmul.f32 %v1456, 1.702
        %v1532 = vmul.f32 %v1458, 1.702
        %v1533 = vmul.f32 %v1527, 1.702
        %v1534 = vmul.f32 %v1529, 1.702
        %v1535 = vxor.u32 %v1531, 2147483648
        %v1536 = vxor.u32 %v1532, 2147483648
        %v1537 = vxor.u32 %v1533, 2147483648
        %v1538 = vxor.u32 %v1534, 2147483648
        %v1539 = vmul.f32 %v1535, 1.442695
        %v1540 = vpow.pop %v1539
        %v1541 = vmul.f32 %v1536, 1.442695
        %v1542 = vpow.pop %v1541
        %v1543 = vmul.f32 %v1537, 1.442695
        %v1544 = vpow.pop %v1543
        %v1545 = vmul.f32 %v1538, 1.442695
        %v1546 = vpow.pop %v1545
        %v1547 = vadd.f32 %v1540, 1.0
        %v1548 = vadd.f32 %v1542, 1.0
        %v1549 = vadd.f32 %v1544, 1.0
        %v1550 = vadd.f32 %v1546, 1.0
        %v1551 = vrcp.pop %v1547
        %v1552 = vmul.f32 1.0, %v1551
        %v1553 = vrcp.pop %v1548
        %v1554 = vmul.f32 1.0, %v1553
        %v1555 = vrcp.pop %v1549
        %v1556 = vmul.f32 1.0, %v1555
        %v1557 = vrcp.pop %v1550
        %v1558 = vmul.f32 1.0, %v1557
        %v1559 = vmul.f32 %v1456, %v1552
        %v1560 = vmul.f32 %v1458, %v1554
        %v1561 = vmul.f32 %v1527, %v1556
        %v1562 = vmul.f32 %v1529, %v1558
        %v1563 = vld [vmem:[#allocation12] sm:$0xff]
        %v1564 = vld [vmem:[#allocation12 + $0x8] sm:$0xff]
        %v1565 = vld [vmem:[#allocation12 + $0x10] sm:$0xff]
        %v1566 = vld [vmem:[#allocation12 + $0x18] sm:$0xff]
        %v1567 = vld [vmem:[#allocation12 + $0x20] sm:$0xff]
        %v1568 = vld [vmem:[#allocation12 + $0x28] sm:$0xff]
        %v1569 = vld [vmem:[#allocation12 + $0x30] sm:$0xff]
        %v1570 = vld [vmem:[#allocation12 + $0x38] sm:$0xff]
        %v1571 = vld [vmem:[#allocation12 + $0x40] sm:$0xff]
        %v1572 = vld [vmem:[#allocation12 + $0x48] sm:$0xff]
        %v1573 = vld [vmem:[#allocation12 + $0x50] sm:$0xff]
        %v1574 = vld [vmem:[#allocation12 + $0x58] sm:$0xff]
        %v1575 = vld [vmem:[#allocation12 + $0x60] sm:$0xff]
        %v1576 = vld [vmem:[#allocation12 + $0x68] sm:$0xff]
        %v1577 = vld [vmem:[#allocation12 + $0x70] sm:$0xff]
        %v1578 = vld [vmem:[#allocation12 + $0x78] sm:$0xff]
        %v1579 = vld [vmem:[#allocation12 + $0x80] sm:$0xff]
        %v1580 = vld [vmem:[#allocation12 + $0x88] sm:$0xff]
        %v1581 = vld [vmem:[#allocation12 + $0x90] sm:$0xff]
        %v1582 = vld [vmem:[#allocation12 + $0x98] sm:$0xff]
        %v1583 = vld [vmem:[#allocation12 + $0xa0] sm:$0xff]
        %v1584 = vld [vmem:[#allocation12 + $0xa8] sm:$0xff]
        %v1585 = vld [vmem:[#allocation12 + $0xb0] sm:$0xff]
        %v1586 = vld [vmem:[#allocation12 + $0xb8] sm:$0xff]
        %v1587 = vld [vmem:[#allocation12 + $0xc0] sm:$0xff]
        %v1588 = vld [vmem:[#allocation12 + $0xc8] sm:$0xff]
        %v1589 = vld [vmem:[#allocation12 + $0xd0] sm:$0xff]
        %v1590 = vld [vmem:[#allocation12 + $0xd8] sm:$0xff]
        %v1591 = vld [vmem:[#allocation12 + $0xe0] sm:$0xff]
        %v1592 = vld [vmem:[#allocation12 + $0xe8] sm:$0xff]
        %v1593 = vld [vmem:[#allocation12 + $0xf0] sm:$0xff]
        %v1594 = vld [vmem:[#allocation12 + $0xf8] sm:$0xff]
        %v1595 = vld [vmem:[#allocation12 + $0x100] sm:$0xff]
        %v1596 = vld [vmem:[#allocation12 + $0x108] sm:$0xff]
        %v1597 = vld [vmem:[#allocation12 + $0x110] sm:$0xff]
        %v1598 = vld [vmem:[#allocation12 + $0x118] sm:$0xff]
        %v1599 = vld [vmem:[#allocation12 + $0x120] sm:$0xff]
        %v1600 = vld [vmem:[#allocation12 + $0x128] sm:$0xff]
        %v1601 = vld [vmem:[#allocation12 + $0x130] sm:$0xff]
        %v1602 = vld [vmem:[#allocation12 + $0x138] sm:$0xff]
        %v1603 = vld [vmem:[#allocation12 + $0x140] sm:$0xff]
        %v1604 = vld [vmem:[#allocation12 + $0x148] sm:$0xff]
        %v1605 = vld [vmem:[#allocation12 + $0x150] sm:$0xff]
        %v1606 = vld [vmem:[#allocation12 + $0x158] sm:$0xff]
        %v1607 = vld [vmem:[#allocation12 + $0x160] sm:$0xff]
        %v1608 = vld [vmem:[#allocation12 + $0x168] sm:$0xff]
        %v1609 = vld [vmem:[#allocation12 + $0x170] sm:$0xff]
        %v1610 = vld [vmem:[#allocation12 + $0x178] sm:$0xff]
        %v1611 = vld [vmem:[#allocation12 + $0x180] sm:$0xff]
        %v1612 = vld [vmem:[#allocation12 + $0x188] sm:$0xff]
        %v1613 = vld [vmem:[#allocation12 + $0x190] sm:$0xff]
        %v1614 = vld [vmem:[#allocation12 + $0x198] sm:$0xff]
        %v1615 = vld [vmem:[#allocation12 + $0x1a0] sm:$0xff]
        %v1616 = vld [vmem:[#allocation12 + $0x1a8] sm:$0xff]
        %v1617 = vld [vmem:[#allocation12 + $0x1b0] sm:$0xff]
        %v1618 = vld [vmem:[#allocation12 + $0x1b8] sm:$0xff]
        %v1619 = vld [vmem:[#allocation12 + $0x1c0] sm:$0xff]
        %v1620 = vld [vmem:[#allocation12 + $0x1c8] sm:$0xff]
        %v1621 = vld [vmem:[#allocation12 + $0x1d0] sm:$0xff]
        %v1622 = vld [vmem:[#allocation12 + $0x1d8] sm:$0xff]
        %v1623 = vld [vmem:[#allocation12 + $0x1e0] sm:$0xff]
        %v1624 = vld [vmem:[#allocation12 + $0x1e8] sm:$0xff]
        %v1625 = vld [vmem:[#allocation12 + $0x1f0] sm:$0xff]
        %v1626 = vld [vmem:[#allocation12 + $0x1f8] sm:$0xff]
        %1627 = vmatprep.subr.mxu0 0.0
        %1628 = vmatpush1.msra.mxu0 %v1563
        %1629 = vmatprep.subr.mxu0 0.0
        %1630 = vmatpush1.msra.mxu0 %v1564
        %1631 = vmatprep.subr.mxu0 0.0
        %1632 = vmatpush1.msra.mxu0 %v1565
        %1633 = vmatprep.subr.mxu0 0.0
        %1634 = vmatpush1.msra.mxu0 %v1566
        %1635 = vmatprep.subr.mxu0 0.0
        %1636 = vmatpush1.msra.mxu0 %v1567
        %1637 = vmatprep.subr.mxu0 0.0
        %1638 = vmatpush1.msra.mxu0 %v1568
        %1639 = vmatprep.subr.mxu0 0.0
        %1640 = vmatpush1.msra.mxu0 %v1569
        %1641 = vmatprep.subr.mxu0 0.0
        %1642 = vmatpush1.msra.mxu0 %v1570
        %1643 = vmatprep.subr.mxu0 0.0
        %1644 = vmatpush1.msra.mxu0 %v1571
        %1645 = vmatprep.subr.mxu0 0.0
        %1646 = vmatpush1.msra.mxu0 %v1572
        %1647 = vmatprep.subr.mxu0 0.0
        %1648 = vmatpush1.msra.mxu0 %v1573
        %1649 = vmatprep.subr.mxu0 0.0
        %1650 = vmatpush1.msra.mxu0 %v1574
        %1651 = vmatprep.subr.mxu0 0.0
        %1652 = vmatpush1.msra.mxu0 %v1575
        %1653 = vmatprep.subr.mxu0 0.0
        %1654 = vmatpush1.msra.mxu0 %v1576
        %1655 = vmatprep.subr.mxu0 0.0
        %1656 = vmatpush1.msra.mxu0 %v1577
        %1657 = vmatprep.subr.mxu0 0.0
        %1658 = vmatpush1.msra.mxu0 %v1578
        %1659 = vmatprep.subr.mxu0 0.0
        %1660 = vmatpush1.msra.mxu0 %v1579
        %1661 = vmatprep.subr.mxu0 0.0
        %1662 = vmatpush1.msra.mxu0 %v1580
        %1663 = vmatprep.subr.mxu0 0.0
        %1664 = vmatpush1.msra.mxu0 %v1581
        %1665 = vmatprep.subr.mxu0 0.0
        %1666 = vmatpush1.msra.mxu0 %v1582
        %1667 = vmatprep.subr.mxu0 0.0
        %1668 = vmatpush1.msra.mxu0 %v1583
        %1669 = vmatprep.subr.mxu0 0.0
        %1670 = vmatpush1.msra.mxu0 %v1584
        %1671 = vmatprep.subr.mxu0 0.0
        %1672 = vmatpush1.msra.mxu0 %v1585
        %1673 = vmatprep.subr.mxu0 0.0
        %1674 = vmatpush1.msra.mxu0 %v1586
        %1675 = vmatprep.subr.mxu0 0.0
        %1676 = vmatpush1.msra.mxu0 %v1587
        %1677 = vmatprep.subr.mxu0 0.0
        %1678 = vmatpush1.msra.mxu0 %v1588
        %1679 = vmatprep.subr.mxu0 0.0
        %1680 = vmatpush1.msra.mxu0 %v1589
        %1681 = vmatprep.subr.mxu0 0.0
        %1682 = vmatpush1.msra.mxu0 %v1590
        %1683 = vmatprep.subr.mxu0 0.0
        %1684 = vmatpush1.msra.mxu0 %v1591
        %1685 = vmatprep.subr.mxu0 0.0
        %1686 = vmatpush1.msra.mxu0 %v1592
        %1687 = vmatprep.subr.mxu0 0.0
        %1688 = vmatpush1.msra.mxu0 %v1593
        %1689 = vmatprep.subr.mxu0 0.0
        %1690 = vmatpush1.msra.mxu0 %v1594
        %1691 = vmatprep.mubr.f32.mxu0 %v1560
        %1692 = vmatmul.mubr.f32.gmra.mrb[0].mxu0 %v1559
        %v1693 = vpop.f32.mrb[0].mxu0
        %v1694 = vadd.f32 0.0, %v1693
        %v1695 = vpop.f32.mrb[0].mxu0
        %1696 = vdwg.mxu0
        %1697 = vmatprep.subr.mxu0 0.0
        %1698 = vmatpush1.msra.mxu0 %v1595
        %1699 = vmatprep.subr.mxu0 0.0
        %1700 = vmatpush1.msra.mxu0 %v1596
        %1701 = vmatprep.subr.mxu0 0.0
        %1702 = vmatpush1.msra.mxu0 %v1597
        %1703 = vmatprep.subr.mxu0 0.0
        %1704 = vmatpush1.msra.mxu0 %v1598
        %1705 = vmatprep.subr.mxu0 0.0
        %1706 = vmatpush1.msra.mxu0 %v1599
        %1707 = vmatprep.subr.mxu0 0.0
        %1708 = vmatpush1.msra.mxu0 %v1600
        %1709 = vmatprep.subr.mxu0 0.0
        %1710 = vmatpush1.msra.mxu0 %v1601
        %1711 = vmatprep.subr.mxu0 0.0
        %1712 = vmatpush1.msra.mxu0 %v1602
        %1713 = vmatprep.subr.mxu0 0.0
        %1714 = vmatpush1.msra.mxu0 %v1603
        %1715 = vmatprep.subr.mxu0 0.0
        %1716 = vmatpush1.msra.mxu0 %v1604
        %1717 = vmatprep.subr.mxu0 0.0
        %1718 = vmatpush1.msra.mxu0 %v1605
        %1719 = vmatprep.subr.mxu0 0.0
        %1720 = vmatpush1.msra.mxu0 %v1606
        %1721 = vmatprep.subr.mxu0 0.0
        %1722 = vmatpush1.msra.mxu0 %v1607
        %1723 = vmatprep.subr.mxu0 0.0
        %1724 = vmatpush1.msra.mxu0 %v1608
        %1725 = vmatprep.subr.mxu0 0.0
        %1726 = vmatpush1.msra.mxu0 %v1609
        %1727 = vmatprep.subr.mxu0 0.0
        %1728 = vmatpush1.msra.mxu0 %v1610
        %1729 = vmatprep.subr.mxu0 0.0
        %1730 = vmatpush1.msra.mxu0 %v1611
        %1731 = vmatprep.subr.mxu0 0.0
        %1732 = vmatpush1.msra.mxu0 %v1612
        %1733 = vmatprep.subr.mxu0 0.0
        %1734 = vmatpush1.msra.mxu0 %v1613
        %1735 = vmatprep.subr.mxu0 0.0
        %1736 = vmatpush1.msra.mxu0 %v1614
        %1737 = vmatprep.subr.mxu0 0.0
        %1738 = vmatpush1.msra.mxu0 %v1615
        %1739 = vmatprep.subr.mxu0 0.0
        %1740 = vmatpush1.msra.mxu0 %v1616
        %1741 = vmatprep.subr.mxu0 0.0
        %1742 = vmatpush1.msra.mxu0 %v1617
        %1743 = vmatprep.subr.mxu0 0.0
        %1744 = vmatpush1.msra.mxu0 %v1618
        %1745 = vmatprep.subr.mxu0 0.0
        %1746 = vmatpush1.msra.mxu0 %v1619
        %1747 = vmatprep.subr.mxu0 0.0
        %1748 = vmatpush1.msra.mxu0 %v1620
        %1749 = vmatprep.subr.mxu0 0.0
        %1750 = vmatpush1.msra.mxu0 %v1621
        %1751 = vmatprep.subr.mxu0 0.0
        %1752 = vmatpush1.msra.mxu0 %v1622
        %1753 = vmatprep.subr.mxu0 0.0
        %1754 = vmatpush1.msra.mxu0 %v1623
        %1755 = vmatprep.subr.mxu0 0.0
        %1756 = vmatpush1.msra.mxu0 %v1624
        %1757 = vmatprep.subr.mxu0 0.0
        %1758 = vmatpush1.msra.mxu0 %v1625
        %1759 = vmatprep.subr.mxu0 0.0
        %1760 = vmatpush1.msra.mxu0 %v1626
        %1761 = vmatprep.mubr.f32.mxu0 %v1562
        %1762 = vmatmul.mubr.f32.gmra.mrb[0].mxu0 %v1561
        %v1763 = vpop.f32.mrb[0].mxu0
        %v1764 = vadd.f32 %v1694, %v1763
        %v1765 = vpop.f32.mrb[0].mxu0
        %1766 = vdwg.mxu0
        %v1767 = vadd.f32 %v1302, %v1764
        %v1768 = vadd.f32 %v1267, %v1767
        %1769 = vst [vmem:[%s634] sm:$0xff] %v1768
        %s1770 = sand.u32 %s392, 1
        %s1771 = scalar_lea.sflag [#allocation5], %s1770
        %s1772 = sand.u32 %s392, 1
        %s1773 = smul.addr %s1772, 8
        %s1774 = scalar_lea.vmem [#allocation14], %s1773
        // Predicated region
        $region109: #{tpu_custom_call.1} parent=83 // pred_check
          %p1775 = pneg %p402
        $region110: #{tpu_custom_call.1} parent=83 // pred_check_branch
          %1777 = sbr.rel (%p1775) target = $region112
        $region111: #{tpu_custom_call.1} parent=83 // pred_region
          %s1779 = ssub.s32 128, 128
          %1780 = vsyncadd %s1771, %s1779
          %s1781 = smul.addr %s38, 128
          %s1782 = scalar_lea.hbm %s16, %s1781
          %s1784 = sshll.u32 %s1774, 4
          %s1785 = int_to_ptr.vmem [resolvable:$true] %s1784
          %1787 = dma.vmem_to_hbm [thread:$0]  %s1785, 128, %s1782, %s1771
        $region112: #{tpu_custom_call.1} parent=83 // pred_fallthru
          _
      $region84: #{tpu_custom_call.1} parent=5 // pred_fallthru
        _
      %p1788 = scmp.le.s32.totalorder 2, %s33
      // Predicated region
      $region113: #{tpu_custom_call.1} parent=5 // pred_check
        %p1789 = pneg %p1788
      $region114: #{tpu_custom_call.1} parent=5 // pred_check_branch
        %1791 = sbr.rel (%p1789) target = $region116
      $region115: #{tpu_custom_call.1} parent=5 // pred_region
        %s1792 = ssub.s32 %s33, 2
        // Predicated region
        $region117: #{tpu_custom_call.1} parent=115 // pred_check
          %p1793 = pneg %p408
        $region118: #{tpu_custom_call.1} parent=115 // pred_check_branch
          %1795 = sbr.rel (%p1793) target = $region120
        $region119: #{tpu_custom_call.1} parent=115 // pred_region
          %s1796 = sand.u32 %s393, 1
          %s1797 = scalar_lea.sflag [#allocation5], %s1796
          %s1798 = sand.u32 %s393, 1
          %s1799 = smul.addr %s1798, 8
          %s1800 = scalar_lea.vmem [#allocation14], %s1799
          %1801 = dma.done %s1797, 128
        $region120: #{tpu_custom_call.1} parent=115 // pred_fallthru
          _
      $region116: #{tpu_custom_call.1} parent=5 // pred_fallthru
        _
    $region6: #{tpu_custom_call.1} parent=1 // loop_footer
      %s37 = sadd.s32 1, %s33
    $region7: #{tpu_custom_call.1} parent=1 // loop_footer_branch
      %32 = sbr.rel target = $region3
    $region8: #{tpu_custom_call.1} parent=1 // loop_exit
      _
    %1802 = vsyncpa [#allocation4], 1
    %s1803 = scalar_lea.sflag [#allocation4], 1
    %1804 = vsyncpa %s1803, 1
    %1805 = vsyncpa [#allocation7], 1
    %s1806 = scalar_lea.sflag [#allocation7], 1
    %1807 = vsyncpa %s1806, 1
    %1808 = vsyncpa [#allocation10], 1
    %1809 = vsyncpa [#allocation13], 1
    %1810 = vsyncpa [#allocation5], 1
    %s1811 = scalar_lea.sflag [#allocation5], 1
    %1812 = vsyncpa %s1811, 1

</llo_original>
